<compile_context>
chip_gen: v7x
topology: tpu7x:2x2x1
jax: 0.10.0
libtpu: 0.0.40
codegen_flags: <defaults>
</compile_context>

<pallas_src>
import numpy as np

import jax
import jax.numpy as jnp
from jax import lax
from jax.experimental import pallas as pl
from jax.experimental.pallas import tpu as pltpu


# ----------------------------------------------------------------------------
# Fused CBAM kernel (one image per grid step, lane-dense (C, H*W) layout)
# ----------------------------------------------------------------------------
def cbam_kernel(w_ref, x_ref, w1_ref, w2_ref, sh_ref, cw_ref, a_ref, b_ref, bt_ref, o_ref):
    # layouts:
    #   x_ref   (1, C, HW)  lane-dense image (HW in the lane dim)
    #   w1_ref  (Cmid, C)   first 1x1 conv weight
    #   w2_ref  (C, Cmid)   second 1x1 conv weight
    #   sh_ref  (7, H, H)   row-shift matrices   SH[ky][i, j] = (j == i + ky - 3)
    #   cw_ref  (7, W, W)   col-shift matrices   CW[kx][j, x] = (j == x + kx - 3)
    #   a_ref   (H, HW)     A[h, i] = (i // W == h)      (row indicator)
    #   b_ref   (W, HW)     B[w, i] = (i %  W == w)      (col indicator)
    #   bt_ref  (HW, W)     B transposed
    #   w_ref   (98,) SMEM  7x7 conv weight (1,2,7,7) flattened as (c, ky, kx)
    x = x_ref[0].astype(jnp.float32)                        # (C, HW)
    C, HW = x.shape

    # ---------------- channel attention ----------------
    avg = jnp.sum(x, axis=1, keepdims=True) * (1.0 / HW)    # (C, 1) == AdaptiveAvgPool2d(1)
    mx = jnp.max(x, axis=1, keepdims=True)                  # (C, 1) == AdaptiveMaxPool2d(1)

    def fc(v):                                              # v: (C, 1)
        h = jnp.maximum(
            jnp.dot(w1_ref[...], v, preferred_element_type=jnp.float32), 0.0)   # (Cmid, 1)
        return jnp.dot(w2_ref[...], h, preferred_element_type=jnp.float32)      # (C, 1)

    ch_scale = jax.nn.sigmoid(fc(avg) + fc(mx))             # (C, 1)
    y = x * ch_scale                                        # (C, HW)  broadcast over lanes

    # ---------------- spatial attention ----------------
    ca = jnp.sum(y, axis=0, keepdims=True) * (1.0 / C)      # (1, HW) channel mean
    cm = jnp.max(y, axis=0, keepdims=True)                  # (1, HW) channel max

    A = a_ref[...]                                          # (H, HW)
    B = b_ref[...]                                          # (W, HW)
    BT = bt_ref[...]                                        # (HW, W)

    # "unflatten" pooled maps to 2-D:  m2d[h, w] = m_flat[h*W + w]
    m0 = jnp.dot(A * ca, BT, preferred_element_type=jnp.float32)   # (H, W) mean map
    m1 = jnp.dot(A * cm, BT, preferred_element_type=jnp.float32)   # (H, W) max  map

    # factored 7x7 conv with zero padding (exact):
    #   acc = sum_kx [ sum_{c,ky} w[c,ky,kx] * (SH[ky] @ m_c) ] @ CW[kx]
    rs = [[jnp.dot(sh_ref[ky], m, preferred_element_type=jnp.float32) for ky in range(7)]
          for m in (m0, m1)]                                # 14 row-shift matmuls

    acc = jnp.zeros_like(m0)
    for kx in range(7):
        t = jnp.zeros_like(m0)
        for c in range(2):
            for ky in range(7):
                t = t + w_ref[c * 49 + ky * 7 + kx] * rs[c][ky]      # scalar*vec FMAs (VPU)
        acc = acc + jnp.dot(t, cw_ref[kx], preferred_element_type=jnp.float32)   # 7 col shifts

    s2d = jax.nn.sigmoid(acc)                               # (H, W)

    # "flatten" back to lane layout:  s_flat[i] = s2d[i // W, i % W]
    s_rows = A * jnp.dot(s2d, B, preferred_element_type=jnp.float32)   # (H, HW)
    s_flat = jnp.sum(s_rows, axis=0, keepdims=True)                    # (1, HW)

    o_ref[0] = (y * s_flat).astype(o_ref.dtype)             # lane-dense store


# ----------------------------------------------------------------------------
# Wrapper: contiguous reshapes only (free), constants hoisted to trace time
# ----------------------------------------------------------------------------
@jax.jit
def cbam_forward(x, w1, w2, w_spatial):
    """x: (N, C, H, W) float32.  w1: (Cmid, C), w2: (C, Cmid), w_spatial: (1, 2, 7, 7)."""
    N, C, H, W = x.shape
    Cmid = w1.shape[0]
    HW = H * W

    # Free (contiguous) reshapes — x stays in NCHW order, no transposes.
    x_flat = x.reshape(N, C, HW)
    w_flat = w_spatial.reshape(-1).astype(jnp.float32)      # (98,)

    # Compile-time constant helper matrices (built once, outside the kernel).
    idh = np.arange(H)
    idw = np.arange(W)
    idi = np.arange(HW)
    sh_np = np.stack([(idh[None, :] == idh[:, None] + (ky - 3)) for ky in range(7)]).astype(np.float32)
    cw_np = np.stack([(idw[:, None] == idw[None, :] + (kx - 3)) for kx in range(7)]).astype(np.float32)
    a_np = (idi[None, :] // W == idh[:, None]).astype(np.float32)      # (H, HW)
    b_np = (idi[None, :] % W == idw[:, None]).astype(np.float32)       # (W, HW)

    sh = jnp.asarray(sh_np)
    cw = jnp.asarray(cw_np)
    a_m = jnp.asarray(a_np)
    b_m = jnp.asarray(b_np)
    bt_m = jnp.asarray(np.ascontiguousarray(b_np.T))                    # (HW, W)

    out_flat = pl.pallas_call(
        cbam_kernel,
        out_shape=jax.ShapeDtypeStruct((N, C, HW), x.dtype),
        grid=(N,),
        in_specs=[
            pl.BlockSpec(memory_space=pltpu.MemorySpace.SMEM),          # conv7x7 weights (scalars)
            pl.BlockSpec((1, C, HW), lambda n: (n, 0, 0)),              # x (lane-dense)
            pl.BlockSpec((Cmid, C), lambda n: (0, 0)),                  # w1
            pl.BlockSpec((C, Cmid), lambda n: (0, 0)),                  # w2
            pl.BlockSpec((7, H, H), lambda n: (0, 0, 0)),               # row-shift mats
            pl.BlockSpec((7, W, W), lambda n: (0, 0, 0)),               # col-shift mats
            pl.BlockSpec((H, HW), lambda n: (0, 0)),                    # A
            pl.BlockSpec((W, HW), lambda n: (0, 0)),                    # B
            pl.BlockSpec((HW, W), lambda n: (0, 0)),                    # B^T
        ],
        out_specs=pl.BlockSpec((1, C, HW), lambda n: (n, 0, 0)),
        compiler_params=pltpu.CompilerParams(dimension_semantics=("parallel",)),
    )(w_flat, x_flat, w1, w2, sh, cw, a_m, b_m, bt_m)

    return out_flat.reshape(N, C, H, W)


# ----------------------------------------------------------------------------
# Pure-JAX reference (for correctness check)
# ----------------------------------------------------------------------------
def cbam_ref(x, w1, w2, w_spatial):
    avg = jnp.mean(x, axis=(2, 3))                           # (N, C)
    mx = jnp.max(x, axis=(2, 3))                             # (N, C)

    def fc(v):
        h = jnp.maximum(v @ w1.T, 0.0)
        return h @ w2.T

    scale = jax.nn.sigmoid(fc(avg) + fc(mx))[:, :, None, None]
    y = x * scale

    ca = jnp.mean(y, axis=1, keepdims=True)
    cm = jnp.max(y, axis=1, keepdims=True)
    m = jnp.concatenate([ca, cm], axis=1)                    # (N, 2, H, W)
    conv = lax.conv_general_dilated(
        m, w_spatial, window_strides=(1, 1), padding="SAME",
        dimension_numbers=("NCHW", "OIHW", "NCHW"))
    return y * jax.nn.sigmoid(conv)


# ----------------------------------------------------------------------------
if __name__ == "__main__":
    N, C, H, W = 2, 32, 16, 16          # reduction_ratio=16 -> Cmid = 2
    RATIO = 16
    Cmid = C // RATIO

    key = jax.random.PRNGKey(0)
    kx, k1, k2, k3 = jax.random.split(key, 4)

    x = jax.random.normal(kx, (N, C, H, W), jnp.float32)

    # c2_msra_fill == kaiming_normal_(mode='fan_out', nonlinearity='relu'), bias-free.
    w1 = jax.random.normal(k1, (Cmid, C), jnp.float32) * jnp.sqrt(2.0 / (Cmid * 1 * 1))
    w2 = jax.random.normal(k2, (C, Cmid), jnp.float32) * jnp.sqrt(2.0 / (C * 1 * 1))
    w_spatial = jax.random.normal(k3, (1, 2, 7, 7), jnp.float32) * jnp.sqrt(2.0 / (1 * 7 * 7))

    out = cbam_forward(x, w1, w2, w_spatial)
    out = jax.block_until_ready(out)

    ref = cbam_ref(x, w1, w2, w_spatial)
    assert out.shape == (N, C, H, W)
    assert jnp.allclose(out, ref, atol=1e-4, rtol=1e-4), (
        f"max abs err = {float(jnp.max(jnp.abs(out - ref)))}")

    print("KERNEL_OK")
</pallas_src>

<mosaic_0001>
module attributes {stable_mosaic.version = 11 : i64} {
  func.func @cbam_kernel(%arg0: i32, %arg1: memref<98xf32, #tpu.memory_space<smem>>, %arg2: memref<1x32x256xf32, #tpu.memory_space<vmem>>, %arg3: memref<2x32xf32, #tpu.memory_space<vmem>>, %arg4: memref<32x2xf32, #tpu.memory_space<vmem>>, %arg5: memref<7x16x16xf32, #tpu.memory_space<vmem>>, %arg6: memref<7x16x16xf32, #tpu.memory_space<vmem>>, %arg7: memref<16x256xf32, #tpu.memory_space<vmem>>, %arg8: memref<16x256xf32, #tpu.memory_space<vmem>>, %arg9: memref<256x16xf32, #tpu.memory_space<vmem>>, %arg10: memref<1x32x256xf32, #tpu.memory_space<vmem>>) attributes {dimension_semantics = [#tpu.dimension_semantics<parallel>], iteration_bounds = array<i64: 2>, scalar_prefetch = 0 : i64, scratch_operands = 0 : i64, tpu.core_type = #tpu.core_type<tc>, window_params = [{transform_indices = @transform_0, window_bounds = array<i64: 98>}, {transform_indices = @transform_1, window_bounds = array<i64: 1, 32, 256>}, {pipeline_mode = #tpu.pipeline_mode<synchronous>, transform_indices = @transform_2, window_bounds = array<i64: 2, 32>}, {pipeline_mode = #tpu.pipeline_mode<synchronous>, transform_indices = @transform_3, window_bounds = array<i64: 32, 2>}, {pipeline_mode = #tpu.pipeline_mode<synchronous>, transform_indices = @transform_4, window_bounds = array<i64: 7, 16, 16>}, {pipeline_mode = #tpu.pipeline_mode<synchronous>, transform_indices = @transform_5, window_bounds = array<i64: 7, 16, 16>}, {pipeline_mode = #tpu.pipeline_mode<synchronous>, transform_indices = @transform_6, window_bounds = array<i64: 16, 256>}, {pipeline_mode = #tpu.pipeline_mode<synchronous>, transform_indices = @transform_7, window_bounds = array<i64: 16, 256>}, {pipeline_mode = #tpu.pipeline_mode<synchronous>, transform_indices = @transform_8, window_bounds = array<i64: 256, 16>}, {transform_indices = @transform_9, window_bounds = array<i64: 1, 32, 256>}]} {
    %c0 = arith.constant 0 : index
    %c0_0 = arith.constant 0 : index
    %c0_1 = arith.constant 0 : index
    %0 = vector.load %arg2[%c0, %c0_0, %c0_1] : memref<1x32x256xf32, #tpu.memory_space<vmem>>, vector<1x32x256xf32>
    %1 = vector.shape_cast %0 : vector<1x32x256xf32> to vector<32x256xf32>
    %cst = arith.constant dense<0.000000e+00> : vector<32xf32>
    %2 = vector.multi_reduction <add>, %1, %cst [1] : vector<32x256xf32> to vector<32xf32>
    %3 = vector.shape_cast %2 : vector<32xf32> to vector<32x1xf32>
    %cst_2 = arith.constant 3.906250e-03 : f32
    %4 = vector.broadcast %cst_2 : f32 to vector<32x1xf32>
    %5 = arith.mulf %3, %4 : vector<32x1xf32>
    %cst_3 = arith.constant dense<0xFF800000> : vector<32xf32>
    %6 = vector.multi_reduction <maximumf>, %1, %cst_3 [1] : vector<32x256xf32> to vector<32xf32>
    %7 = vector.shape_cast %6 : vector<32xf32> to vector<32x1xf32>
    %c0_4 = arith.constant 0 : index
    %c0_5 = arith.constant 0 : index
    %8 = vector.load %arg3[%c0_4, %c0_5] : memref<2x32xf32, #tpu.memory_space<vmem>>, vector<2x32xf32>
    %cst_6 = arith.constant dense<0.000000e+00> : vector<2x1xf32>
    %9 = tpu.matmul %8, %5, %cst_6 {dimension_numbers = #tpu.dot_dimension_numbers<[1], [0], [0], [1], [0, 0, 1, 1], [], []>} : vector<2x32xf32>, vector<32x1xf32>, vector<2x1xf32> -> vector<2x1xf32>
    %cst_7 = arith.constant 0.000000e+00 : f32
    %10 = vector.broadcast %cst_7 : f32 to vector<2x1xf32>
    %11 = arith.maximumf %9, %10 : vector<2x1xf32>
    %c0_8 = arith.constant 0 : index
    %c0_9 = arith.constant 0 : index
    %12 = vector.load %arg4[%c0_8, %c0_9] : memref<32x2xf32, #tpu.memory_space<vmem>>, vector<32x2xf32>
    %cst_10 = arith.constant dense<0.000000e+00> : vector<32x1xf32>
    %13 = tpu.matmul %12, %11, %cst_10 {dimension_numbers = #tpu.dot_dimension_numbers<[1], [0], [0], [1], [0, 0, 1, 1], [], []>} : vector<32x2xf32>, vector<2x1xf32>, vector<32x1xf32> -> vector<32x1xf32>
    %c0_11 = arith.constant 0 : index
    %c0_12 = arith.constant 0 : index
    %14 = vector.load %arg3[%c0_11, %c0_12] : memref<2x32xf32, #tpu.memory_space<vmem>>, vector<2x32xf32>
    %cst_13 = arith.constant dense<0.000000e+00> : vector<2x1xf32>
    %15 = tpu.matmul %14, %7, %cst_13 {dimension_numbers = #tpu.dot_dimension_numbers<[1], [0], [0], [1], [0, 0, 1, 1], [], []>} : vector<2x32xf32>, vector<32x1xf32>, vector<2x1xf32> -> vector<2x1xf32>
    %cst_14 = arith.constant 0.000000e+00 : f32
    %16 = vector.broadcast %cst_14 : f32 to vector<2x1xf32>
    %17 = arith.maximumf %15, %16 : vector<2x1xf32>
    %c0_15 = arith.constant 0 : index
    %c0_16 = arith.constant 0 : index
    %18 = vector.load %arg4[%c0_15, %c0_16] : memref<32x2xf32, #tpu.memory_space<vmem>>, vector<32x2xf32>
    %cst_17 = arith.constant dense<0.000000e+00> : vector<32x1xf32>
    %19 = tpu.matmul %18, %17, %cst_17 {dimension_numbers = #tpu.dot_dimension_numbers<[1], [0], [0], [1], [0, 0, 1, 1], [], []>} : vector<32x2xf32>, vector<2x1xf32>, vector<32x1xf32> -> vector<32x1xf32>
    %20 = arith.addf %13, %19 : vector<32x1xf32>
    %21 = arith.negf %20 : vector<32x1xf32>
    %22 = math.exp %21 : vector<32x1xf32>
    %cst_18 = arith.constant 1.000000e+00 : f32
    %23 = vector.broadcast %cst_18 : f32 to vector<32x1xf32>
    %24 = arith.addf %23, %22 : vector<32x1xf32>
    %25 = arith.divf %23, %24 : vector<32x1xf32>
    %26 = vector.broadcast %25 : vector<32x1xf32> to vector<32x256xf32>
    %27 = arith.mulf %1, %26 : vector<32x256xf32>
    %cst_19 = arith.constant dense<0.000000e+00> : vector<256xf32>
    %28 = vector.multi_reduction <add>, %27, %cst_19 [0] : vector<32x256xf32> to vector<256xf32>
    %29 = vector.shape_cast %28 : vector<256xf32> to vector<1x256xf32>
    %cst_20 = arith.constant 3.125000e-02 : f32
    %30 = vector.broadcast %cst_20 : f32 to vector<1x256xf32>
    %31 = arith.mulf %29, %30 : vector<1x256xf32>
    %cst_21 = arith.constant dense<0xFF800000> : vector<256xf32>
    %32 = vector.multi_reduction <maximumf>, %27, %cst_21 [0] : vector<32x256xf32> to vector<256xf32>
    %33 = vector.shape_cast %32 : vector<256xf32> to vector<1x256xf32>
    %c0_22 = arith.constant 0 : index
    %c0_23 = arith.constant 0 : index
    %34 = vector.load %arg7[%c0_22, %c0_23] : memref<16x256xf32, #tpu.memory_space<vmem>>, vector<16x256xf32>
    %c0_24 = arith.constant 0 : index
    %c0_25 = arith.constant 0 : index
    %35 = vector.load %arg8[%c0_24, %c0_25] : memref<16x256xf32, #tpu.memory_space<vmem>>, vector<16x256xf32>
    %c0_26 = arith.constant 0 : index
    %c0_27 = arith.constant 0 : index
    %36 = vector.load %arg9[%c0_26, %c0_27] : memref<256x16xf32, #tpu.memory_space<vmem>>, vector<256x16xf32>
    %37 = vector.broadcast %31 : vector<1x256xf32> to vector<16x256xf32>
    %38 = arith.mulf %34, %37 : vector<16x256xf32>
    %cst_28 = arith.constant dense<0.000000e+00> : vector<16x16xf32>
    %39 = tpu.matmul %38, %36, %cst_28 {dimension_numbers = #tpu.dot_dimension_numbers<[1], [0], [0], [1], [0, 0, 1, 1], [], []>} : vector<16x256xf32>, vector<256x16xf32>, vector<16x16xf32> -> vector<16x16xf32>
    %40 = vector.broadcast %33 : vector<1x256xf32> to vector<16x256xf32>
    %41 = arith.mulf %34, %40 : vector<16x256xf32>
    %cst_29 = arith.constant dense<0.000000e+00> : vector<16x16xf32>
    %42 = tpu.matmul %41, %36, %cst_29 {dimension_numbers = #tpu.dot_dimension_numbers<[1], [0], [0], [1], [0, 0, 1, 1], [], []>} : vector<16x256xf32>, vector<256x16xf32>, vector<16x16xf32> -> vector<16x16xf32>
    %c0_30 = arith.constant 0 : index
    %c0_31 = arith.constant 0 : index
    %c0_32 = arith.constant 0 : index
    %43 = vector.load %arg5[%c0_30, %c0_31, %c0_32] : memref<7x16x16xf32, #tpu.memory_space<vmem>>, vector<1x16x16xf32>
    %44 = vector.shape_cast %43 : vector<1x16x16xf32> to vector<16x16xf32>
    %cst_33 = arith.constant dense<0.000000e+00> : vector<16x16xf32>
    %45 = tpu.matmul %44, %39, %cst_33 {dimension_numbers = #tpu.dot_dimension_numbers<[1], [0], [0], [1], [0, 0, 1, 1], [], []>} : vector<16x16xf32>, vector<16x16xf32>, vector<16x16xf32> -> vector<16x16xf32>
    %c1 = arith.constant 1 : index
    %c0_34 = arith.constant 0 : index
    %c0_35 = arith.constant 0 : index
    %46 = vector.load %arg5[%c1, %c0_34, %c0_35] : memref<7x16x16xf32, #tpu.memory_space<vmem>>, vector<1x16x16xf32>
    %47 = vector.shape_cast %46 : vector<1x16x16xf32> to vector<16x16xf32>
    %cst_36 = arith.constant dense<0.000000e+00> : vector<16x16xf32>
    %48 = tpu.matmul %47, %39, %cst_36 {dimension_numbers = #tpu.dot_dimension_numbers<[1], [0], [0], [1], [0, 0, 1, 1], [], []>} : vector<16x16xf32>, vector<16x16xf32>, vector<16x16xf32> -> vector<16x16xf32>
    %c2 = arith.constant 2 : index
    %c0_37 = arith.constant 0 : index
    %c0_38 = arith.constant 0 : index
    %49 = vector.load %arg5[%c2, %c0_37, %c0_38] : memref<7x16x16xf32, #tpu.memory_space<vmem>>, vector<1x16x16xf32>
    %50 = vector.shape_cast %49 : vector<1x16x16xf32> to vector<16x16xf32>
    %cst_39 = arith.constant dense<0.000000e+00> : vector<16x16xf32>
    %51 = tpu.matmul %50, %39, %cst_39 {dimension_numbers = #tpu.dot_dimension_numbers<[1], [0], [0], [1], [0, 0, 1, 1], [], []>} : vector<16x16xf32>, vector<16x16xf32>, vector<16x16xf32> -> vector<16x16xf32>
    %c3 = arith.constant 3 : index
    %c0_40 = arith.constant 0 : index
    %c0_41 = arith.constant 0 : index
    %52 = vector.load %arg5[%c3, %c0_40, %c0_41] : memref<7x16x16xf32, #tpu.memory_space<vmem>>, vector<1x16x16xf32>
    %53 = vector.shape_cast %52 : vector<1x16x16xf32> to vector<16x16xf32>
    %cst_42 = arith.constant dense<0.000000e+00> : vector<16x16xf32>
    %54 = tpu.matmul %53, %39, %cst_42 {dimension_numbers = #tpu.dot_dimension_numbers<[1], [0], [0], [1], [0, 0, 1, 1], [], []>} : vector<16x16xf32>, vector<16x16xf32>, vector<16x16xf32> -> vector<16x16xf32>
    %c4 = arith.constant 4 : index
    %c0_43 = arith.constant 0 : index
    %c0_44 = arith.constant 0 : index
    %55 = vector.load %arg5[%c4, %c0_43, %c0_44] : memref<7x16x16xf32, #tpu.memory_space<vmem>>, vector<1x16x16xf32>
    %56 = vector.shape_cast %55 : vector<1x16x16xf32> to vector<16x16xf32>
    %cst_45 = arith.constant dense<0.000000e+00> : vector<16x16xf32>
    %57 = tpu.matmul %56, %39, %cst_45 {dimension_numbers = #tpu.dot_dimension_numbers<[1], [0], [0], [1], [0, 0, 1, 1], [], []>} : vector<16x16xf32>, vector<16x16xf32>, vector<16x16xf32> -> vector<16x16xf32>
    %c5 = arith.constant 5 : index
    %c0_46 = arith.constant 0 : index
    %c0_47 = arith.constant 0 : index
    %58 = vector.load %arg5[%c5, %c0_46, %c0_47] : memref<7x16x16xf32, #tpu.memory_space<vmem>>, vector<1x16x16xf32>
    %59 = vector.shape_cast %58 : vector<1x16x16xf32> to vector<16x16xf32>
    %cst_48 = arith.constant dense<0.000000e+00> : vector<16x16xf32>
    %60 = tpu.matmul %59, %39, %cst_48 {dimension_numbers = #tpu.dot_dimension_numbers<[1], [0], [0], [1], [0, 0, 1, 1], [], []>} : vector<16x16xf32>, vector<16x16xf32>, vector<16x16xf32> -> vector<16x16xf32>
    %c6 = arith.constant 6 : index
    %c0_49 = arith.constant 0 : index
    %c0_50 = arith.constant 0 : index
    %61 = vector.load %arg5[%c6, %c0_49, %c0_50] : memref<7x16x16xf32, #tpu.memory_space<vmem>>, vector<1x16x16xf32>
    %62 = vector.shape_cast %61 : vector<1x16x16xf32> to vector<16x16xf32>
    %cst_51 = arith.constant dense<0.000000e+00> : vector<16x16xf32>
    %63 = tpu.matmul %62, %39, %cst_51 {dimension_numbers = #tpu.dot_dimension_numbers<[1], [0], [0], [1], [0, 0, 1, 1], [], []>} : vector<16x16xf32>, vector<16x16xf32>, vector<16x16xf32> -> vector<16x16xf32>
    %c0_52 = arith.constant 0 : index
    %c0_53 = arith.constant 0 : index
    %c0_54 = arith.constant 0 : index
    %64 = vector.load %arg5[%c0_52, %c0_53, %c0_54] : memref<7x16x16xf32, #tpu.memory_space<vmem>>, vector<1x16x16xf32>
    %65 = vector.shape_cast %64 : vector<1x16x16xf32> to vector<16x16xf32>
    %cst_55 = arith.constant dense<0.000000e+00> : vector<16x16xf32>
    %66 = tpu.matmul %65, %42, %cst_55 {dimension_numbers = #tpu.dot_dimension_numbers<[1], [0], [0], [1], [0, 0, 1, 1], [], []>} : vector<16x16xf32>, vector<16x16xf32>, vector<16x16xf32> -> vector<16x16xf32>
    %c1_56 = arith.constant 1 : index
    %c0_57 = arith.constant 0 : index
    %c0_58 = arith.constant 0 : index
    %67 = vector.load %arg5[%c1_56, %c0_57, %c0_58] : memref<7x16x16xf32, #tpu.memory_space<vmem>>, vector<1x16x16xf32>
    %68 = vector.shape_cast %67 : vector<1x16x16xf32> to vector<16x16xf32>
    %cst_59 = arith.constant dense<0.000000e+00> : vector<16x16xf32>
    %69 = tpu.matmul %68, %42, %cst_59 {dimension_numbers = #tpu.dot_dimension_numbers<[1], [0], [0], [1], [0, 0, 1, 1], [], []>} : vector<16x16xf32>, vector<16x16xf32>, vector<16x16xf32> -> vector<16x16xf32>
    %c2_60 = arith.constant 2 : index
    %c0_61 = arith.constant 0 : index
    %c0_62 = arith.constant 0 : index
    %70 = vector.load %arg5[%c2_60, %c0_61, %c0_62] : memref<7x16x16xf32, #tpu.memory_space<vmem>>, vector<1x16x16xf32>
    %71 = vector.shape_cast %70 : vector<1x16x16xf32> to vector<16x16xf32>
    %cst_63 = arith.constant dense<0.000000e+00> : vector<16x16xf32>
    %72 = tpu.matmul %71, %42, %cst_63 {dimension_numbers = #tpu.dot_dimension_numbers<[1], [0], [0], [1], [0, 0, 1, 1], [], []>} : vector<16x16xf32>, vector<16x16xf32>, vector<16x16xf32> -> vector<16x16xf32>
    %c3_64 = arith.constant 3 : index
    %c0_65 = arith.constant 0 : index
    %c0_66 = arith.constant 0 : index
    %73 = vector.load %arg5[%c3_64, %c0_65, %c0_66] : memref<7x16x16xf32, #tpu.memory_space<vmem>>, vector<1x16x16xf32>
    %74 = vector.shape_cast %73 : vector<1x16x16xf32> to vector<16x16xf32>
    %cst_67 = arith.constant dense<0.000000e+00> : vector<16x16xf32>
    %75 = tpu.matmul %74, %42, %cst_67 {dimension_numbers = #tpu.dot_dimension_numbers<[1], [0], [0], [1], [0, 0, 1, 1], [], []>} : vector<16x16xf32>, vector<16x16xf32>, vector<16x16xf32> -> vector<16x16xf32>
    %c4_68 = arith.constant 4 : index
    %c0_69 = arith.constant 0 : index
    %c0_70 = arith.constant 0 : index
    %76 = vector.load %arg5[%c4_68, %c0_69, %c0_70] : memref<7x16x16xf32, #tpu.memory_space<vmem>>, vector<1x16x16xf32>
    %77 = vector.shape_cast %76 : vector<1x16x16xf32> to vector<16x16xf32>
    %cst_71 = arith.constant dense<0.000000e+00> : vector<16x16xf32>
    %78 = tpu.matmul %77, %42, %cst_71 {dimension_numbers = #tpu.dot_dimension_numbers<[1], [0], [0], [1], [0, 0, 1, 1], [], []>} : vector<16x16xf32>, vector<16x16xf32>, vector<16x16xf32> -> vector<16x16xf32>
    %c5_72 = arith.constant 5 : index
    %c0_73 = arith.constant 0 : index
    %c0_74 = arith.constant 0 : index
    %79 = vector.load %arg5[%c5_72, %c0_73, %c0_74] : memref<7x16x16xf32, #tpu.memory_space<vmem>>, vector<1x16x16xf32>
    %80 = vector.shape_cast %79 : vector<1x16x16xf32> to vector<16x16xf32>
    %cst_75 = arith.constant dense<0.000000e+00> : vector<16x16xf32>
    %81 = tpu.matmul %80, %42, %cst_75 {dimension_numbers = #tpu.dot_dimension_numbers<[1], [0], [0], [1], [0, 0, 1, 1], [], []>} : vector<16x16xf32>, vector<16x16xf32>, vector<16x16xf32> -> vector<16x16xf32>
    %c6_76 = arith.constant 6 : index
    %c0_77 = arith.constant 0 : index
    %c0_78 = arith.constant 0 : index
    %82 = vector.load %arg5[%c6_76, %c0_77, %c0_78] : memref<7x16x16xf32, #tpu.memory_space<vmem>>, vector<1x16x16xf32>
    %83 = vector.shape_cast %82 : vector<1x16x16xf32> to vector<16x16xf32>
    %cst_79 = arith.constant dense<0.000000e+00> : vector<16x16xf32>
    %84 = tpu.matmul %83, %42, %cst_79 {dimension_numbers = #tpu.dot_dimension_numbers<[1], [0], [0], [1], [0, 0, 1, 1], [], []>} : vector<16x16xf32>, vector<16x16xf32>, vector<16x16xf32> -> vector<16x16xf32>
    %cst_80 = arith.constant 0.000000e+00 : f32
    %85 = vector.broadcast %cst_80 : f32 to vector<16x16xf32>
    %cst_81 = arith.constant 0.000000e+00 : f32
    %86 = vector.broadcast %cst_81 : f32 to vector<16x16xf32>
    %c0_82 = arith.constant 0 : index
    %87 = memref.load %arg1[%c0_82] : memref<98xf32, #tpu.memory_space<smem>>
    %88 = vector.broadcast %87 : f32 to vector<16x16xf32>
    %89 = arith.mulf %88, %45 : vector<16x16xf32>
    %90 = arith.addf %86, %89 : vector<16x16xf32>
    %c7 = arith.constant 7 : index
    %91 = memref.load %arg1[%c7] : memref<98xf32, #tpu.memory_space<smem>>
    %92 = vector.broadcast %91 : f32 to vector<16x16xf32>
    %93 = arith.mulf %92, %48 : vector<16x16xf32>
    %94 = arith.addf %90, %93 : vector<16x16xf32>
    %c14 = arith.constant 14 : index
    %95 = memref.load %arg1[%c14] : memref<98xf32, #tpu.memory_space<smem>>
    %96 = vector.broadcast %95 : f32 to vector<16x16xf32>
    %97 = arith.mulf %96, %51 : vector<16x16xf32>
    %98 = arith.addf %94, %97 : vector<16x16xf32>
    %c21 = arith.constant 21 : index
    %99 = memref.load %arg1[%c21] : memref<98xf32, #tpu.memory_space<smem>>
    %100 = vector.broadcast %99 : f32 to vector<16x16xf32>
    %101 = arith.mulf %100, %54 : vector<16x16xf32>
    %102 = arith.addf %98, %101 : vector<16x16xf32>
    %c28 = arith.constant 28 : index
    %103 = memref.load %arg1[%c28] : memref<98xf32, #tpu.memory_space<smem>>
    %104 = vector.broadcast %103 : f32 to vector<16x16xf32>
    %105 = arith.mulf %104, %57 : vector<16x16xf32>
    %106 = arith.addf %102, %105 : vector<16x16xf32>
    %c35 = arith.constant 35 : index
    %107 = memref.load %arg1[%c35] : memref<98xf32, #tpu.memory_space<smem>>
    %108 = vector.broadcast %107 : f32 to vector<16x16xf32>
    %109 = arith.mulf %108, %60 : vector<16x16xf32>
    %110 = arith.addf %106, %109 : vector<16x16xf32>
    %c42 = arith.constant 42 : index
    %111 = memref.load %arg1[%c42] : memref<98xf32, #tpu.memory_space<smem>>
    %112 = vector.broadcast %111 : f32 to vector<16x16xf32>
    %113 = arith.mulf %112, %63 : vector<16x16xf32>
    %114 = arith.addf %110, %113 : vector<16x16xf32>
    %c49 = arith.constant 49 : index
    %115 = memref.load %arg1[%c49] : memref<98xf32, #tpu.memory_space<smem>>
    %116 = vector.broadcast %115 : f32 to vector<16x16xf32>
    %117 = arith.mulf %116, %66 : vector<16x16xf32>
    %118 = arith.addf %114, %117 : vector<16x16xf32>
    %c56 = arith.constant 56 : index
    %119 = memref.load %arg1[%c56] : memref<98xf32, #tpu.memory_space<smem>>
    %120 = vector.broadcast %119 : f32 to vector<16x16xf32>
    %121 = arith.mulf %120, %69 : vector<16x16xf32>
    %122 = arith.addf %118, %121 : vector<16x16xf32>
    %c63 = arith.constant 63 : index
    %123 = memref.load %arg1[%c63] : memref<98xf32, #tpu.memory_space<smem>>
    %124 = vector.broadcast %123 : f32 to vector<16x16xf32>
    %125 = arith.mulf %124, %72 : vector<16x16xf32>
    %126 = arith.addf %122, %125 : vector<16x16xf32>
    %c70 = arith.constant 70 : index
    %127 = memref.load %arg1[%c70] : memref<98xf32, #tpu.memory_space<smem>>
    %128 = vector.broadcast %127 : f32 to vector<16x16xf32>
    %129 = arith.mulf %128, %75 : vector<16x16xf32>
    %130 = arith.addf %126, %129 : vector<16x16xf32>
    %c77 = arith.constant 77 : index
    %131 = memref.load %arg1[%c77] : memref<98xf32, #tpu.memory_space<smem>>
    %132 = vector.broadcast %131 : f32 to vector<16x16xf32>
    %133 = arith.mulf %132, %78 : vector<16x16xf32>
    %134 = arith.addf %130, %133 : vector<16x16xf32>
    %c84 = arith.constant 84 : index
    %135 = memref.load %arg1[%c84] : memref<98xf32, #tpu.memory_space<smem>>
    %136 = vector.broadcast %135 : f32 to vector<16x16xf32>
    %137 = arith.mulf %136, %81 : vector<16x16xf32>
    %138 = arith.addf %134, %137 : vector<16x16xf32>
    %c91 = arith.constant 91 : index
    %139 = memref.load %arg1[%c91] : memref<98xf32, #tpu.memory_space<smem>>
    %140 = vector.broadcast %139 : f32 to vector<16x16xf32>
    %141 = arith.mulf %140, %84 : vector<16x16xf32>
    %142 = arith.addf %138, %141 : vector<16x16xf32>
    %c0_83 = arith.constant 0 : index
    %c0_84 = arith.constant 0 : index
    %c0_85 = arith.constant 0 : index
    %143 = vector.load %arg6[%c0_83, %c0_84, %c0_85] : memref<7x16x16xf32, #tpu.memory_space<vmem>>, vector<1x16x16xf32>
    %144 = vector.shape_cast %143 : vector<1x16x16xf32> to vector<16x16xf32>
    %cst_86 = arith.constant dense<0.000000e+00> : vector<16x16xf32>
    %145 = tpu.matmul %142, %144, %cst_86 {dimension_numbers = #tpu.dot_dimension_numbers<[1], [0], [0], [1], [0, 0, 1, 1], [], []>} : vector<16x16xf32>, vector<16x16xf32>, vector<16x16xf32> -> vector<16x16xf32>
    %146 = arith.addf %85, %145 : vector<16x16xf32>
    %cst_87 = arith.constant 0.000000e+00 : f32
    %147 = vector.broadcast %cst_87 : f32 to vector<16x16xf32>
    %c1_88 = arith.constant 1 : index
    %148 = memref.load %arg1[%c1_88] : memref<98xf32, #tpu.memory_space<smem>>
    %149 = vector.broadcast %148 : f32 to vector<16x16xf32>
    %150 = arith.mulf %149, %45 : vector<16x16xf32>
    %151 = arith.addf %147, %150 : vector<16x16xf32>
    %c8 = arith.constant 8 : index
    %152 = memref.load %arg1[%c8] : memref<98xf32, #tpu.memory_space<smem>>
    %153 = vector.broadcast %152 : f32 to vector<16x16xf32>
    %154 = arith.mulf %153, %48 : vector<16x16xf32>
    %155 = arith.addf %151, %154 : vector<16x16xf32>
    %c15 = arith.constant 15 : index
    %156 = memref.load %arg1[%c15] : memref<98xf32, #tpu.memory_space<smem>>
    %157 = vector.broadcast %156 : f32 to vector<16x16xf32>
    %158 = arith.mulf %157, %51 : vector<16x16xf32>
    %159 = arith.addf %155, %158 : vector<16x16xf32>
    %c22 = arith.constant 22 : index
    %160 = memref.load %arg1[%c22] : memref<98xf32, #tpu.memory_space<smem>>
    %161 = vector.broadcast %160 : f32 to vector<16x16xf32>
    %162 = arith.mulf %161, %54 : vector<16x16xf32>
    %163 = arith.addf %159, %162 : vector<16x16xf32>
    %c29 = arith.constant 29 : index
    %164 = memref.load %arg1[%c29] : memref<98xf32, #tpu.memory_space<smem>>
    %165 = vector.broadcast %164 : f32 to vector<16x16xf32>
    %166 = arith.mulf %165, %57 : vector<16x16xf32>
    %167 = arith.addf %163, %166 : vector<16x16xf32>
    %c36 = arith.constant 36 : index
    %168 = memref.load %arg1[%c36] : memref<98xf32, #tpu.memory_space<smem>>
    %169 = vector.broadcast %168 : f32 to vector<16x16xf32>
    %170 = arith.mulf %169, %60 : vector<16x16xf32>
    %171 = arith.addf %167, %170 : vector<16x16xf32>
    %c43 = arith.constant 43 : index
    %172 = memref.load %arg1[%c43] : memref<98xf32, #tpu.memory_space<smem>>
    %173 = vector.broadcast %172 : f32 to vector<16x16xf32>
    %174 = arith.mulf %173, %63 : vector<16x16xf32>
    %175 = arith.addf %171, %174 : vector<16x16xf32>
    %c50 = arith.constant 50 : index
    %176 = memref.load %arg1[%c50] : memref<98xf32, #tpu.memory_space<smem>>
    %177 = vector.broadcast %176 : f32 to vector<16x16xf32>
    %178 = arith.mulf %177, %66 : vector<16x16xf32>
    %179 = arith.addf %175, %178 : vector<16x16xf32>
    %c57 = arith.constant 57 : index
    %180 = memref.load %arg1[%c57] : memref<98xf32, #tpu.memory_space<smem>>
    %181 = vector.broadcast %180 : f32 to vector<16x16xf32>
    %182 = arith.mulf %181, %69 : vector<16x16xf32>
    %183 = arith.addf %179, %182 : vector<16x16xf32>
    %c64 = arith.constant 64 : index
    %184 = memref.load %arg1[%c64] : memref<98xf32, #tpu.memory_space<smem>>
    %185 = vector.broadcast %184 : f32 to vector<16x16xf32>
    %186 = arith.mulf %185, %72 : vector<16x16xf32>
    %187 = arith.addf %183, %186 : vector<16x16xf32>
    %c71 = arith.constant 71 : index
    %188 = memref.load %arg1[%c71] : memref<98xf32, #tpu.memory_space<smem>>
    %189 = vector.broadcast %188 : f32 to vector<16x16xf32>
    %190 = arith.mulf %189, %75 : vector<16x16xf32>
    %191 = arith.addf %187, %190 : vector<16x16xf32>
    %c78 = arith.constant 78 : index
    %192 = memref.load %arg1[%c78] : memref<98xf32, #tpu.memory_space<smem>>
    %193 = vector.broadcast %192 : f32 to vector<16x16xf32>
    %194 = arith.mulf %193, %78 : vector<16x16xf32>
    %195 = arith.addf %191, %194 : vector<16x16xf32>
    %c85 = arith.constant 85 : index
    %196 = memref.load %arg1[%c85] : memref<98xf32, #tpu.memory_space<smem>>
    %197 = vector.broadcast %196 : f32 to vector<16x16xf32>
    %198 = arith.mulf %197, %81 : vector<16x16xf32>
    %199 = arith.addf %195, %198 : vector<16x16xf32>
    %c92 = arith.constant 92 : index
    %200 = memref.load %arg1[%c92] : memref<98xf32, #tpu.memory_space<smem>>
    %201 = vector.broadcast %200 : f32 to vector<16x16xf32>
    %202 = arith.mulf %201, %84 : vector<16x16xf32>
    %203 = arith.addf %199, %202 : vector<16x16xf32>
    %c1_89 = arith.constant 1 : index
    %c0_90 = arith.constant 0 : index
    %c0_91 = arith.constant 0 : index
    %204 = vector.load %arg6[%c1_89, %c0_90, %c0_91] : memref<7x16x16xf32, #tpu.memory_space<vmem>>, vector<1x16x16xf32>
    %205 = vector.shape_cast %204 : vector<1x16x16xf32> to vector<16x16xf32>
    %cst_92 = arith.constant dense<0.000000e+00> : vector<16x16xf32>
    %206 = tpu.matmul %203, %205, %cst_92 {dimension_numbers = #tpu.dot_dimension_numbers<[1], [0], [0], [1], [0, 0, 1, 1], [], []>} : vector<16x16xf32>, vector<16x16xf32>, vector<16x16xf32> -> vector<16x16xf32>
    %207 = arith.addf %146, %206 : vector<16x16xf32>
    %cst_93 = arith.constant 0.000000e+00 : f32
    %208 = vector.broadcast %cst_93 : f32 to vector<16x16xf32>
    %c2_94 = arith.constant 2 : index
    %209 = memref.load %arg1[%c2_94] : memref<98xf32, #tpu.memory_space<smem>>
    %210 = vector.broadcast %209 : f32 to vector<16x16xf32>
    %211 = arith.mulf %210, %45 : vector<16x16xf32>
    %212 = arith.addf %208, %211 : vector<16x16xf32>
    %c9 = arith.constant 9 : index
    %213 = memref.load %arg1[%c9] : memref<98xf32, #tpu.memory_space<smem>>
    %214 = vector.broadcast %213 : f32 to vector<16x16xf32>
    %215 = arith.mulf %214, %48 : vector<16x16xf32>
    %216 = arith.addf %212, %215 : vector<16x16xf32>
    %c16 = arith.constant 16 : index
    %217 = memref.load %arg1[%c16] : memref<98xf32, #tpu.memory_space<smem>>
    %218 = vector.broadcast %217 : f32 to vector<16x16xf32>
    %219 = arith.mulf %218, %51 : vector<16x16xf32>
    %220 = arith.addf %216, %219 : vector<16x16xf32>
    %c23 = arith.constant 23 : index
    %221 = memref.load %arg1[%c23] : memref<98xf32, #tpu.memory_space<smem>>
    %222 = vector.broadcast %221 : f32 to vector<16x16xf32>
    %223 = arith.mulf %222, %54 : vector<16x16xf32>
    %224 = arith.addf %220, %223 : vector<16x16xf32>
    %c30 = arith.constant 30 : index
    %225 = memref.load %arg1[%c30] : memref<98xf32, #tpu.memory_space<smem>>
    %226 = vector.broadcast %225 : f32 to vector<16x16xf32>
    %227 = arith.mulf %226, %57 : vector<16x16xf32>
    %228 = arith.addf %224, %227 : vector<16x16xf32>
    %c37 = arith.constant 37 : index
    %229 = memref.load %arg1[%c37] : memref<98xf32, #tpu.memory_space<smem>>
    %230 = vector.broadcast %229 : f32 to vector<16x16xf32>
    %231 = arith.mulf %230, %60 : vector<16x16xf32>
    %232 = arith.addf %228, %231 : vector<16x16xf32>
    %c44 = arith.constant 44 : index
    %233 = memref.load %arg1[%c44] : memref<98xf32, #tpu.memory_space<smem>>
    %234 = vector.broadcast %233 : f32 to vector<16x16xf32>
    %235 = arith.mulf %234, %63 : vector<16x16xf32>
    %236 = arith.addf %232, %235 : vector<16x16xf32>
    %c51 = arith.constant 51 : index
    %237 = memref.load %arg1[%c51] : memref<98xf32, #tpu.memory_space<smem>>
    %238 = vector.broadcast %237 : f32 to vector<16x16xf32>
    %239 = arith.mulf %238, %66 : vector<16x16xf32>
    %240 = arith.addf %236, %239 : vector<16x16xf32>
    %c58 = arith.constant 58 : index
    %241 = memref.load %arg1[%c58] : memref<98xf32, #tpu.memory_space<smem>>
    %242 = vector.broadcast %241 : f32 to vector<16x16xf32>
    %243 = arith.mulf %242, %69 : vector<16x16xf32>
    %244 = arith.addf %240, %243 : vector<16x16xf32>
    %c65 = arith.constant 65 : index
    %245 = memref.load %arg1[%c65] : memref<98xf32, #tpu.memory_space<smem>>
    %246 = vector.broadcast %245 : f32 to vector<16x16xf32>
    %247 = arith.mulf %246, %72 : vector<16x16xf32>
    %248 = arith.addf %244, %247 : vector<16x16xf32>
    %c72 = arith.constant 72 : index
    %249 = memref.load %arg1[%c72] : memref<98xf32, #tpu.memory_space<smem>>
    %250 = vector.broadcast %249 : f32 to vector<16x16xf32>
    %251 = arith.mulf %250, %75 : vector<16x16xf32>
    %252 = arith.addf %248, %251 : vector<16x16xf32>
    %c79 = arith.constant 79 : index
    %253 = memref.load %arg1[%c79] : memref<98xf32, #tpu.memory_space<smem>>
    %254 = vector.broadcast %253 : f32 to vector<16x16xf32>
    %255 = arith.mulf %254, %78 : vector<16x16xf32>
    %256 = arith.addf %252, %255 : vector<16x16xf32>
    %c86 = arith.constant 86 : index
    %257 = memref.load %arg1[%c86] : memref<98xf32, #tpu.memory_space<smem>>
    %258 = vector.broadcast %257 : f32 to vector<16x16xf32>
    %259 = arith.mulf %258, %81 : vector<16x16xf32>
    %260 = arith.addf %256, %259 : vector<16x16xf32>
    %c93 = arith.constant 93 : index
    %261 = memref.load %arg1[%c93] : memref<98xf32, #tpu.memory_space<smem>>
    %262 = vector.broadcast %261 : f32 to vector<16x16xf32>
    %263 = arith.mulf %262, %84 : vector<16x16xf32>
    %264 = arith.addf %260, %263 : vector<16x16xf32>
    %c2_95 = arith.constant 2 : index
    %c0_96 = arith.constant 0 : index
    %c0_97 = arith.constant 0 : index
    %265 = vector.load %arg6[%c2_95, %c0_96, %c0_97] : memref<7x16x16xf32, #tpu.memory_space<vmem>>, vector<1x16x16xf32>
    %266 = vector.shape_cast %265 : vector<1x16x16xf32> to vector<16x16xf32>
    %cst_98 = arith.constant dense<0.000000e+00> : vector<16x16xf32>
    %267 = tpu.matmul %264, %266, %cst_98 {dimension_numbers = #tpu.dot_dimension_numbers<[1], [0], [0], [1], [0, 0, 1, 1], [], []>} : vector<16x16xf32>, vector<16x16xf32>, vector<16x16xf32> -> vector<16x16xf32>
    %268 = arith.addf %207, %267 : vector<16x16xf32>
    %cst_99 = arith.constant 0.000000e+00 : f32
    %269 = vector.broadcast %cst_99 : f32 to vector<16x16xf32>
    %c3_100 = arith.constant 3 : index
    %270 = memref.load %arg1[%c3_100] : memref<98xf32, #tpu.memory_space<smem>>
    %271 = vector.broadcast %270 : f32 to vector<16x16xf32>
    %272 = arith.mulf %271, %45 : vector<16x16xf32>
    %273 = arith.addf %269, %272 : vector<16x16xf32>
    %c10 = arith.constant 10 : index
    %274 = memref.load %arg1[%c10] : memref<98xf32, #tpu.memory_space<smem>>
    %275 = vector.broadcast %274 : f32 to vector<16x16xf32>
    %276 = arith.mulf %275, %48 : vector<16x16xf32>
    %277 = arith.addf %273, %276 : vector<16x16xf32>
    %c17 = arith.constant 17 : index
    %278 = memref.load %arg1[%c17] : memref<98xf32, #tpu.memory_space<smem>>
    %279 = vector.broadcast %278 : f32 to vector<16x16xf32>
    %280 = arith.mulf %279, %51 : vector<16x16xf32>
    %281 = arith.addf %277, %280 : vector<16x16xf32>
    %c24 = arith.constant 24 : index
    %282 = memref.load %arg1[%c24] : memref<98xf32, #tpu.memory_space<smem>>
    %283 = vector.broadcast %282 : f32 to vector<16x16xf32>
    %284 = arith.mulf %283, %54 : vector<16x16xf32>
    %285 = arith.addf %281, %284 : vector<16x16xf32>
    %c31 = arith.constant 31 : index
    %286 = memref.load %arg1[%c31] : memref<98xf32, #tpu.memory_space<smem>>
    %287 = vector.broadcast %286 : f32 to vector<16x16xf32>
    %288 = arith.mulf %287, %57 : vector<16x16xf32>
    %289 = arith.addf %285, %288 : vector<16x16xf32>
    %c38 = arith.constant 38 : index
    %290 = memref.load %arg1[%c38] : memref<98xf32, #tpu.memory_space<smem>>
    %291 = vector.broadcast %290 : f32 to vector<16x16xf32>
    %292 = arith.mulf %291, %60 : vector<16x16xf32>
    %293 = arith.addf %289, %292 : vector<16x16xf32>
    %c45 = arith.constant 45 : index
    %294 = memref.load %arg1[%c45] : memref<98xf32, #tpu.memory_space<smem>>
    %295 = vector.broadcast %294 : f32 to vector<16x16xf32>
    %296 = arith.mulf %295, %63 : vector<16x16xf32>
    %297 = arith.addf %293, %296 : vector<16x16xf32>
    %c52 = arith.constant 52 : index
    %298 = memref.load %arg1[%c52] : memref<98xf32, #tpu.memory_space<smem>>
    %299 = vector.broadcast %298 : f32 to vector<16x16xf32>
    %300 = arith.mulf %299, %66 : vector<16x16xf32>
    %301 = arith.addf %297, %300 : vector<16x16xf32>
    %c59 = arith.constant 59 : index
    %302 = memref.load %arg1[%c59] : memref<98xf32, #tpu.memory_space<smem>>
    %303 = vector.broadcast %302 : f32 to vector<16x16xf32>
    %304 = arith.mulf %303, %69 : vector<16x16xf32>
    %305 = arith.addf %301, %304 : vector<16x16xf32>
    %c66 = arith.constant 66 : index
    %306 = memref.load %arg1[%c66] : memref<98xf32, #tpu.memory_space<smem>>
    %307 = vector.broadcast %306 : f32 to vector<16x16xf32>
    %308 = arith.mulf %307, %72 : vector<16x16xf32>
    %309 = arith.addf %305, %308 : vector<16x16xf32>
    %c73 = arith.constant 73 : index
    %310 = memref.load %arg1[%c73] : memref<98xf32, #tpu.memory_space<smem>>
    %311 = vector.broadcast %310 : f32 to vector<16x16xf32>
    %312 = arith.mulf %311, %75 : vector<16x16xf32>
    %313 = arith.addf %309, %312 : vector<16x16xf32>
    %c80 = arith.constant 80 : index
    %314 = memref.load %arg1[%c80] : memref<98xf32, #tpu.memory_space<smem>>
    %315 = vector.broadcast %314 : f32 to vector<16x16xf32>
    %316 = arith.mulf %315, %78 : vector<16x16xf32>
    %317 = arith.addf %313, %316 : vector<16x16xf32>
    %c87 = arith.constant 87 : index
    %318 = memref.load %arg1[%c87] : memref<98xf32, #tpu.memory_space<smem>>
    %319 = vector.broadcast %318 : f32 to vector<16x16xf32>
    %320 = arith.mulf %319, %81 : vector<16x16xf32>
    %321 = arith.addf %317, %320 : vector<16x16xf32>
    %c94 = arith.constant 94 : index
    %322 = memref.load %arg1[%c94] : memref<98xf32, #tpu.memory_space<smem>>
    %323 = vector.broadcast %322 : f32 to vector<16x16xf32>
    %324 = arith.mulf %323, %84 : vector<16x16xf32>
    %325 = arith.addf %321, %324 : vector<16x16xf32>
    %c3_101 = arith.constant 3 : index
    %c0_102 = arith.constant 0 : index
    %c0_103 = arith.constant 0 : index
    %326 = vector.load %arg6[%c3_101, %c0_102, %c0_103] : memref<7x16x16xf32, #tpu.memory_space<vmem>>, vector<1x16x16xf32>
    %327 = vector.shape_cast %326 : vector<1x16x16xf32> to vector<16x16xf32>
    %cst_104 = arith.constant dense<0.000000e+00> : vector<16x16xf32>
    %328 = tpu.matmul %325, %327, %cst_104 {dimension_numbers = #tpu.dot_dimension_numbers<[1], [0], [0], [1], [0, 0, 1, 1], [], []>} : vector<16x16xf32>, vector<16x16xf32>, vector<16x16xf32> -> vector<16x16xf32>
    %329 = arith.addf %268, %328 : vector<16x16xf32>
    %cst_105 = arith.constant 0.000000e+00 : f32
    %330 = vector.broadcast %cst_105 : f32 to vector<16x16xf32>
    %c4_106 = arith.constant 4 : index
    %331 = memref.load %arg1[%c4_106] : memref<98xf32, #tpu.memory_space<smem>>
    %332 = vector.broadcast %331 : f32 to vector<16x16xf32>
    %333 = arith.mulf %332, %45 : vector<16x16xf32>
    %334 = arith.addf %330, %333 : vector<16x16xf32>
    %c11 = arith.constant 11 : index
    %335 = memref.load %arg1[%c11] : memref<98xf32, #tpu.memory_space<smem>>
    %336 = vector.broadcast %335 : f32 to vector<16x16xf32>
    %337 = arith.mulf %336, %48 : vector<16x16xf32>
    %338 = arith.addf %334, %337 : vector<16x16xf32>
    %c18 = arith.constant 18 : index
    %339 = memref.load %arg1[%c18] : memref<98xf32, #tpu.memory_space<smem>>
    %340 = vector.broadcast %339 : f32 to vector<16x16xf32>
    %341 = arith.mulf %340, %51 : vector<16x16xf32>
    %342 = arith.addf %338, %341 : vector<16x16xf32>
    %c25 = arith.constant 25 : index
    %343 = memref.load %arg1[%c25] : memref<98xf32, #tpu.memory_space<smem>>
    %344 = vector.broadcast %343 : f32 to vector<16x16xf32>
    %345 = arith.mulf %344, %54 : vector<16x16xf32>
    %346 = arith.addf %342, %345 : vector<16x16xf32>
    %c32 = arith.constant 32 : index
    %347 = memref.load %arg1[%c32] : memref<98xf32, #tpu.memory_space<smem>>
    %348 = vector.broadcast %347 : f32 to vector<16x16xf32>
    %349 = arith.mulf %348, %57 : vector<16x16xf32>
    %350 = arith.addf %346, %349 : vector<16x16xf32>
    %c39 = arith.constant 39 : index
    %351 = memref.load %arg1[%c39] : memref<98xf32, #tpu.memory_space<smem>>
    %352 = vector.broadcast %351 : f32 to vector<16x16xf32>
    %353 = arith.mulf %352, %60 : vector<16x16xf32>
    %354 = arith.addf %350, %353 : vector<16x16xf32>
    %c46 = arith.constant 46 : index
    %355 = memref.load %arg1[%c46] : memref<98xf32, #tpu.memory_space<smem>>
    %356 = vector.broadcast %355 : f32 to vector<16x16xf32>
    %357 = arith.mulf %356, %63 : vector<16x16xf32>
    %358 = arith.addf %354, %357 : vector<16x16xf32>
    %c53 = arith.constant 53 : index
    %359 = memref.load %arg1[%c53] : memref<98xf32, #tpu.memory_space<smem>>
    %360 = vector.broadcast %359 : f32 to vector<16x16xf32>
    %361 = arith.mulf %360, %66 : vector<16x16xf32>
    %362 = arith.addf %358, %361 : vector<16x16xf32>
    %c60 = arith.constant 60 : index
    %363 = memref.load %arg1[%c60] : memref<98xf32, #tpu.memory_space<smem>>
    %364 = vector.broadcast %363 : f32 to vector<16x16xf32>
    %365 = arith.mulf %364, %69 : vector<16x16xf32>
    %366 = arith.addf %362, %365 : vector<16x16xf32>
    %c67 = arith.constant 67 : index
    %367 = memref.load %arg1[%c67] : memref<98xf32, #tpu.memory_space<smem>>
    %368 = vector.broadcast %367 : f32 to vector<16x16xf32>
    %369 = arith.mulf %368, %72 : vector<16x16xf32>
    %370 = arith.addf %366, %369 : vector<16x16xf32>
    %c74 = arith.constant 74 : index
    %371 = memref.load %arg1[%c74] : memref<98xf32, #tpu.memory_space<smem>>
    %372 = vector.broadcast %371 : f32 to vector<16x16xf32>
    %373 = arith.mulf %372, %75 : vector<16x16xf32>
    %374 = arith.addf %370, %373 : vector<16x16xf32>
    %c81 = arith.constant 81 : index
    %375 = memref.load %arg1[%c81] : memref<98xf32, #tpu.memory_space<smem>>
    %376 = vector.broadcast %375 : f32 to vector<16x16xf32>
    %377 = arith.mulf %376, %78 : vector<16x16xf32>
    %378 = arith.addf %374, %377 : vector<16x16xf32>
    %c88 = arith.constant 88 : index
    %379 = memref.load %arg1[%c88] : memref<98xf32, #tpu.memory_space<smem>>
    %380 = vector.broadcast %379 : f32 to vector<16x16xf32>
    %381 = arith.mulf %380, %81 : vector<16x16xf32>
    %382 = arith.addf %378, %381 : vector<16x16xf32>
    %c95 = arith.constant 95 : index
    %383 = memref.load %arg1[%c95] : memref<98xf32, #tpu.memory_space<smem>>
    %384 = vector.broadcast %383 : f32 to vector<16x16xf32>
    %385 = arith.mulf %384, %84 : vector<16x16xf32>
    %386 = arith.addf %382, %385 : vector<16x16xf32>
    %c4_107 = arith.constant 4 : index
    %c0_108 = arith.constant 0 : index
    %c0_109 = arith.constant 0 : index
    %387 = vector.load %arg6[%c4_107, %c0_108, %c0_109] : memref<7x16x16xf32, #tpu.memory_space<vmem>>, vector<1x16x16xf32>
    %388 = vector.shape_cast %387 : vector<1x16x16xf32> to vector<16x16xf32>
    %cst_110 = arith.constant dense<0.000000e+00> : vector<16x16xf32>
    %389 = tpu.matmul %386, %388, %cst_110 {dimension_numbers = #tpu.dot_dimension_numbers<[1], [0], [0], [1], [0, 0, 1, 1], [], []>} : vector<16x16xf32>, vector<16x16xf32>, vector<16x16xf32> -> vector<16x16xf32>
    %390 = arith.addf %329, %389 : vector<16x16xf32>
    %cst_111 = arith.constant 0.000000e+00 : f32
    %391 = vector.broadcast %cst_111 : f32 to vector<16x16xf32>
    %c5_112 = arith.constant 5 : index
    %392 = memref.load %arg1[%c5_112] : memref<98xf32, #tpu.memory_space<smem>>
    %393 = vector.broadcast %392 : f32 to vector<16x16xf32>
    %394 = arith.mulf %393, %45 : vector<16x16xf32>
    %395 = arith.addf %391, %394 : vector<16x16xf32>
    %c12 = arith.constant 12 : index
    %396 = memref.load %arg1[%c12] : memref<98xf32, #tpu.memory_space<smem>>
    %397 = vector.broadcast %396 : f32 to vector<16x16xf32>
    %398 = arith.mulf %397, %48 : vector<16x16xf32>
    %399 = arith.addf %395, %398 : vector<16x16xf32>
    %c19 = arith.constant 19 : index
    %400 = memref.load %arg1[%c19] : memref<98xf32, #tpu.memory_space<smem>>
    %401 = vector.broadcast %400 : f32 to vector<16x16xf32>
    %402 = arith.mulf %401, %51 : vector<16x16xf32>
    %403 = arith.addf %399, %402 : vector<16x16xf32>
    %c26 = arith.constant 26 : index
    %404 = memref.load %arg1[%c26] : memref<98xf32, #tpu.memory_space<smem>>
    %405 = vector.broadcast %404 : f32 to vector<16x16xf32>
    %406 = arith.mulf %405, %54 : vector<16x16xf32>
    %407 = arith.addf %403, %406 : vector<16x16xf32>
    %c33 = arith.constant 33 : index
    %408 = memref.load %arg1[%c33] : memref<98xf32, #tpu.memory_space<smem>>
    %409 = vector.broadcast %408 : f32 to vector<16x16xf32>
    %410 = arith.mulf %409, %57 : vector<16x16xf32>
    %411 = arith.addf %407, %410 : vector<16x16xf32>
    %c40 = arith.constant 40 : index
    %412 = memref.load %arg1[%c40] : memref<98xf32, #tpu.memory_space<smem>>
    %413 = vector.broadcast %412 : f32 to vector<16x16xf32>
    %414 = arith.mulf %413, %60 : vector<16x16xf32>
    %415 = arith.addf %411, %414 : vector<16x16xf32>
    %c47 = arith.constant 47 : index
    %416 = memref.load %arg1[%c47] : memref<98xf32, #tpu.memory_space<smem>>
    %417 = vector.broadcast %416 : f32 to vector<16x16xf32>
    %418 = arith.mulf %417, %63 : vector<16x16xf32>
    %419 = arith.addf %415, %418 : vector<16x16xf32>
    %c54 = arith.constant 54 : index
    %420 = memref.load %arg1[%c54] : memref<98xf32, #tpu.memory_space<smem>>
    %421 = vector.broadcast %420 : f32 to vector<16x16xf32>
    %422 = arith.mulf %421, %66 : vector<16x16xf32>
    %423 = arith.addf %419, %422 : vector<16x16xf32>
    %c61 = arith.constant 61 : index
    %424 = memref.load %arg1[%c61] : memref<98xf32, #tpu.memory_space<smem>>
    %425 = vector.broadcast %424 : f32 to vector<16x16xf32>
    %426 = arith.mulf %425, %69 : vector<16x16xf32>
    %427 = arith.addf %423, %426 : vector<16x16xf32>
    %c68 = arith.constant 68 : index
    %428 = memref.load %arg1[%c68] : memref<98xf32, #tpu.memory_space<smem>>
    %429 = vector.broadcast %428 : f32 to vector<16x16xf32>
    %430 = arith.mulf %429, %72 : vector<16x16xf32>
    %431 = arith.addf %427, %430 : vector<16x16xf32>
    %c75 = arith.constant 75 : index
    %432 = memref.load %arg1[%c75] : memref<98xf32, #tpu.memory_space<smem>>
    %433 = vector.broadcast %432 : f32 to vector<16x16xf32>
    %434 = arith.mulf %433, %75 : vector<16x16xf32>
    %435 = arith.addf %431, %434 : vector<16x16xf32>
    %c82 = arith.constant 82 : index
    %436 = memref.load %arg1[%c82] : memref<98xf32, #tpu.memory_space<smem>>
    %437 = vector.broadcast %436 : f32 to vector<16x16xf32>
    %438 = arith.mulf %437, %78 : vector<16x16xf32>
    %439 = arith.addf %435, %438 : vector<16x16xf32>
    %c89 = arith.constant 89 : index
    %440 = memref.load %arg1[%c89] : memref<98xf32, #tpu.memory_space<smem>>
    %441 = vector.broadcast %440 : f32 to vector<16x16xf32>
    %442 = arith.mulf %441, %81 : vector<16x16xf32>
    %443 = arith.addf %439, %442 : vector<16x16xf32>
    %c96 = arith.constant 96 : index
    %444 = memref.load %arg1[%c96] : memref<98xf32, #tpu.memory_space<smem>>
    %445 = vector.broadcast %444 : f32 to vector<16x16xf32>
    %446 = arith.mulf %445, %84 : vector<16x16xf32>
    %447 = arith.addf %443, %446 : vector<16x16xf32>
    %c5_113 = arith.constant 5 : index
    %c0_114 = arith.constant 0 : index
    %c0_115 = arith.constant 0 : index
    %448 = vector.load %arg6[%c5_113, %c0_114, %c0_115] : memref<7x16x16xf32, #tpu.memory_space<vmem>>, vector<1x16x16xf32>
    %449 = vector.shape_cast %448 : vector<1x16x16xf32> to vector<16x16xf32>
    %cst_116 = arith.constant dense<0.000000e+00> : vector<16x16xf32>
    %450 = tpu.matmul %447, %449, %cst_116 {dimension_numbers = #tpu.dot_dimension_numbers<[1], [0], [0], [1], [0, 0, 1, 1], [], []>} : vector<16x16xf32>, vector<16x16xf32>, vector<16x16xf32> -> vector<16x16xf32>
    %451 = arith.addf %390, %450 : vector<16x16xf32>
    %cst_117 = arith.constant 0.000000e+00 : f32
    %452 = vector.broadcast %cst_117 : f32 to vector<16x16xf32>
    %c6_118 = arith.constant 6 : index
    %453 = memref.load %arg1[%c6_118] : memref<98xf32, #tpu.memory_space<smem>>
    %454 = vector.broadcast %453 : f32 to vector<16x16xf32>
    %455 = arith.mulf %454, %45 : vector<16x16xf32>
    %456 = arith.addf %452, %455 : vector<16x16xf32>
    %c13 = arith.constant 13 : index
    %457 = memref.load %arg1[%c13] : memref<98xf32, #tpu.memory_space<smem>>
    %458 = vector.broadcast %457 : f32 to vector<16x16xf32>
    %459 = arith.mulf %458, %48 : vector<16x16xf32>
    %460 = arith.addf %456, %459 : vector<16x16xf32>
    %c20 = arith.constant 20 : index
    %461 = memref.load %arg1[%c20] : memref<98xf32, #tpu.memory_space<smem>>
    %462 = vector.broadcast %461 : f32 to vector<16x16xf32>
    %463 = arith.mulf %462, %51 : vector<16x16xf32>
    %464 = arith.addf %460, %463 : vector<16x16xf32>
    %c27 = arith.constant 27 : index
    %465 = memref.load %arg1[%c27] : memref<98xf32, #tpu.memory_space<smem>>
    %466 = vector.broadcast %465 : f32 to vector<16x16xf32>
    %467 = arith.mulf %466, %54 : vector<16x16xf32>
    %468 = arith.addf %464, %467 : vector<16x16xf32>
    %c34 = arith.constant 34 : index
    %469 = memref.load %arg1[%c34] : memref<98xf32, #tpu.memory_space<smem>>
    %470 = vector.broadcast %469 : f32 to vector<16x16xf32>
    %471 = arith.mulf %470, %57 : vector<16x16xf32>
    %472 = arith.addf %468, %471 : vector<16x16xf32>
    %c41 = arith.constant 41 : index
    %473 = memref.load %arg1[%c41] : memref<98xf32, #tpu.memory_space<smem>>
    %474 = vector.broadcast %473 : f32 to vector<16x16xf32>
    %475 = arith.mulf %474, %60 : vector<16x16xf32>
    %476 = arith.addf %472, %475 : vector<16x16xf32>
    %c48 = arith.constant 48 : index
    %477 = memref.load %arg1[%c48] : memref<98xf32, #tpu.memory_space<smem>>
    %478 = vector.broadcast %477 : f32 to vector<16x16xf32>
    %479 = arith.mulf %478, %63 : vector<16x16xf32>
    %480 = arith.addf %476, %479 : vector<16x16xf32>
    %c55 = arith.constant 55 : index
    %481 = memref.load %arg1[%c55] : memref<98xf32, #tpu.memory_space<smem>>
    %482 = vector.broadcast %481 : f32 to vector<16x16xf32>
    %483 = arith.mulf %482, %66 : vector<16x16xf32>
    %484 = arith.addf %480, %483 : vector<16x16xf32>
    %c62 = arith.constant 62 : index
    %485 = memref.load %arg1[%c62] : memref<98xf32, #tpu.memory_space<smem>>
    %486 = vector.broadcast %485 : f32 to vector<16x16xf32>
    %487 = arith.mulf %486, %69 : vector<16x16xf32>
    %488 = arith.addf %484, %487 : vector<16x16xf32>
    %c69 = arith.constant 69 : index
    %489 = memref.load %arg1[%c69] : memref<98xf32, #tpu.memory_space<smem>>
    %490 = vector.broadcast %489 : f32 to vector<16x16xf32>
    %491 = arith.mulf %490, %72 : vector<16x16xf32>
    %492 = arith.addf %488, %491 : vector<16x16xf32>
    %c76 = arith.constant 76 : index
    %493 = memref.load %arg1[%c76] : memref<98xf32, #tpu.memory_space<smem>>
    %494 = vector.broadcast %493 : f32 to vector<16x16xf32>
    %495 = arith.mulf %494, %75 : vector<16x16xf32>
    %496 = arith.addf %492, %495 : vector<16x16xf32>
    %c83 = arith.constant 83 : index
    %497 = memref.load %arg1[%c83] : memref<98xf32, #tpu.memory_space<smem>>
    %498 = vector.broadcast %497 : f32 to vector<16x16xf32>
    %499 = arith.mulf %498, %78 : vector<16x16xf32>
    %500 = arith.addf %496, %499 : vector<16x16xf32>
    %c90 = arith.constant 90 : index
    %501 = memref.load %arg1[%c90] : memref<98xf32, #tpu.memory_space<smem>>
    %502 = vector.broadcast %501 : f32 to vector<16x16xf32>
    %503 = arith.mulf %502, %81 : vector<16x16xf32>
    %504 = arith.addf %500, %503 : vector<16x16xf32>
    %c97 = arith.constant 97 : index
    %505 = memref.load %arg1[%c97] : memref<98xf32, #tpu.memory_space<smem>>
    %506 = vector.broadcast %505 : f32 to vector<16x16xf32>
    %507 = arith.mulf %506, %84 : vector<16x16xf32>
    %508 = arith.addf %504, %507 : vector<16x16xf32>
    %c6_119 = arith.constant 6 : index
    %c0_120 = arith.constant 0 : index
    %c0_121 = arith.constant 0 : index
    %509 = vector.load %arg6[%c6_119, %c0_120, %c0_121] : memref<7x16x16xf32, #tpu.memory_space<vmem>>, vector<1x16x16xf32>
    %510 = vector.shape_cast %509 : vector<1x16x16xf32> to vector<16x16xf32>
    %cst_122 = arith.constant dense<0.000000e+00> : vector<16x16xf32>
    %511 = tpu.matmul %508, %510, %cst_122 {dimension_numbers = #tpu.dot_dimension_numbers<[1], [0], [0], [1], [0, 0, 1, 1], [], []>} : vector<16x16xf32>, vector<16x16xf32>, vector<16x16xf32> -> vector<16x16xf32>
    %512 = arith.addf %451, %511 : vector<16x16xf32>
    %513 = arith.negf %512 : vector<16x16xf32>
    %514 = math.exp %513 : vector<16x16xf32>
    %cst_123 = arith.constant 1.000000e+00 : f32
    %515 = vector.broadcast %cst_123 : f32 to vector<16x16xf32>
    %516 = arith.addf %515, %514 : vector<16x16xf32>
    %517 = arith.divf %515, %516 : vector<16x16xf32>
    %cst_124 = arith.constant dense<0.000000e+00> : vector<16x256xf32>
    %518 = tpu.matmul %517, %35, %cst_124 {dimension_numbers = #tpu.dot_dimension_numbers<[1], [0], [0], [1], [0, 0, 1, 1], [], []>} : vector<16x16xf32>, vector<16x256xf32>, vector<16x256xf32> -> vector<16x256xf32>
    %519 = arith.mulf %34, %518 : vector<16x256xf32>
    %cst_125 = arith.constant dense<0.000000e+00> : vector<256xf32>
    %520 = vector.multi_reduction <add>, %519, %cst_125 [0] : vector<16x256xf32> to vector<256xf32>
    %521 = vector.shape_cast %520 : vector<256xf32> to vector<1x256xf32>
    %522 = vector.broadcast %521 : vector<1x256xf32> to vector<32x256xf32>
    %523 = arith.mulf %27, %522 : vector<32x256xf32>
    %c0_126 = arith.constant 0 : index
    %c0_127 = arith.constant 0 : index
    %c0_128 = arith.constant 0 : index
    %524 = vector.load %arg10[%c0_126, %c0_127, %c0_128] : memref<1x32x256xf32, #tpu.memory_space<vmem>>, vector<1x32x256xf32>
    %525 = vector.shape_cast %524 : vector<1x32x256xf32> to vector<32x256xf32>
    %526 = vector.shape_cast %523 : vector<32x256xf32> to vector<1x32x256xf32>
    tpu.vector_store %arg10[%c0_126, %c0_127, %c0_128], %526 {strides = array<i32>} : memref<1x32x256xf32, #tpu.memory_space<vmem>>, vector<1x32x256xf32>,
    return
  }
  func.func @transform_0(%arg0: i32) -> i32 {
    %c0_i32 = arith.constant 0 : i32
    %c0_i32_0 = arith.constant 0 : i32
    return %c0_i32 : i32
  }
  func.func @transform_1(%arg0: i32) -> (i32, i32, i32) {
    %c0_i32 = arith.constant 0 : i32
    %c0_i32_0 = arith.constant 0 : i32
    %c0_i32_1 = arith.constant 0 : i32
    return %arg0, %c0_i32, %c0_i32_0 : i32, i32, i32
  }
  func.func @transform_2(%arg0: i32) -> (i32, i32) {
    %c0_i32 = arith.constant 0 : i32
    %c0_i32_0 = arith.constant 0 : i32
    %c0_i32_1 = arith.constant 0 : i32
    return %c0_i32, %c0_i32_0 : i32, i32
  }
  func.func @transform_3(%arg0: i32) -> (i32, i32) {
    %c0_i32 = arith.constant 0 : i32
    %c0_i32_0 = arith.constant 0 : i32
    %c0_i32_1 = arith.constant 0 : i32
    return %c0_i32, %c0_i32_0 : i32, i32
  }
  func.func @transform_4(%arg0: i32) -> (i32, i32, i32) {
    %c0_i32 = arith.constant 0 : i32
    %c0_i32_0 = arith.constant 0 : i32
    %c0_i32_1 = arith.constant 0 : i32
    %c0_i32_2 = arith.constant 0 : i32
    return %c0_i32, %c0_i32_0, %c0_i32_1 : i32, i32, i32
  }
  func.func @transform_5(%arg0: i32) -> (i32, i32, i32) {
    %c0_i32 = arith.constant 0 : i32
    %c0_i32_0 = arith.constant 0 : i32
    %c0_i32_1 = arith.constant 0 : i32
    %c0_i32_2 = arith.constant 0 : i32
    return %c0_i32, %c0_i32_0, %c0_i32_1 : i32, i32, i32
  }
  func.func @transform_6(%arg0: i32) -> (i32, i32) {
    %c0_i32 = arith.constant 0 : i32
    %c0_i32_0 = arith.constant 0 : i32
    %c0_i32_1 = arith.constant 0 : i32
    return %c0_i32, %c0_i32_0 : i32, i32
  }
  func.func @transform_7(%arg0: i32) -> (i32, i32) {
    %c0_i32 = arith.constant 0 : i32
    %c0_i32_0 = arith.constant 0 : i32
    %c0_i32_1 = arith.constant 0 : i32
    return %c0_i32, %c0_i32_0 : i32, i32
  }
  func.func @transform_8(%arg0: i32) -> (i32, i32) {
    %c0_i32 = arith.constant 0 : i32
    %c0_i32_0 = arith.constant 0 : i32
    %c0_i32_1 = arith.constant 0 : i32
    return %c0_i32, %c0_i32_0 : i32, i32
  }
  func.func @transform_9(%arg0: i32) -> (i32, i32, i32) {
    %c0_i32 = arith.constant 0 : i32
    %c0_i32_0 = arith.constant 0 : i32
    %c0_i32_1 = arith.constant 0 : i32
    return %arg0, %c0_i32, %c0_i32_0 : i32, i32, i32
  }
}

</mosaic_0001>

<llo_original>
// kernel: cbam_forward.1
$region0: #{cbam_forward.1}
  #allocation0 [shape = 'u32[]', space=smem, size = 0x4, offset = 0x4, fixed_abs, tag = 'smem constant byte address 0x4 - core index']
  #allocation1 [shape = 'u32[144,128]{1,0:T(1,128)}', space=vmem, size = 0x12000, scoped, tag = 'internal scratch']
  %s0 = inlined_call_operand.vmem [shape: f32[98], index: 0, kind: input, shape index: {}]
  %s1 = inlined_call_operand.vmem [shape: f32[2,32,256], index: 1, kind: input, shape index: {}]
  %s2 = inlined_call_operand.vmem [shape: f32[2,32], index: 2, kind: input, shape index: {}]
  %s3 = inlined_call_operand.vmem [shape: f32[32,2], index: 3, kind: input, shape index: {}]
  %s4 = inlined_call_operand.vmem [shape: f32[7,16,16], index: 4, kind: input, shape index: {}]
  %s5 = inlined_call_operand.vmem [shape: f32[7,16,16], index: 5, kind: input, shape index: {}]
  %s6 = inlined_call_operand.vmem [shape: f32[16,256], index: 6, kind: input, shape index: {}]
  %s7 = inlined_call_operand.vmem [shape: f32[16,256], index: 7, kind: input, shape index: {}]
  %s8 = inlined_call_operand.vmem [shape: f32[256,16], index: 8, kind: input, shape index: {}]
  %s9 = inlined_call_operand.vmem [shape: f32[2,32,256], index: 9, kind: output, shape index: {}]
  %s10 = sld [smem:[#allocation0]]
  $region73: #{cbam_forward.1} parent=0
    _
  %s12 = ssub.s32 1, %s10
  %s13 = scalar_select 0, %s12, %s10
  $region1: #{cbam_forward.1} parent=0
    #allocation2 [shape = 'u8[512]{0}', space=smem, size = 0x200, scoped, tag = 'input window, operand 0, single buffered']
    #allocation3 [shape = 's32[2]{0}', space=sflag, size = 0x8, scoped, tag = 'scoped memory for cbam_forward.1']
    %14 = vsyncpa [#allocation3], 0
    loop: start=0, step=1, limit=4
    $region2: #{cbam_forward.1} parent=1 // loop_pre_header
      _
    $region3: #{cbam_forward.1} parent=1 // loop_header
      %s16 = sphi 0, %s20
      %p17 = scmp.ge.s32.totalorder %s16, 4
      %s24 = sphi 0, %s24
      %s26 = sphi 0, %s24
      %s27 = sphi 0, %s26
      %s41 = sphi 0, %s27
      %s47 = sphi 0, %s49
      %s50 = sphi 0, %s47
      %s51 = sphi 0, %s50
      %s67 = sphi 0, %s51
      %s71 = sphi 0, %s71
      %s73 = sphi 0, %s71
      %s74 = sphi 0, %s73
      %s88 = sphi 0, %s74
      %s92 = sphi 0, %s92
      %s94 = sphi 0, %s92
      %s95 = sphi 0, %s94
      %s109 = sphi 0, %s95
      %s113 = sphi 0, %s113
      %s115 = sphi 0, %s113
      %s116 = sphi 0, %s115
      %s130 = sphi 0, %s116
      %s134 = sphi 0, %s134
      %s136 = sphi 0, %s134
      %s137 = sphi 0, %s136
      %s151 = sphi 0, %s137
      %s155 = sphi 0, %s155
      %s157 = sphi 0, %s155
      %s158 = sphi 0, %s157
      %s172 = sphi 0, %s158
      %s176 = sphi 0, %s176
      %s178 = sphi 0, %s176
      %s179 = sphi 0, %s178
      %s193 = sphi 0, %s179
      %s197 = sphi 0, %s197
      %s199 = sphi 0, %s197
      %s200 = sphi 0, %s199
      %s214 = sphi 0, %s200
      %s220 = sphi 0, %s222
      %s223 = sphi 0, %s220
      %s224 = sphi 0, %s223
      %s240 = sphi 0, %s224
    $region4: #{cbam_forward.1} parent=1 // loop_header_branch
      %19 = sbr.rel (%p17) target = $region8
    $region5: #{cbam_forward.1} parent=1 // loop_body
      %s21 = ssub.s32 %s16, 1
      %s22 = ssub.s32 %s16, 2
      %s23 = sadd.s32 %s16, 1
      %s25 = sadd.s32 %s24, 1
      %p28 = scmp.eq.s32.totalorder %s16, 1
      %p29 = scmp.ne.s32.totalorder %s24, %s26
      %p30 = scmp.eq.s32.totalorder %s16, 0
      %p31 = por %p29, %p30
      %p32 = scmp.ne.s32.totalorder %s24, %s26
      %p33 = scmp.eq.s32.totalorder %s21, 1
      %p34 = por %p32, %p33
      %p35 = scmp.ne.s32.totalorder %s26, %s27
      %p36 = scmp.eq.s32.totalorder %s21, 0
      %p37 = por %p35, %p36
      %p38 = scmp.ne.s32.totalorder %s26, %s27
      %p39 = scmp.eq.s32.totalorder %s22, 1
      %p40 = por %p38, %p39
      %p42 = scmp.ne.s32.totalorder %s27, %s41
      %p43 = scmp.eq.s32.totalorder %s22, 0
      %p44 = por %p42, %p43
      %s45 = ssub.s32 %s16, %s23
      %p46 = scmp.eq.s32.totalorder %s45, 0
      %s48 = sadd.s32 %s47, 1
      %s49 = scalar_select %p46, %s47, %s48
      %p52 = pneg %p46
      %p53 = scmp.eq.s32.totalorder %s16, 1
      %p54 = por %p52, %p53
      %p55 = scmp.ne.s32.totalorder %s47, %s50
      %p56 = scmp.eq.s32.totalorder %s16, 0
      %p57 = por %p55, %p56
      %p58 = scmp.ne.s32.totalorder %s47, %s50
      %p59 = scmp.eq.s32.totalorder %s21, 1
      %p60 = por %p58, %p59
      %p61 = scmp.ne.s32.totalorder %s50, %s51
      %p62 = scmp.eq.s32.totalorder %s21, 0
      %p63 = por %p61, %p62
      %p64 = scmp.ne.s32.totalorder %s50, %s51
      %p65 = scmp.eq.s32.totalorder %s22, 1
      %p66 = por %p64, %p65
      %p68 = scmp.ne.s32.totalorder %s51, %s67
      %p69 = scmp.eq.s32.totalorder %s22, 0
      %p70 = por %p68, %p69
      %s72 = sadd.s32 %s71, 1
      %p75 = scmp.eq.s32.totalorder %s16, 1
      %p76 = scmp.ne.s32.totalorder %s71, %s73
      %p77 = scmp.eq.s32.totalorder %s16, 0
      %p78 = por %p76, %p77
      %p79 = scmp.ne.s32.totalorder %s71, %s73
      %p80 = scmp.eq.s32.totalorder %s21, 1
      %p81 = por %p79, %p80
      %p82 = scmp.ne.s32.totalorder %s73, %s74
      %p83 = scmp.eq.s32.totalorder %s21, 0
      %p84 = por %p82, %p83
      %p85 = scmp.ne.s32.totalorder %s73, %s74
      %p86 = scmp.eq.s32.totalorder %s22, 1
      %p87 = por %p85, %p86
      %p89 = scmp.ne.s32.totalorder %s74, %s88
      %p90 = scmp.eq.s32.totalorder %s22, 0
      %p91 = por %p89, %p90
      %s93 = sadd.s32 %s92, 1
      %p96 = scmp.eq.s32.totalorder %s16, 1
      %p97 = scmp.ne.s32.totalorder %s92, %s94
      %p98 = scmp.eq.s32.totalorder %s16, 0
      %p99 = por %p97, %p98
      %p100 = scmp.ne.s32.totalorder %s92, %s94
      %p101 = scmp.eq.s32.totalorder %s21, 1
      %p102 = por %p100, %p101
      %p103 = scmp.ne.s32.totalorder %s94, %s95
      %p104 = scmp.eq.s32.totalorder %s21, 0
      %p105 = por %p103, %p104
      %p106 = scmp.ne.s32.totalorder %s94, %s95
      %p107 = scmp.eq.s32.totalorder %s22, 1
      %p108 = por %p106, %p107
      %p110 = scmp.ne.s32.totalorder %s95, %s109
      %p111 = scmp.eq.s32.totalorder %s22, 0
      %p112 = por %p110, %p111
      %s114 = sadd.s32 %s113, 1
      %p117 = scmp.eq.s32.totalorder %s16, 1
      %p118 = scmp.ne.s32.totalorder %s113, %s115
      %p119 = scmp.eq.s32.totalorder %s16, 0
      %p120 = por %p118, %p119
      %p121 = scmp.ne.s32.totalorder %s113, %s115
      %p122 = scmp.eq.s32.totalorder %s21, 1
      %p123 = por %p121, %p122
      %p124 = scmp.ne.s32.totalorder %s115, %s116
      %p125 = scmp.eq.s32.totalorder %s21, 0
      %p126 = por %p124, %p125
      %p127 = scmp.ne.s32.totalorder %s115, %s116
      %p128 = scmp.eq.s32.totalorder %s22, 1
      %p129 = por %p127, %p128
      %p131 = scmp.ne.s32.totalorder %s116, %s130
      %p132 = scmp.eq.s32.totalorder %s22, 0
      %p133 = por %p131, %p132
      %s135 = sadd.s32 %s134, 1
      %p138 = scmp.eq.s32.totalorder %s16, 1
      %p139 = scmp.ne.s32.totalorder %s134, %s136
      %p140 = scmp.eq.s32.totalorder %s16, 0
      %p141 = por %p139, %p140
      %p142 = scmp.ne.s32.totalorder %s134, %s136
      %p143 = scmp.eq.s32.totalorder %s21, 1
      %p144 = por %p142, %p143
      %p145 = scmp.ne.s32.totalorder %s136, %s137
      %p146 = scmp.eq.s32.totalorder %s21, 0
      %p147 = por %p145, %p146
      %p148 = scmp.ne.s32.totalorder %s136, %s137
      %p149 = scmp.eq.s32.totalorder %s22, 1
      %p150 = por %p148, %p149
      %p152 = scmp.ne.s32.totalorder %s137, %s151
      %p153 = scmp.eq.s32.totalorder %s22, 0
      %p154 = por %p152, %p153
      %s156 = sadd.s32 %s155, 1
      %p159 = scmp.eq.s32.totalorder %s16, 1
      %p160 = scmp.ne.s32.totalorder %s155, %s157
      %p161 = scmp.eq.s32.totalorder %s16, 0
      %p162 = por %p160, %p161
      %p163 = scmp.ne.s32.totalorder %s155, %s157
      %p164 = scmp.eq.s32.totalorder %s21, 1
      %p165 = por %p163, %p164
      %p166 = scmp.ne.s32.totalorder %s157, %s158
      %p167 = scmp.eq.s32.totalorder %s21, 0
      %p168 = por %p166, %p167
      %p169 = scmp.ne.s32.totalorder %s157, %s158
      %p170 = scmp.eq.s32.totalorder %s22, 1
      %p171 = por %p169, %p170
      %p173 = scmp.ne.s32.totalorder %s158, %s172
      %p174 = scmp.eq.s32.totalorder %s22, 0
      %p175 = por %p173, %p174
      %s177 = sadd.s32 %s176, 1
      %p180 = scmp.eq.s32.totalorder %s16, 1
      %p181 = scmp.ne.s32.totalorder %s176, %s178
      %p182 = scmp.eq.s32.totalorder %s16, 0
      %p183 = por %p181, %p182
      %p184 = scmp.ne.s32.totalorder %s176, %s178
      %p185 = scmp.eq.s32.totalorder %s21, 1
      %p186 = por %p184, %p185
      %p187 = scmp.ne.s32.totalorder %s178, %s179
      %p188 = scmp.eq.s32.totalorder %s21, 0
      %p189 = por %p187, %p188
      %p190 = scmp.ne.s32.totalorder %s178, %s179
      %p191 = scmp.eq.s32.totalorder %s22, 1
      %p192 = por %p190, %p191
      %p194 = scmp.ne.s32.totalorder %s179, %s193
      %p195 = scmp.eq.s32.totalorder %s22, 0
      %p196 = por %p194, %p195
      %s198 = sadd.s32 %s197, 1
      %p201 = scmp.eq.s32.totalorder %s16, 1
      %p202 = scmp.ne.s32.totalorder %s197, %s199
      %p203 = scmp.eq.s32.totalorder %s16, 0
      %p204 = por %p202, %p203
      %p205 = scmp.ne.s32.totalorder %s197, %s199
      %p206 = scmp.eq.s32.totalorder %s21, 1
      %p207 = por %p205, %p206
      %p208 = scmp.ne.s32.totalorder %s199, %s200
      %p209 = scmp.eq.s32.totalorder %s21, 0
      %p210 = por %p208, %p209
      %p211 = scmp.ne.s32.totalorder %s199, %s200
      %p212 = scmp.eq.s32.totalorder %s22, 1
      %p213 = por %p211, %p212
      %p215 = scmp.ne.s32.totalorder %s200, %s214
      %p216 = scmp.eq.s32.totalorder %s22, 0
      %p217 = por %p215, %p216
      %s218 = ssub.s32 %s16, %s23
      %p219 = scmp.eq.s32.totalorder %s218, 0
      %s221 = sadd.s32 %s220, 1
      %s222 = scalar_select %p219, %s220, %s221
      %p225 = pneg %p219
      %p226 = scmp.eq.s32.totalorder %s16, 1
      %p227 = por %p225, %p226
      %p228 = scmp.ne.s32.totalorder %s220, %s223
      %p229 = scmp.eq.s32.totalorder %s16, 0
      %p230 = por %p228, %p229
      %p231 = scmp.ne.s32.totalorder %s220, %s223
      %p232 = scmp.eq.s32.totalorder %s21, 1
      %p233 = por %p231, %p232
      %p234 = scmp.ne.s32.totalorder %s223, %s224
      %p235 = scmp.eq.s32.totalorder %s21, 0
      %p236 = por %p234, %p235
      %p237 = scmp.ne.s32.totalorder %s223, %s224
      %p238 = scmp.eq.s32.totalorder %s22, 1
      %p239 = por %p237, %p238
      %p241 = scmp.ne.s32.totalorder %s224, %s240
      %p242 = scmp.eq.s32.totalorder %s22, 0
      %p243 = por %p241, %p242
      %p244 = scmp.le.s32.totalorder 1, %s16
      %p245 = scmp.lt.s32.totalorder %s16, 3
      %p246 = pnand %p244, %p245
      %p247 = pneg %p246
      // Predicated region
      $region9: #{cbam_forward.1} parent=5 // pred_check
        _
      $region10: #{cbam_forward.1} parent=5 // pred_check_branch
        %249 = sbr.rel (%p246) target = $region12
      $region11: #{cbam_forward.1} parent=5 // pred_region
        %s250 = ssub.s32 %s16, 1
        // Predicated region
        $region13: #{cbam_forward.1} parent=11 // pred_check
          %p251 = pneg %p37
        $region14: #{cbam_forward.1} parent=11 // pred_check_branch
          %253 = sbr.rel (%p251) target = $region16
        $region15: #{cbam_forward.1} parent=11 // pred_region
          %s255 = ssub.s32 16, 16
          %256 = vsyncadd [#allocation3], %s255
          %s258 = sshll.u32 %s0, 4
          %s259 = int_to_ptr.vmem [resolvable:$true] %s258
          %261 = dma.vmem_to_smem %s259, 16, [#allocation2], [#allocation3]
        $region16: #{cbam_forward.1} parent=11 // pred_fallthru
          _
        // Predicated region
        $region17: #{cbam_forward.1} parent=11 // pred_check
          %p262 = pneg %p84
        $region18: #{cbam_forward.1} parent=11 // pred_check_branch
          %264 = sbr.rel (%p262) target = $region20
        $region19: #{cbam_forward.1} parent=11 // pred_region
          _
        $region20: #{cbam_forward.1} parent=11 // pred_fallthru
          _
        // Predicated region
        $region21: #{cbam_forward.1} parent=11 // pred_check
          %p265 = pneg %p105
        $region22: #{cbam_forward.1} parent=11 // pred_check_branch
          %267 = sbr.rel (%p265) target = $region24
        $region23: #{cbam_forward.1} parent=11 // pred_region
          _
        $region24: #{cbam_forward.1} parent=11 // pred_fallthru
          _
        // Predicated region
        $region25: #{cbam_forward.1} parent=11 // pred_check
          %p268 = pneg %p126
        $region26: #{cbam_forward.1} parent=11 // pred_check_branch
          %270 = sbr.rel (%p268) target = $region28
        $region27: #{cbam_forward.1} parent=11 // pred_region
          _
        $region28: #{cbam_forward.1} parent=11 // pred_fallthru
          _
        // Predicated region
        $region29: #{cbam_forward.1} parent=11 // pred_check
          %p271 = pneg %p147
        $region30: #{cbam_forward.1} parent=11 // pred_check_branch
          %273 = sbr.rel (%p271) target = $region32
        $region31: #{cbam_forward.1} parent=11 // pred_region
          _
        $region32: #{cbam_forward.1} parent=11 // pred_fallthru
          _
        // Predicated region
        $region33: #{cbam_forward.1} parent=11 // pred_check
          %p274 = pneg %p168
        $region34: #{cbam_forward.1} parent=11 // pred_check_branch
          %276 = sbr.rel (%p274) target = $region36
        $region35: #{cbam_forward.1} parent=11 // pred_region
          _
        $region36: #{cbam_forward.1} parent=11 // pred_fallthru
          _
        // Predicated region
        $region37: #{cbam_forward.1} parent=11 // pred_check
          %p277 = pneg %p189
        $region38: #{cbam_forward.1} parent=11 // pred_check_branch
          %279 = sbr.rel (%p277) target = $region40
        $region39: #{cbam_forward.1} parent=11 // pred_region
          _
        $region40: #{cbam_forward.1} parent=11 // pred_fallthru
          _
        // Predicated region
        $region41: #{cbam_forward.1} parent=11 // pred_check
          %p280 = pneg %p210
        $region42: #{cbam_forward.1} parent=11 // pred_check_branch
          %282 = sbr.rel (%p280) target = $region44
        $region43: #{cbam_forward.1} parent=11 // pred_region
          _
        $region44: #{cbam_forward.1} parent=11 // pred_fallthru
          _
      $region12: #{cbam_forward.1} parent=5 // pred_fallthru
        _
      %p283 = scmp.lt.s32.totalorder %s16, 2
      // Predicated region
      $region45: #{cbam_forward.1} parent=5 // pred_check
        %p284 = pneg %p283
      $region46: #{cbam_forward.1} parent=5 // pred_check_branch
        %286 = sbr.rel (%p284) target = $region48
      $region47: #{cbam_forward.1} parent=5 // pred_region
        // Predicated region
        $region49: #{cbam_forward.1} parent=47 // pred_check
          %p287 = pneg %p57
        $region50: #{cbam_forward.1} parent=47 // pred_check_branch
          %289 = sbr.rel (%p287) target = $region52
        $region51: #{cbam_forward.1} parent=47 // pred_region
          %p290 = scmp.lt.s32.totalorder %s16, 1
          %s291 = scalar_select %p290, %s16, 1
          %s292 = smul.addr %s291, 8
          %s293 = smul.addr %s292, 8
          %s294 = scalar_lea.vmem %s1, %s293
        $region52: #{cbam_forward.1} parent=47 // pred_fallthru
          _
      $region48: #{cbam_forward.1} parent=5 // pred_fallthru
        _
      %p295 = scmp.le.s32.totalorder 1, %s16
      %p296 = scmp.lt.s32.totalorder %s16, 3
      %p297 = pnand %p295, %p296
      %p298 = pneg %p297
      // Predicated region
      $region53: #{cbam_forward.1} parent=5 // pred_check
        _
      $region54: #{cbam_forward.1} parent=5 // pred_check_branch
        %300 = sbr.rel (%p297) target = $region56
      $region55: #{cbam_forward.1} parent=5 // pred_region
        %s301 = ssub.s32 %s16, 1
        // Predicated region
        $region57: #{cbam_forward.1} parent=55 // pred_check
          %p302 = pneg %p37
        $region58: #{cbam_forward.1} parent=55 // pred_check_branch
          %304 = sbr.rel (%p302) target = $region60
        $region59: #{cbam_forward.1} parent=55 // pred_region
          %305 = dma.done [#allocation3], 16
        $region60: #{cbam_forward.1} parent=55 // pred_fallthru
          _
        %306 = sfence
        %p307 = pneg %p37
        %p308 = pneg %p34
        %p309 = scmp.lt.s32.totalorder %s21, 1
        %s310 = scalar_select %p309, %s21, 1
        %s311 = smul.addr %s310, 8
        %s312 = smul.addr %s311, 8
        %s313 = scalar_lea.vmem %s1, %s312
        %p314 = pneg %p63
        %p315 = pneg %p60
        %p316 = pneg %p84
        %p317 = pneg %p81
        %p318 = pneg %p105
        %p319 = pneg %p102
        %p320 = pneg %p126
        %p321 = pneg %p123
        %p322 = pneg %p147
        %p323 = pneg %p144
        %p324 = pneg %p168
        %p325 = pneg %p165
        %p326 = pneg %p189
        %p327 = pneg %p186
        %p328 = pneg %p210
        %p329 = pneg %p207
        %p330 = pneg %p236
        %p331 = pneg %p233
        %p332 = scmp.lt.s32.totalorder %s21, 1
        %s333 = scalar_select %p332, %s21, 1
        %s334 = smul.addr %s333, 8
        %s335 = smul.addr %s334, 8
        %s336 = scalar_lea.vmem %s9, %s335
        %p337 = scmp.lt.s32.totalorder %s21, 1
        %s338 = scalar_select %p337, %s21, 1
        %s339 = smul.addr %s338, 8
        %s340 = smul.addr %s339, 8
        %s341 = scalar_lea.vmem %s1, %s340
        %p342 = scmp.lt.s32.totalorder %s21, 1
        %s343 = scalar_select %p342, %s21, 1
        %s344 = smul.addr %s343, 8
        %s345 = smul.addr %s344, 8
        %s346 = scalar_lea.vmem %s9, %s345
        %v347 = vld [vmem:[%s341] sm:$0xff]
        %v348 = vld [vmem:[%s341 + $0x8] sm:$0xff]
        %v349 = vld [vmem:[%s341 + $0x10] sm:$0xff]
        %v350 = vld [vmem:[%s341 + $0x18] sm:$0xff]
        %v351 = vld [vmem:[%s341 + $0x20] sm:$0xff]
        %v352 = vld [vmem:[%s341 + $0x28] sm:$0xff]
        %v353 = vld [vmem:[%s341 + $0x30] sm:$0xff]
        %v354 = vld [vmem:[%s341 + $0x38] sm:$0xff]
        %v355 = vadd.f32 %v347, %v348
        %356 = vadd.xlane.f32.xlu0 %v355
        %v357 = vpop.xlane.xlu0 %356
        %v358 = vadd.f32 %v349, %v350
        %359 = vadd.xlane.f32.xlu0 %v358
        %v360 = vpop.xlane.xlu0 %359
        %v361 = vadd.f32 %v351, %v352
        %362 = vadd.xlane.f32.xlu0 %v361
        %v363 = vpop.xlane.xlu0 %362
        %v364 = vadd.f32 %v353, %v354
        %365 = vadd.xlane.f32.xlu0 %v364
        %v366 = vpop.xlane.xlu0 %365
        %v367 = vmul.f32 %v357, 0.00390625
        %v368 = vmul.f32 %v360, 0.00390625
        %v369 = vmul.f32 %v363, 0.00390625
        %v370 = vmul.f32 %v366, 0.00390625
        %v371 = vmax.f32 %v347, %v348
        %372 = vmax.xlane.f32.xlu0 %v371
        %v373 = vpop.xlane.xlu0 %372
        %v374 = vmax.f32 %v349, %v350
        %375 = vmax.xlane.f32.xlu0 %v374
        %v376 = vpop.xlane.xlu0 %375
        %v377 = vmax.f32 %v351, %v352
        %378 = vmax.xlane.f32.xlu0 %v377
        %v379 = vpop.xlane.xlu0 %378
        %v380 = vmax.f32 %v353, %v354
        %381 = vmax.xlane.f32.xlu0 %v380
        %v382 = vpop.xlane.xlu0 %381
        %v383 = vld [vmem:[%s2] sm:$0x3]
        %vm384 = vcmask 261120
        %v386 = vsel %vm384, %v383, 0
        %388 = vmatprep.subr.mxu0 0.0
        %389 = vmatpush1.msra.mxu0 %v367
        %390 = vmatprep.subr.mxu0 0.0
        %391 = vmatpush1.msra.mxu0 %v368
        %392 = vmatprep.subr.mxu0 0.0
        %393 = vmatpush1.msra.mxu0 %v369
        %394 = vmatprep.subr.mxu0 0.0
        %395 = vmatpush1.msra.mxu0 %v370
        %396 = vmatprep.subr.mxu0 0.0
        %397 = vmatpush1.msra.mxu0 0.0
        %398 = vmatprep.subr.mxu0 0.0
        %399 = vmatpush1.msra.mxu0 0.0
        %400 = vmatprep.subr.mxu0 0.0
        %401 = vmatpush1.msra.mxu0 0.0
        %402 = vmatprep.subr.mxu0 0.0
        %403 = vmatpush1.msra.mxu0 0.0
        %404 = vmatprep.subr.mxu0 0.0
        %405 = vmatpush1.msra.mxu0 0.0
        %406 = vmatprep.subr.mxu0 0.0
        %407 = vmatpush1.msra.mxu0 0.0
        %408 = vmatprep.subr.mxu0 0.0
        %409 = vmatpush1.msra.mxu0 0.0
        %410 = vmatprep.subr.mxu0 0.0
        %411 = vmatpush1.msra.mxu0 0.0
        %412 = vmatprep.subr.mxu0 0.0
        %413 = vmatpush1.msra.mxu0 0.0
        %414 = vmatprep.subr.mxu0 0.0
        %415 = vmatpush1.msra.mxu0 0.0
        %416 = vmatprep.subr.mxu0 0.0
        %417 = vmatpush1.msra.mxu0 0.0
        %418 = vmatprep.subr.mxu0 0.0
        %419 = vmatpush1.msra.mxu0 0.0
        %420 = vmatprep.subr.mxu0 0.0
        %421 = vmatpush1.msra.mxu0 0.0
        %422 = vmatprep.subr.mxu0 0.0
        %423 = vmatpush1.msra.mxu0 0.0
        %424 = vmatprep.subr.mxu0 0.0
        %425 = vmatpush1.msra.mxu0 0.0
        %426 = vmatprep.subr.mxu0 0.0
        %427 = vmatpush1.msra.mxu0 0.0
        %428 = vmatprep.subr.mxu0 0.0
        %429 = vmatpush1.msra.mxu0 0.0
        %430 = vmatprep.subr.mxu0 0.0
        %431 = vmatpush1.msra.mxu0 0.0
        %432 = vmatprep.subr.mxu0 0.0
        %433 = vmatpush1.msra.mxu0 0.0
        %434 = vmatprep.subr.mxu0 0.0
        %435 = vmatpush1.msra.mxu0 0.0
        %436 = vmatprep.subr.mxu0 0.0
        %437 = vmatpush1.msra.mxu0 0.0
        %438 = vmatprep.subr.mxu0 0.0
        %439 = vmatpush1.msra.mxu0 0.0
        %440 = vmatprep.subr.mxu0 0.0
        %441 = vmatpush1.msra.mxu0 0.0
        %442 = vmatprep.subr.mxu0 0.0
        %443 = vmatpush1.msra.mxu0 0.0
        %444 = vmatprep.subr.mxu0 0.0
        %445 = vmatpush1.msra.mxu0 0.0
        %446 = vmatprep.subr.mxu0 0.0
        %447 = vmatpush1.msra.mxu0 0.0
        %448 = vmatprep.subr.mxu0 0.0
        %449 = vmatpush1.msra.mxu0 0.0
        %450 = vmatprep.subr.mxu0 0.0
        %451 = vmatpush1.msra.mxu0 0.0
        %452 = vmatprep.mubr.f32.mxu0 0.0
        %453 = vmatmul.mubr.f32.gmra.mrb[0].mxu0 %v386
        %v454 = vpop.f32.mrb[0].mxu0
        %v455 = vadd.f32 0.0, %v454
        %v456 = vpop.f32.mrb[0].mxu0
        %457 = vdwg.mxu0
        %v458 = vmax.f32 %v455, 0.0
        %v459 = vld [vmem:[%s3] sm:$0xff]
        %v460 = vld [vmem:[%s3 + $0x8] sm:$0xff]
        %v461 = vld [vmem:[%s3 + $0x10] sm:$0xff]
        %v462 = vld [vmem:[%s3 + $0x18] sm:$0xff]
        %463 = vmatprep.subr.mxu0 0.0
        %464 = vmatpush1.msra.mxu0 %v373
        %465 = vmatprep.subr.mxu0 0.0
        %466 = vmatpush1.msra.mxu0 %v376
        %467 = vmatprep.subr.mxu0 0.0
        %468 = vmatpush1.msra.mxu0 %v379
        %469 = vmatprep.subr.mxu0 0.0
        %470 = vmatpush1.msra.mxu0 %v382
        %471 = vmatprep.subr.mxu0 0.0
        %472 = vmatpush1.msra.mxu0 0.0
        %473 = vmatprep.subr.mxu0 0.0
        %474 = vmatpush1.msra.mxu0 0.0
        %475 = vmatprep.subr.mxu0 0.0
        %476 = vmatpush1.msra.mxu0 0.0
        %477 = vmatprep.subr.mxu0 0.0
        %478 = vmatpush1.msra.mxu0 0.0
        %479 = vmatprep.subr.mxu0 0.0
        %480 = vmatpush1.msra.mxu0 0.0
        %481 = vmatprep.subr.mxu0 0.0
        %482 = vmatpush1.msra.mxu0 0.0
        %483 = vmatprep.subr.mxu0 0.0
        %484 = vmatpush1.msra.mxu0 0.0
        %485 = vmatprep.subr.mxu0 0.0
        %486 = vmatpush1.msra.mxu0 0.0
        %487 = vmatprep.subr.mxu0 0.0
        %488 = vmatpush1.msra.mxu0 0.0
        %489 = vmatprep.subr.mxu0 0.0
        %490 = vmatpush1.msra.mxu0 0.0
        %491 = vmatprep.subr.mxu0 0.0
        %492 = vmatpush1.msra.mxu0 0.0
        %493 = vmatprep.subr.mxu0 0.0
        %494 = vmatpush1.msra.mxu0 0.0
        %495 = vmatprep.subr.mxu0 0.0
        %496 = vmatpush1.msra.mxu0 0.0
        %497 = vmatprep.subr.mxu0 0.0
        %498 = vmatpush1.msra.mxu0 0.0
        %499 = vmatprep.subr.mxu0 0.0
        %500 = vmatpush1.msra.mxu0 0.0
        %501 = vmatprep.subr.mxu0 0.0
        %502 = vmatpush1.msra.mxu0 0.0
        %503 = vmatprep.subr.mxu0 0.0
        %504 = vmatpush1.msra.mxu0 0.0
        %505 = vmatprep.subr.mxu0 0.0
        %506 = vmatpush1.msra.mxu0 0.0
        %507 = vmatprep.subr.mxu0 0.0
        %508 = vmatpush1.msra.mxu0 0.0
        %509 = vmatprep.subr.mxu0 0.0
        %510 = vmatpush1.msra.mxu0 0.0
        %511 = vmatprep.subr.mxu0 0.0
        %512 = vmatpush1.msra.mxu0 0.0
        %513 = vmatprep.subr.mxu0 0.0
        %514 = vmatpush1.msra.mxu0 0.0
        %515 = vmatprep.subr.mxu0 0.0
        %516 = vmatpush1.msra.mxu0 0.0
        %517 = vmatprep.subr.mxu0 0.0
        %518 = vmatpush1.msra.mxu0 0.0
        %519 = vmatprep.subr.mxu0 0.0
        %520 = vmatpush1.msra.mxu0 0.0
        %521 = vmatprep.subr.mxu0 0.0
        %522 = vmatpush1.msra.mxu0 0.0
        %523 = vmatprep.subr.mxu0 0.0
        %524 = vmatpush1.msra.mxu0 0.0
        %525 = vmatprep.subr.mxu0 0.0
        %526 = vmatpush1.msra.mxu0 0.0
        %527 = vmatprep.mubr.f32.mxu0 0.0
        %528 = vmatmul.mubr.f32.gmra.mrb[0].mxu0 %v386
        %v529 = vpop.f32.mrb[0].mxu0
        %v530 = vadd.f32 0.0, %v529
        %v531 = vpop.f32.mrb[0].mxu0
        %532 = vdwg.mxu0
        %v533 = vmax.f32 %v530, 0.0
        %vm534 = vcmask 15360
        %v536 = vsel %vm534, %v459, 0
        %v539 = vsel %vm534, %v460, 0
        %v542 = vsel %vm534, %v461, 0
        %v545 = vsel %vm534, %v462, 0
        %vm547 = vcmask 1041408
        %v549 = vsel %vm547, %v533, 0
        %551 = vmatprep.subr.mxu0 0.0
        %552 = vmatpush1.msra.mxu0 %v549
        %553 = vmatprep.subr.mxu0 0.0
        %554 = vmatpush1.msra.mxu0 0.0
        %555 = vmatprep.subr.mxu0 0.0
        %556 = vmatpush1.msra.mxu0 0.0
        %557 = vmatprep.subr.mxu0 0.0
        %558 = vmatpush1.msra.mxu0 0.0
        %559 = vmatprep.subr.mxu0 0.0
        %560 = vmatpush1.msra.mxu0 0.0
        %561 = vmatprep.subr.mxu0 0.0
        %562 = vmatpush1.msra.mxu0 0.0
        %563 = vmatprep.subr.mxu0 0.0
        %564 = vmatpush1.msra.mxu0 0.0
        %565 = vmatprep.subr.mxu0 0.0
        %566 = vmatpush1.msra.mxu0 0.0
        %567 = vmatprep.subr.mxu0 0.0
        %568 = vmatpush1.msra.mxu0 0.0
        %569 = vmatprep.subr.mxu0 0.0
        %570 = vmatpush1.msra.mxu0 0.0
        %571 = vmatprep.subr.mxu0 0.0
        %572 = vmatpush1.msra.mxu0 0.0
        %573 = vmatprep.subr.mxu0 0.0
        %574 = vmatpush1.msra.mxu0 0.0
        %575 = vmatprep.subr.mxu0 0.0
        %576 = vmatpush1.msra.mxu0 0.0
        %577 = vmatprep.subr.mxu0 0.0
        %578 = vmatpush1.msra.mxu0 0.0
        %579 = vmatprep.subr.mxu0 0.0
        %580 = vmatpush1.msra.mxu0 0.0
        %581 = vmatprep.subr.mxu0 0.0
        %582 = vmatpush1.msra.mxu0 0.0
        %583 = vmatprep.subr.mxu0 0.0
        %584 = vmatpush1.msra.mxu0 0.0
        %585 = vmatprep.subr.mxu0 0.0
        %586 = vmatpush1.msra.mxu0 0.0
        %587 = vmatprep.subr.mxu0 0.0
        %588 = vmatpush1.msra.mxu0 0.0
        %589 = vmatprep.subr.mxu0 0.0
        %590 = vmatpush1.msra.mxu0 0.0
        %591 = vmatprep.subr.mxu0 0.0
        %592 = vmatpush1.msra.mxu0 0.0
        %593 = vmatprep.subr.mxu0 0.0
        %594 = vmatpush1.msra.mxu0 0.0
        %595 = vmatprep.subr.mxu0 0.0
        %596 = vmatpush1.msra.mxu0 0.0
        %597 = vmatprep.subr.mxu0 0.0
        %598 = vmatpush1.msra.mxu0 0.0
        %599 = vmatprep.subr.mxu0 0.0
        %600 = vmatpush1.msra.mxu0 0.0
        %601 = vmatprep.subr.mxu0 0.0
        %602 = vmatpush1.msra.mxu0 0.0
        %603 = vmatprep.subr.mxu0 0.0
        %604 = vmatpush1.msra.mxu0 0.0
        %605 = vmatprep.subr.mxu0 0.0
        %606 = vmatpush1.msra.mxu0 0.0
        %607 = vmatprep.subr.mxu0 0.0
        %608 = vmatpush1.msra.mxu0 0.0
        %609 = vmatprep.subr.mxu0 0.0
        %610 = vmatpush1.msra.mxu0 0.0
        %611 = vmatprep.subr.mxu0 0.0
        %612 = vmatpush1.msra.mxu0 0.0
        %613 = vmatprep.subr.mxu0 0.0
        %614 = vmatpush1.msra.mxu0 0.0
        %615 = vmatprep.mubr.f32.mxu0 0.0
        %616 = vmatmul.mubr.f32.gmra.mrb[0].mxu0 %v536
        %v617 = vpop.f32.mrb[0].mxu0
        %v618 = vadd.f32 0.0, %v617
        %v619 = vpop.f32.mrb[0].mxu0
        %620 = vmatprep.mubr.f32.mxu0 0.0
        %621 = vmatmul.mubr.f32.gmra.mrb[0].mxu0 %v539
        %v622 = vpop.f32.mrb[0].mxu0
        %v623 = vadd.f32 0.0, %v622
        %v624 = vpop.f32.mrb[0].mxu0
        %625 = vmatprep.mubr.f32.mxu0 0.0
        %626 = vmatmul.mubr.f32.gmra.mrb[0].mxu0 %v542
        %v627 = vpop.f32.mrb[0].mxu0
        %v628 = vadd.f32 0.0, %v627
        %v629 = vpop.f32.mrb[0].mxu0
        %630 = vmatprep.mubr.f32.mxu0 0.0
        %631 = vmatmul.mubr.f32.gmra.mrb[0].mxu0 %v545
        %v632 = vpop.f32.mrb[0].mxu0
        %v633 = vadd.f32 0.0, %v632
        %v634 = vpop.f32.mrb[0].mxu0
        %635 = vdwg.mxu0
        %v637 = vsel %vm547, %v458, 0
        %639 = vmatprep.subr.mxu0 0.0
        %640 = vmatpush1.msra.mxu0 %v637
        %641 = vmatprep.subr.mxu0 0.0
        %642 = vmatpush1.msra.mxu0 0.0
        %643 = vmatprep.subr.mxu0 0.0
        %644 = vmatpush1.msra.mxu0 0.0
        %645 = vmatprep.subr.mxu0 0.0
        %646 = vmatpush1.msra.mxu0 0.0
        %647 = vmatprep.subr.mxu0 0.0
        %648 = vmatpush1.msra.mxu0 0.0
        %649 = vmatprep.subr.mxu0 0.0
        %650 = vmatpush1.msra.mxu0 0.0
        %651 = vmatprep.subr.mxu0 0.0
        %652 = vmatpush1.msra.mxu0 0.0
        %653 = vmatprep.subr.mxu0 0.0
        %654 = vmatpush1.msra.mxu0 0.0
        %655 = vmatprep.subr.mxu0 0.0
        %656 = vmatpush1.msra.mxu0 0.0
        %657 = vmatprep.subr.mxu0 0.0
        %658 = vmatpush1.msra.mxu0 0.0
        %659 = vmatprep.subr.mxu0 0.0
        %660 = vmatpush1.msra.mxu0 0.0
        %661 = vmatprep.subr.mxu0 0.0
        %662 = vmatpush1.msra.mxu0 0.0
        %663 = vmatprep.subr.mxu0 0.0
        %664 = vmatpush1.msra.mxu0 0.0
        %665 = vmatprep.subr.mxu0 0.0
        %666 = vmatpush1.msra.mxu0 0.0
        %667 = vmatprep.subr.mxu0 0.0
        %668 = vmatpush1.msra.mxu0 0.0
        %669 = vmatprep.subr.mxu0 0.0
        %670 = vmatpush1.msra.mxu0 0.0
        %671 = vmatprep.subr.mxu0 0.0
        %672 = vmatpush1.msra.mxu0 0.0
        %673 = vmatprep.subr.mxu0 0.0
        %674 = vmatpush1.msra.mxu0 0.0
        %675 = vmatprep.subr.mxu0 0.0
        %676 = vmatpush1.msra.mxu0 0.0
        %677 = vmatprep.subr.mxu0 0.0
        %678 = vmatpush1.msra.mxu0 0.0
        %679 = vmatprep.subr.mxu0 0.0
        %680 = vmatpush1.msra.mxu0 0.0
        %681 = vmatprep.subr.mxu0 0.0
        %682 = vmatpush1.msra.mxu0 0.0
        %683 = vmatprep.subr.mxu0 0.0
        %684 = vmatpush1.msra.mxu0 0.0
        %685 = vmatprep.subr.mxu0 0.0
        %686 = vmatpush1.msra.mxu0 0.0
        %687 = vmatprep.subr.mxu0 0.0
        %688 = vmatpush1.msra.mxu0 0.0
        %689 = vmatprep.subr.mxu0 0.0
        %690 = vmatpush1.msra.mxu0 0.0
        %691 = vmatprep.subr.mxu0 0.0
        %692 = vmatpush1.msra.mxu0 0.0
        %693 = vmatprep.subr.mxu0 0.0
        %694 = vmatpush1.msra.mxu0 0.0
        %695 = vmatprep.subr.mxu0 0.0
        %696 = vmatpush1.msra.mxu0 0.0
        %697 = vmatprep.subr.mxu0 0.0
        %698 = vmatpush1.msra.mxu0 0.0
        %699 = vmatprep.subr.mxu0 0.0
        %700 = vmatpush1.msra.mxu0 0.0
        %701 = vmatprep.subr.mxu0 0.0
        %702 = vmatpush1.msra.mxu0 0.0
        %703 = vmatprep.mubr.f32.mxu0 0.0
        %704 = vmatmul.mubr.f32.gmra.mrb[0].mxu0 %v536
        %v705 = vpop.f32.mrb[0].mxu0
        %v706 = vadd.f32 %v618, %v705
        %v707 = vpop.f32.mrb[0].mxu0
        %708 = vmatprep.mubr.f32.mxu0 0.0
        %709 = vmatmul.mubr.f32.gmra.mrb[0].mxu0 %v539
        %v710 = vpop.f32.mrb[0].mxu0
        %v711 = vadd.f32 %v623, %v710
        %v712 = vpop.f32.mrb[0].mxu0
        %713 = vmatprep.mubr.f32.mxu0 0.0
        %714 = vmatmul.mubr.f32.gmra.mrb[0].mxu0 %v542
        %v715 = vpop.f32.mrb[0].mxu0
        %v716 = vadd.f32 %v628, %v715
        %v717 = vpop.f32.mrb[0].mxu0
        %718 = vmatprep.mubr.f32.mxu0 0.0
        %719 = vmatmul.mubr.f32.gmra.mrb[0].mxu0 %v545
        %v720 = vpop.f32.mrb[0].mxu0
        %v721 = vadd.f32 %v633, %v720
        %v722 = vpop.f32.mrb[0].mxu0
        %723 = vdwg.mxu0
        %v724 = vxor.u32 %v706, 2147483648
        %v725 = vxor.u32 %v711, 2147483648
        %v726 = vxor.u32 %v716, 2147483648
        %v727 = vxor.u32 %v721, 2147483648
        %v728 = vmul.f32 %v724, 1.442695
        %v729 = vpow.pop %v728
        %v730 = vmul.f32 %v725, 1.442695
        %v731 = vpow.pop %v730
        %v732 = vmul.f32 %v726, 1.442695
        %v733 = vpow.pop %v732
        %v734 = vmul.f32 %v727, 1.442695
        %v735 = vpow.pop %v734
        %v736 = vadd.f32 %v729, 1.0
        %v737 = vadd.f32 %v731, 1.0
        %v738 = vadd.f32 %v733, 1.0
        %v739 = vadd.f32 %v735, 1.0
        %v740 = vrcp.pop %v736
        %v741 = vmul.f32 1.0, %v740
        %v742 = vrcp.pop %v737
        %v743 = vmul.f32 1.0, %v742
        %v744 = vrcp.pop %v738
        %v745 = vmul.f32 1.0, %v744
        %v746 = vrcp.pop %v739
        %v747 = vmul.f32 1.0, %v746
        %749 = vset.pattern.permute.xlu0 0
        %750 = vperm.xlu0 %749, %v741
        %v751 = vpop.permute.xlu0 %750
        %754 = vset.pattern.permute.xlu0 0
        %755 = vperm.xlu0 %754, %v743
        %v756 = vpop.permute.xlu0 %755
        %759 = vset.pattern.permute.xlu0 0
        %760 = vperm.xlu0 %759, %v745
        %v761 = vpop.permute.xlu0 %760
        %764 = vset.pattern.permute.xlu0 0
        %765 = vperm.xlu0 %764, %v747
        %v766 = vpop.permute.xlu0 %765
        %v768 = vmul.f32 %v347, %v751
        %v769 = vmul.f32 %v348, %v751
        %v770 = vmul.f32 %v349, %v756
        %v771 = vmul.f32 %v350, %v756
        %v772 = vmul.f32 %v351, %v761
        %v773 = vmul.f32 %v352, %v761
        %v774 = vmul.f32 %v353, %v766
        %v775 = vmul.f32 %v354, %v766
        %v776 = vadd.f32 %v768, %v770
        %v777 = vadd.f32 %v776, %v772
        %v778 = vadd.f32 %v777, %v774
        %v779 = vrot.slane %v778, 4
        %v780 = vadd.f32 %v778, %v779
        %v781 = vrot.slane %v780, 2
        %v782 = vadd.f32 %v780, %v781
        %v783 = vrot.slane %v782, 1
        %v784 = vadd.f32 %v782, %v783
        %v785 = vadd.f32 %v769, %v771
        %v786 = vadd.f32 %v785, %v773
        %v787 = vadd.f32 %v786, %v775
        %v788 = vrot.slane %v787, 4
        %v789 = vadd.f32 %v787, %v788
        %v790 = vrot.slane %v789, 2
        %v791 = vadd.f32 %v789, %v790
        %v792 = vrot.slane %v791, 1
        %v793 = vadd.f32 %v791, %v792
        %v794 = vmul.f32 %v784, 0.03125
        %v795 = vmul.f32 %v793, 0.03125
        %v796 = vmax.f32 %v768, %v772
        %v797 = vmax.f32 %v770, %v774
        %v798 = vmax.f32 %v796, %v797
        %v799 = vrot.slane %v798, 4
        %v800 = vmax.f32 %v798, %v799
        %v801 = vrot.slane %v800, 2
        %v802 = vmax.f32 %v800, %v801
        %v803 = vrot.slane %v802, 1
        %v804 = vmax.f32 %v802, %v803
        %v805 = vmax.f32 %v769, %v773
        %v806 = vmax.f32 %v771, %v775
        %v807 = vmax.f32 %v805, %v806
        %v808 = vrot.slane %v807, 4
        %v809 = vmax.f32 %v807, %v808
        %v810 = vrot.slane %v809, 2
        %v811 = vmax.f32 %v809, %v810
        %v812 = vrot.slane %v811, 1
        %v813 = vmax.f32 %v811, %v812
        %v814 = vld [vmem:[%s6] sm:$0xff]
        %v815 = vld [vmem:[%s6 + $0x8] sm:$0xff]
        %v816 = vld [vmem:[%s6 + $0x10] sm:$0xff]
        %v817 = vld [vmem:[%s6 + $0x18] sm:$0xff]
        %v818 = vld [vmem:[%s7] sm:$0xff]
        %v819 = vld [vmem:[%s7 + $0x8] sm:$0xff]
        %v820 = vld [vmem:[%s7 + $0x10] sm:$0xff]
        %v821 = vld [vmem:[%s7 + $0x18] sm:$0xff]
        %v822 = vld [vmem:[%s8] sm:$0xff]
        %v823 = vld [vmem:[%s8 + $0x8] sm:$0xff]
        %v824 = vld [vmem:[%s8 + $0x10] sm:$0xff]
        %v825 = vld [vmem:[%s8 + $0x18] sm:$0xff]
        %v826 = vld [vmem:[%s8 + $0x20] sm:$0xff]
        %v827 = vld [vmem:[%s8 + $0x28] sm:$0xff]
        %v828 = vld [vmem:[%s8 + $0x30] sm:$0xff]
        %v829 = vld [vmem:[%s8 + $0x38] sm:$0xff]
        %v830 = vld [vmem:[%s8 + $0x40] sm:$0xff]
        %v831 = vld [vmem:[%s8 + $0x48] sm:$0xff]
        %v832 = vld [vmem:[%s8 + $0x50] sm:$0xff]
        %v833 = vld [vmem:[%s8 + $0x58] sm:$0xff]
        %v834 = vld [vmem:[%s8 + $0x60] sm:$0xff]
        %v835 = vld [vmem:[%s8 + $0x68] sm:$0xff]
        %v836 = vld [vmem:[%s8 + $0x70] sm:$0xff]
        %v837 = vld [vmem:[%s8 + $0x78] sm:$0xff]
        %v838 = vld [vmem:[%s8 + $0x80] sm:$0xff]
        %v839 = vld [vmem:[%s8 + $0x88] sm:$0xff]
        %v840 = vld [vmem:[%s8 + $0x90] sm:$0xff]
        %v841 = vld [vmem:[%s8 + $0x98] sm:$0xff]
        %v842 = vld [vmem:[%s8 + $0xa0] sm:$0xff]
        %v843 = vld [vmem:[%s8 + $0xa8] sm:$0xff]
        %v844 = vld [vmem:[%s8 + $0xb0] sm:$0xff]
        %v845 = vld [vmem:[%s8 + $0xb8] sm:$0xff]
        %v846 = vld [vmem:[%s8 + $0xc0] sm:$0xff]
        %v847 = vld [vmem:[%s8 + $0xc8] sm:$0xff]
        %v848 = vld [vmem:[%s8 + $0xd0] sm:$0xff]
        %v849 = vld [vmem:[%s8 + $0xd8] sm:$0xff]
        %v850 = vld [vmem:[%s8 + $0xe0] sm:$0xff]
        %v851 = vld [vmem:[%s8 + $0xe8] sm:$0xff]
        %v852 = vld [vmem:[%s8 + $0xf0] sm:$0xff]
        %v853 = vld [vmem:[%s8 + $0xf8] sm:$0xff]
        %v854 = vmul.f32 %v814, %v794
        %v855 = vmul.f32 %v815, %v795
        %v856 = vmul.f32 %v816, %v794
        %v857 = vmul.f32 %v817, %v795
        %858 = vmatprep.subr.mxu0 0.0
        %859 = vmatpush1.msra.mxu0 %v822
        %860 = vmatprep.subr.mxu0 0.0
        %861 = vmatpush1.msra.mxu0 %v823
        %862 = vmatprep.subr.mxu0 0.0
        %863 = vmatpush1.msra.mxu0 %v824
        %864 = vmatprep.subr.mxu0 0.0
        %865 = vmatpush1.msra.mxu0 %v825
        %866 = vmatprep.subr.mxu0 0.0
        %867 = vmatpush1.msra.mxu0 %v826
        %868 = vmatprep.subr.mxu0 0.0
        %869 = vmatpush1.msra.mxu0 %v827
        %870 = vmatprep.subr.mxu0 0.0
        %871 = vmatpush1.msra.mxu0 %v828
        %872 = vmatprep.subr.mxu0 0.0
        %873 = vmatpush1.msra.mxu0 %v829
        %874 = vmatprep.subr.mxu0 0.0
        %875 = vmatpush1.msra.mxu0 %v830
        %876 = vmatprep.subr.mxu0 0.0
        %877 = vmatpush1.msra.mxu0 %v831
        %878 = vmatprep.subr.mxu0 0.0
        %879 = vmatpush1.msra.mxu0 %v832
        %880 = vmatprep.subr.mxu0 0.0
        %881 = vmatpush1.msra.mxu0 %v833
        %882 = vmatprep.subr.mxu0 0.0
        %883 = vmatpush1.msra.mxu0 %v834
        %884 = vmatprep.subr.mxu0 0.0
        %885 = vmatpush1.msra.mxu0 %v835
        %886 = vmatprep.subr.mxu0 0.0
        %887 = vmatpush1.msra.mxu0 %v836
        %888 = vmatprep.subr.mxu0 0.0
        %889 = vmatpush1.msra.mxu0 %v837
        %890 = vmatprep.subr.mxu0 0.0
        %891 = vmatpush1.msra.mxu0 %v838
        %892 = vmatprep.subr.mxu0 0.0
        %893 = vmatpush1.msra.mxu0 %v839
        %894 = vmatprep.subr.mxu0 0.0
        %895 = vmatpush1.msra.mxu0 %v840
        %896 = vmatprep.subr.mxu0 0.0
        %897 = vmatpush1.msra.mxu0 %v841
        %898 = vmatprep.subr.mxu0 0.0
        %899 = vmatpush1.msra.mxu0 %v842
        %900 = vmatprep.subr.mxu0 0.0
        %901 = vmatpush1.msra.mxu0 %v843
        %902 = vmatprep.subr.mxu0 0.0
        %903 = vmatpush1.msra.mxu0 %v844
        %904 = vmatprep.subr.mxu0 0.0
        %905 = vmatpush1.msra.mxu0 %v845
        %906 = vmatprep.subr.mxu0 0.0
        %907 = vmatpush1.msra.mxu0 %v846
        %908 = vmatprep.subr.mxu0 0.0
        %909 = vmatpush1.msra.mxu0 %v847
        %910 = vmatprep.subr.mxu0 0.0
        %911 = vmatpush1.msra.mxu0 %v848
        %912 = vmatprep.subr.mxu0 0.0
        %913 = vmatpush1.msra.mxu0 %v849
        %914 = vmatprep.subr.mxu0 0.0
        %915 = vmatpush1.msra.mxu0 %v850
        %916 = vmatprep.subr.mxu0 0.0
        %917 = vmatpush1.msra.mxu0 %v851
        %918 = vmatprep.subr.mxu0 0.0
        %919 = vmatpush1.msra.mxu0 %v852
        %920 = vmatprep.subr.mxu0 0.0
        %921 = vmatpush1.msra.mxu0 %v853
        %922 = vmatprep.mubr.f32.mxu0 %v855
        %923 = vmatmul.mubr.f32.gmra.mrb[0].mxu0 %v854
        %v924 = vpop.f32.mrb[0].mxu0
        %v925 = vadd.f32 0.0, %v924
        %v926 = vpop.f32.mrb[0].mxu0
        %927 = vmatprep.mubr.f32.mxu0 %v857
        %928 = vmatmul.mubr.f32.gmra.mrb[0].mxu0 %v856
        %v929 = vpop.f32.mrb[0].mxu0
        %v930 = vadd.f32 0.0, %v929
        %v931 = vpop.f32.mrb[0].mxu0
        %932 = vdwg.mxu0
        %v933 = vmul.f32 %v814, %v804
        %v934 = vmul.f32 %v815, %v813
        %v935 = vmul.f32 %v816, %v804
        %v936 = vmul.f32 %v817, %v813
        %937 = vmatprep.subr.mxu0 0.0
        %938 = vmatpush1.msra.mxu0 %v822
        %939 = vmatprep.subr.mxu0 0.0
        %940 = vmatpush1.msra.mxu0 %v823
        %941 = vmatprep.subr.mxu0 0.0
        %942 = vmatpush1.msra.mxu0 %v824
        %943 = vmatprep.subr.mxu0 0.0
        %944 = vmatpush1.msra.mxu0 %v825
        %945 = vmatprep.subr.mxu0 0.0
        %946 = vmatpush1.msra.mxu0 %v826
        %947 = vmatprep.subr.mxu0 0.0
        %948 = vmatpush1.msra.mxu0 %v827
        %949 = vmatprep.subr.mxu0 0.0
        %950 = vmatpush1.msra.mxu0 %v828
        %951 = vmatprep.subr.mxu0 0.0
        %952 = vmatpush1.msra.mxu0 %v829
        %953 = vmatprep.subr.mxu0 0.0
        %954 = vmatpush1.msra.mxu0 %v830
        %955 = vmatprep.subr.mxu0 0.0
        %956 = vmatpush1.msra.mxu0 %v831
        %957 = vmatprep.subr.mxu0 0.0
        %958 = vmatpush1.msra.mxu0 %v832
        %959 = vmatprep.subr.mxu0 0.0
        %960 = vmatpush1.msra.mxu0 %v833
        %961 = vmatprep.subr.mxu0 0.0
        %962 = vmatpush1.msra.mxu0 %v834
        %963 = vmatprep.subr.mxu0 0.0
        %964 = vmatpush1.msra.mxu0 %v835
        %965 = vmatprep.subr.mxu0 0.0
        %966 = vmatpush1.msra.mxu0 %v836
        %967 = vmatprep.subr.mxu0 0.0
        %968 = vmatpush1.msra.mxu0 %v837
        %969 = vmatprep.subr.mxu0 0.0
        %970 = vmatpush1.msra.mxu0 %v838
        %971 = vmatprep.subr.mxu0 0.0
        %972 = vmatpush1.msra.mxu0 %v839
        %973 = vmatprep.subr.mxu0 0.0
        %974 = vmatpush1.msra.mxu0 %v840
        %975 = vmatprep.subr.mxu0 0.0
        %976 = vmatpush1.msra.mxu0 %v841
        %977 = vmatprep.subr.mxu0 0.0
        %978 = vmatpush1.msra.mxu0 %v842
        %979 = vmatprep.subr.mxu0 0.0
        %980 = vmatpush1.msra.mxu0 %v843
        %981 = vmatprep.subr.mxu0 0.0
        %982 = vmatpush1.msra.mxu0 %v844
        %983 = vmatprep.subr.mxu0 0.0
        %984 = vmatpush1.msra.mxu0 %v845
        %985 = vmatprep.subr.mxu0 0.0
        %986 = vmatpush1.msra.mxu0 %v846
        %987 = vmatprep.subr.mxu0 0.0
        %988 = vmatpush1.msra.mxu0 %v847
        %989 = vmatprep.subr.mxu0 0.0
        %990 = vmatpush1.msra.mxu0 %v848
        %991 = vmatprep.subr.mxu0 0.0
        %992 = vmatpush1.msra.mxu0 %v849
        %993 = vmatprep.subr.mxu0 0.0
        %994 = vmatpush1.msra.mxu0 %v850
        %995 = vmatprep.subr.mxu0 0.0
        %996 = vmatpush1.msra.mxu0 %v851
        %997 = vmatprep.subr.mxu0 0.0
        %998 = vmatpush1.msra.mxu0 %v852
        %999 = vmatprep.subr.mxu0 0.0
        %1000 = vmatpush1.msra.mxu0 %v853
        %1001 = vmatprep.mubr.f32.mxu0 %v934
        %1002 = vmatmul.mubr.f32.gmra.mrb[0].mxu0 %v933
        %v1003 = vpop.f32.mrb[0].mxu0
        %v1004 = vadd.f32 0.0, %v1003
        %v1005 = vpop.f32.mrb[0].mxu0
        %1006 = vmatprep.mubr.f32.mxu0 %v936
        %1007 = vmatmul.mubr.f32.gmra.mrb[0].mxu0 %v935
        %v1008 = vpop.f32.mrb[0].mxu0
        %v1009 = vadd.f32 0.0, %v1008
        %v1010 = vpop.f32.mrb[0].mxu0
        %1011 = vdwg.mxu0
        %v1012 = vld [vmem:[%s4] sm:$0xff]
        %v1013 = vld [vmem:[%s4 + $0x8] sm:$0xff]
        %vm1014 = vcmask 130048
        %v1016 = vsel %vm1014, %v1012, 0
        %v1019 = vsel %vm1014, %v1013, 0
        %1021 = vmatprep.subr.mxu0 0.0
        %1022 = vmatpush1.msra.mxu0 %v925
        %1023 = vmatprep.subr.mxu0 0.0
        %1024 = vmatpush1.msra.mxu0 %v930
        %1025 = vmatprep.subr.mxu0 0.0
        %1026 = vmatpush1.msra.mxu0 0.0
        %1027 = vmatprep.subr.mxu0 0.0
        %1028 = vmatpush1.msra.mxu0 0.0
        %1029 = vmatprep.subr.mxu0 0.0
        %1030 = vmatpush1.msra.mxu0 0.0
        %1031 = vmatprep.subr.mxu0 0.0
        %1032 = vmatpush1.msra.mxu0 0.0
        %1033 = vmatprep.subr.mxu0 0.0
        %1034 = vmatpush1.msra.mxu0 0.0
        %1035 = vmatprep.subr.mxu0 0.0
        %1036 = vmatpush1.msra.mxu0 0.0
        %1037 = vmatprep.subr.mxu0 0.0
        %1038 = vmatpush1.msra.mxu0 0.0
        %1039 = vmatprep.subr.mxu0 0.0
        %1040 = vmatpush1.msra.mxu0 0.0
        %1041 = vmatprep.subr.mxu0 0.0
        %1042 = vmatpush1.msra.mxu0 0.0
        %1043 = vmatprep.subr.mxu0 0.0
        %1044 = vmatpush1.msra.mxu0 0.0
        %1045 = vmatprep.subr.mxu0 0.0
        %1046 = vmatpush1.msra.mxu0 0.0
        %1047 = vmatprep.subr.mxu0 0.0
        %1048 = vmatpush1.msra.mxu0 0.0
        %1049 = vmatprep.subr.mxu0 0.0
        %1050 = vmatpush1.msra.mxu0 0.0
        %1051 = vmatprep.subr.mxu0 0.0
        %1052 = vmatpush1.msra.mxu0 0.0
        %1053 = vmatprep.subr.mxu0 0.0
        %1054 = vmatpush1.msra.mxu0 0.0
        %1055 = vmatprep.subr.mxu0 0.0
        %1056 = vmatpush1.msra.mxu0 0.0
        %1057 = vmatprep.subr.mxu0 0.0
        %1058 = vmatpush1.msra.mxu0 0.0
        %1059 = vmatprep.subr.mxu0 0.0
        %1060 = vmatpush1.msra.mxu0 0.0
        %1061 = vmatprep.subr.mxu0 0.0
        %1062 = vmatpush1.msra.mxu0 0.0
        %1063 = vmatprep.subr.mxu0 0.0
        %1064 = vmatpush1.msra.mxu0 0.0
        %1065 = vmatprep.subr.mxu0 0.0
        %1066 = vmatpush1.msra.mxu0 0.0
        %1067 = vmatprep.subr.mxu0 0.0
        %1068 = vmatpush1.msra.mxu0 0.0
        %1069 = vmatprep.subr.mxu0 0.0
        %1070 = vmatpush1.msra.mxu0 0.0
        %1071 = vmatprep.subr.mxu0 0.0
        %1072 = vmatpush1.msra.mxu0 0.0
        %1073 = vmatprep.subr.mxu0 0.0
        %1074 = vmatpush1.msra.mxu0 0.0
        %1075 = vmatprep.subr.mxu0 0.0
        %1076 = vmatpush1.msra.mxu0 0.0
        %1077 = vmatprep.subr.mxu0 0.0
        %1078 = vmatpush1.msra.mxu0 0.0
        %1079 = vmatprep.subr.mxu0 0.0
        %1080 = vmatpush1.msra.mxu0 0.0
        %1081 = vmatprep.subr.mxu0 0.0
        %1082 = vmatpush1.msra.mxu0 0.0
        %1083 = vmatprep.subr.mxu0 0.0
        %1084 = vmatpush1.msra.mxu0 0.0
        %1085 = vmatprep.mubr.f32.mxu0 0.0
        %1086 = vmatmul.mubr.f32.gmra.mrb[0].mxu0 %v1016
        %v1087 = vpop.f32.mrb[0].mxu0
        %v1088 = vadd.f32 0.0, %v1087
        %v1089 = vpop.f32.mrb[0].mxu0
        %1090 = vmatprep.mubr.f32.mxu0 0.0
        %1091 = vmatmul.mubr.f32.gmra.mrb[0].mxu0 %v1019
        %v1092 = vpop.f32.mrb[0].mxu0
        %v1093 = vadd.f32 0.0, %v1092
        %v1094 = vpop.f32.mrb[0].mxu0
        %1095 = vdwg.mxu0
        %s1096 = scalar_lea.vmem %s4, 16
        %v1097 = vld [vmem:[%s1096] sm:$0xff]
        %v1098 = vld [vmem:[%s1096 + $0x8] sm:$0xff]
        %v1100 = vsel %vm1014, %v1097, 0
        %v1103 = vsel %vm1014, %v1098, 0
        %1105 = vmatprep.subr.mxu0 0.0
        %1106 = vmatpush1.msra.mxu0 %v925
        %1107 = vmatprep.subr.mxu0 0.0
        %1108 = vmatpush1.msra.mxu0 %v930
        %1109 = vmatprep.subr.mxu0 0.0
        %1110 = vmatpush1.msra.mxu0 0.0
        %1111 = vmatprep.subr.mxu0 0.0
        %1112 = vmatpush1.msra.mxu0 0.0
        %1113 = vmatprep.subr.mxu0 0.0
        %1114 = vmatpush1.msra.mxu0 0.0
        %1115 = vmatprep.subr.mxu0 0.0
        %1116 = vmatpush1.msra.mxu0 0.0
        %1117 = vmatprep.subr.mxu0 0.0
        %1118 = vmatpush1.msra.mxu0 0.0
        %1119 = vmatprep.subr.mxu0 0.0
        %1120 = vmatpush1.msra.mxu0 0.0
        %1121 = vmatprep.subr.mxu0 0.0
        %1122 = vmatpush1.msra.mxu0 0.0
        %1123 = vmatprep.subr.mxu0 0.0
        %1124 = vmatpush1.msra.mxu0 0.0
        %1125 = vmatprep.subr.mxu0 0.0
        %1126 = vmatpush1.msra.mxu0 0.0
        %1127 = vmatprep.subr.mxu0 0.0
        %1128 = vmatpush1.msra.mxu0 0.0
        %1129 = vmatprep.subr.mxu0 0.0
        %1130 = vmatpush1.msra.mxu0 0.0
        %1131 = vmatprep.subr.mxu0 0.0
        %1132 = vmatpush1.msra.mxu0 0.0
        %1133 = vmatprep.subr.mxu0 0.0
        %1134 = vmatpush1.msra.mxu0 0.0
        %1135 = vmatprep.subr.mxu0 0.0
        %1136 = vmatpush1.msra.mxu0 0.0
        %1137 = vmatprep.subr.mxu0 0.0
        %1138 = vmatpush1.msra.mxu0 0.0
        %1139 = vmatprep.subr.mxu0 0.0
        %1140 = vmatpush1.msra.mxu0 0.0
        %1141 = vmatprep.subr.mxu0 0.0
        %1142 = vmatpush1.msra.mxu0 0.0
        %1143 = vmatprep.subr.mxu0 0.0
        %1144 = vmatpush1.msra.mxu0 0.0
        %1145 = vmatprep.subr.mxu0 0.0
        %1146 = vmatpush1.msra.mxu0 0.0
        %1147 = vmatprep.subr.mxu0 0.0
        %1148 = vmatpush1.msra.mxu0 0.0
        %1149 = vmatprep.subr.mxu0 0.0
        %1150 = vmatpush1.msra.mxu0 0.0
        %1151 = vmatprep.subr.mxu0 0.0
        %1152 = vmatpush1.msra.mxu0 0.0
        %1153 = vmatprep.subr.mxu0 0.0
        %1154 = vmatpush1.msra.mxu0 0.0
        %1155 = vmatprep.subr.mxu0 0.0
        %1156 = vmatpush1.msra.mxu0 0.0
        %1157 = vmatprep.subr.mxu0 0.0
        %1158 = vmatpush1.msra.mxu0 0.0
        %1159 = vmatprep.subr.mxu0 0.0
        %1160 = vmatpush1.msra.mxu0 0.0
        %1161 = vmatprep.subr.mxu0 0.0
        %1162 = vmatpush1.msra.mxu0 0.0
        %1163 = vmatprep.subr.mxu0 0.0
        %1164 = vmatpush1.msra.mxu0 0.0
        %1165 = vmatprep.subr.mxu0 0.0
        %1166 = vmatpush1.msra.mxu0 0.0
        %1167 = vmatprep.subr.mxu0 0.0
        %1168 = vmatpush1.msra.mxu0 0.0
        %1169 = vmatprep.mubr.f32.mxu0 0.0
        %1170 = vmatmul.mubr.f32.gmra.mrb[0].mxu0 %v1100
        %v1171 = vpop.f32.mrb[0].mxu0
        %v1172 = vadd.f32 0.0, %v1171
        %v1173 = vpop.f32.mrb[0].mxu0
        %1174 = vmatprep.mubr.f32.mxu0 0.0
        %1175 = vmatmul.mubr.f32.gmra.mrb[0].mxu0 %v1103
        %v1176 = vpop.f32.mrb[0].mxu0
        %v1177 = vadd.f32 0.0, %v1176
        %v1178 = vpop.f32.mrb[0].mxu0
        %1179 = vdwg.mxu0
        %s1180 = scalar_lea.vmem %s4, 32
        %v1181 = vld [vmem:[%s1180] sm:$0xff]
        %v1182 = vld [vmem:[%s1180 + $0x8] sm:$0xff]
        %v1184 = vsel %vm1014, %v1181, 0
        %v1187 = vsel %vm1014, %v1182, 0
        %1189 = vmatprep.subr.mxu0 0.0
        %1190 = vmatpush1.msra.mxu0 %v925
        %1191 = vmatprep.subr.mxu0 0.0
        %1192 = vmatpush1.msra.mxu0 %v930
        %1193 = vmatprep.subr.mxu0 0.0
        %1194 = vmatpush1.msra.mxu0 0.0
        %1195 = vmatprep.subr.mxu0 0.0
        %1196 = vmatpush1.msra.mxu0 0.0
        %1197 = vmatprep.subr.mxu0 0.0
        %1198 = vmatpush1.msra.mxu0 0.0
        %1199 = vmatprep.subr.mxu0 0.0
        %1200 = vmatpush1.msra.mxu0 0.0
        %1201 = vmatprep.subr.mxu0 0.0
        %1202 = vmatpush1.msra.mxu0 0.0
        %1203 = vmatprep.subr.mxu0 0.0
        %1204 = vmatpush1.msra.mxu0 0.0
        %1205 = vmatprep.subr.mxu0 0.0
        %1206 = vmatpush1.msra.mxu0 0.0
        %1207 = vmatprep.subr.mxu0 0.0
        %1208 = vmatpush1.msra.mxu0 0.0
        %1209 = vmatprep.subr.mxu0 0.0
        %1210 = vmatpush1.msra.mxu0 0.0
        %1211 = vmatprep.subr.mxu0 0.0
        %1212 = vmatpush1.msra.mxu0 0.0
        %1213 = vmatprep.subr.mxu0 0.0
        %1214 = vmatpush1.msra.mxu0 0.0
        %1215 = vmatprep.subr.mxu0 0.0
        %1216 = vmatpush1.msra.mxu0 0.0
        %1217 = vmatprep.subr.mxu0 0.0
        %1218 = vmatpush1.msra.mxu0 0.0
        %1219 = vmatprep.subr.mxu0 0.0
        %1220 = vmatpush1.msra.mxu0 0.0
        %1221 = vmatprep.subr.mxu0 0.0
        %1222 = vmatpush1.msra.mxu0 0.0
        %1223 = vmatprep.subr.mxu0 0.0
        %1224 = vmatpush1.msra.mxu0 0.0
        %1225 = vmatprep.subr.mxu0 0.0
        %1226 = vmatpush1.msra.mxu0 0.0
        %1227 = vmatprep.subr.mxu0 0.0
        %1228 = vmatpush1.msra.mxu0 0.0
        %1229 = vmatprep.subr.mxu0 0.0
        %1230 = vmatpush1.msra.mxu0 0.0
        %1231 = vmatprep.subr.mxu0 0.0
        %1232 = vmatpush1.msra.mxu0 0.0
        %1233 = vmatprep.subr.mxu0 0.0
        %1234 = vmatpush1.msra.mxu0 0.0
        %1235 = vmatprep.subr.mxu0 0.0
        %1236 = vmatpush1.msra.mxu0 0.0
        %1237 = vmatprep.subr.mxu0 0.0
        %1238 = vmatpush1.msra.mxu0 0.0
        %1239 = vmatprep.subr.mxu0 0.0
        %1240 = vmatpush1.msra.mxu0 0.0
        %1241 = vmatprep.subr.mxu0 0.0
        %1242 = vmatpush1.msra.mxu0 0.0
        %1243 = vmatprep.subr.mxu0 0.0
        %1244 = vmatpush1.msra.mxu0 0.0
        %1245 = vmatprep.subr.mxu0 0.0
        %1246 = vmatpush1.msra.mxu0 0.0
        %1247 = vmatprep.subr.mxu0 0.0
        %1248 = vmatpush1.msra.mxu0 0.0
        %1249 = vmatprep.subr.mxu0 0.0
        %1250 = vmatpush1.msra.mxu0 0.0
        %1251 = vmatprep.subr.mxu0 0.0
        %1252 = vmatpush1.msra.mxu0 0.0
        %1253 = vmatprep.mubr.f32.mxu0 0.0
        %1254 = vmatmul.mubr.f32.gmra.mrb[0].mxu0 %v1184
        %v1255 = vpop.f32.mrb[0].mxu0
        %v1256 = vadd.f32 0.0, %v1255
        %v1257 = vpop.f32.mrb[0].mxu0
        %1258 = vmatprep.mubr.f32.mxu0 0.0
        %1259 = vmatmul.mubr.f32.gmra.mrb[0].mxu0 %v1187
        %v1260 = vpop.f32.mrb[0].mxu0
        %v1261 = vadd.f32 0.0, %v1260
        %v1262 = vpop.f32.mrb[0].mxu0
        %1263 = vdwg.mxu0
        %s1264 = scalar_lea.vmem %s4, 48
        %v1265 = vld [vmem:[%s1264] sm:$0xff]
        %v1266 = vld [vmem:[%s1264 + $0x8] sm:$0xff]
        %v1268 = vsel %vm1014, %v1265, 0
        %v1271 = vsel %vm1014, %v1266, 0
        %1273 = vmatprep.subr.mxu0 0.0
        %1274 = vmatpush1.msra.mxu0 %v925
        %1275 = vmatprep.subr.mxu0 0.0
        %1276 = vmatpush1.msra.mxu0 %v930
        %1277 = vmatprep.subr.mxu0 0.0
        %1278 = vmatpush1.msra.mxu0 0.0
        %1279 = vmatprep.subr.mxu0 0.0
        %1280 = vmatpush1.msra.mxu0 0.0
        %1281 = vmatprep.subr.mxu0 0.0
        %1282 = vmatpush1.msra.mxu0 0.0
        %1283 = vmatprep.subr.mxu0 0.0
        %1284 = vmatpush1.msra.mxu0 0.0
        %1285 = vmatprep.subr.mxu0 0.0
        %1286 = vmatpush1.msra.mxu0 0.0
        %1287 = vmatprep.subr.mxu0 0.0
        %1288 = vmatpush1.msra.mxu0 0.0
        %1289 = vmatprep.subr.mxu0 0.0
        %1290 = vmatpush1.msra.mxu0 0.0
        %1291 = vmatprep.subr.mxu0 0.0
        %1292 = vmatpush1.msra.mxu0 0.0
        %1293 = vmatprep.subr.mxu0 0.0
        %1294 = vmatpush1.msra.mxu0 0.0
        %1295 = vmatprep.subr.mxu0 0.0
        %1296 = vmatpush1.msra.mxu0 0.0
        %1297 = vmatprep.subr.mxu0 0.0
        %1298 = vmatpush1.msra.mxu0 0.0
        %1299 = vmatprep.subr.mxu0 0.0
        %1300 = vmatpush1.msra.mxu0 0.0
        %1301 = vmatprep.subr.mxu0 0.0
        %1302 = vmatpush1.msra.mxu0 0.0
        %1303 = vmatprep.subr.mxu0 0.0
        %1304 = vmatpush1.msra.mxu0 0.0
        %1305 = vmatprep.subr.mxu0 0.0
        %1306 = vmatpush1.msra.mxu0 0.0
        %1307 = vmatprep.subr.mxu0 0.0
        %1308 = vmatpush1.msra.mxu0 0.0
        %1309 = vmatprep.subr.mxu0 0.0
        %1310 = vmatpush1.msra.mxu0 0.0
        %1311 = vmatprep.subr.mxu0 0.0
        %1312 = vmatpush1.msra.mxu0 0.0
        %1313 = vmatprep.subr.mxu0 0.0
        %1314 = vmatpush1.msra.mxu0 0.0
        %1315 = vmatprep.subr.mxu0 0.0
        %1316 = vmatpush1.msra.mxu0 0.0
        %1317 = vmatprep.subr.mxu0 0.0
        %1318 = vmatpush1.msra.mxu0 0.0
        %1319 = vmatprep.subr.mxu0 0.0
        %1320 = vmatpush1.msra.mxu0 0.0
        %1321 = vmatprep.subr.mxu0 0.0
        %1322 = vmatpush1.msra.mxu0 0.0
        %1323 = vmatprep.subr.mxu0 0.0
        %1324 = vmatpush1.msra.mxu0 0.0
        %1325 = vmatprep.subr.mxu0 0.0
        %1326 = vmatpush1.msra.mxu0 0.0
        %1327 = vmatprep.subr.mxu0 0.0
        %1328 = vmatpush1.msra.mxu0 0.0
        %1329 = vmatprep.subr.mxu0 0.0
        %1330 = vmatpush1.msra.mxu0 0.0
        %1331 = vmatprep.subr.mxu0 0.0
        %1332 = vmatpush1.msra.mxu0 0.0
        %1333 = vmatprep.subr.mxu0 0.0
        %1334 = vmatpush1.msra.mxu0 0.0
        %1335 = vmatprep.subr.mxu0 0.0
        %1336 = vmatpush1.msra.mxu0 0.0
        %1337 = vmatprep.mubr.f32.mxu0 0.0
        %1338 = vmatmul.mubr.f32.gmra.mrb[0].mxu0 %v1268
        %v1339 = vpop.f32.mrb[0].mxu0
        %v1340 = vadd.f32 0.0, %v1339
        %v1341 = vpop.f32.mrb[0].mxu0
        %1342 = vmatprep.mubr.f32.mxu0 0.0
        %1343 = vmatmul.mubr.f32.gmra.mrb[0].mxu0 %v1271
        %v1344 = vpop.f32.mrb[0].mxu0
        %v1345 = vadd.f32 0.0, %v1344
        %v1346 = vpop.f32.mrb[0].mxu0
        %1347 = vdwg.mxu0
        %s1348 = scalar_lea.vmem %s4, 64
        %v1349 = vld [vmem:[%s1348] sm:$0xff]
        %v1350 = vld [vmem:[%s1348 + $0x8] sm:$0xff]
        %v1352 = vsel %vm1014, %v1349, 0
        %v1355 = vsel %vm1014, %v1350, 0
        %1357 = vmatprep.subr.mxu0 0.0
        %1358 = vmatpush1.msra.mxu0 %v925
        %1359 = vmatprep.subr.mxu0 0.0
        %1360 = vmatpush1.msra.mxu0 %v930
        %1361 = vmatprep.subr.mxu0 0.0
        %1362 = vmatpush1.msra.mxu0 0.0
        %1363 = vmatprep.subr.mxu0 0.0
        %1364 = vmatpush1.msra.mxu0 0.0
        %1365 = vmatprep.subr.mxu0 0.0
        %1366 = vmatpush1.msra.mxu0 0.0
        %1367 = vmatprep.subr.mxu0 0.0
        %1368 = vmatpush1.msra.mxu0 0.0
        %1369 = vmatprep.subr.mxu0 0.0
        %1370 = vmatpush1.msra.mxu0 0.0
        %1371 = vmatprep.subr.mxu0 0.0
        %1372 = vmatpush1.msra.mxu0 0.0
        %1373 = vmatprep.subr.mxu0 0.0
        %1374 = vmatpush1.msra.mxu0 0.0
        %1375 = vmatprep.subr.mxu0 0.0
        %1376 = vmatpush1.msra.mxu0 0.0
        %1377 = vmatprep.subr.mxu0 0.0
        %1378 = vmatpush1.msra.mxu0 0.0
        %1379 = vmatprep.subr.mxu0 0.0
        %1380 = vmatpush1.msra.mxu0 0.0
        %1381 = vmatprep.subr.mxu0 0.0
        %1382 = vmatpush1.msra.mxu0 0.0
        %1383 = vmatprep.subr.mxu0 0.0
        %1384 = vmatpush1.msra.mxu0 0.0
        %1385 = vmatprep.subr.mxu0 0.0
        %1386 = vmatpush1.msra.mxu0 0.0
        %1387 = vmatprep.subr.mxu0 0.0
        %1388 = vmatpush1.msra.mxu0 0.0
        %1389 = vmatprep.subr.mxu0 0.0
        %1390 = vmatpush1.msra.mxu0 0.0
        %1391 = vmatprep.subr.mxu0 0.0
        %1392 = vmatpush1.msra.mxu0 0.0
        %1393 = vmatprep.subr.mxu0 0.0
        %1394 = vmatpush1.msra.mxu0 0.0
        %1395 = vmatprep.subr.mxu0 0.0
        %1396 = vmatpush1.msra.mxu0 0.0
        %1397 = vmatprep.subr.mxu0 0.0
        %1398 = vmatpush1.msra.mxu0 0.0
        %1399 = vmatprep.subr.mxu0 0.0
        %1400 = vmatpush1.msra.mxu0 0.0
        %1401 = vmatprep.subr.mxu0 0.0
        %1402 = vmatpush1.msra.mxu0 0.0
        %1403 = vmatprep.subr.mxu0 0.0
        %1404 = vmatpush1.msra.mxu0 0.0
        %1405 = vmatprep.subr.mxu0 0.0
        %1406 = vmatpush1.msra.mxu0 0.0
        %1407 = vmatprep.subr.mxu0 0.0
        %1408 = vmatpush1.msra.mxu0 0.0
        %1409 = vmatprep.subr.mxu0 0.0
        %1410 = vmatpush1.msra.mxu0 0.0
        %1411 = vmatprep.subr.mxu0 0.0
        %1412 = vmatpush1.msra.mxu0 0.0
        %1413 = vmatprep.subr.mxu0 0.0
        %1414 = vmatpush1.msra.mxu0 0.0
        %1415 = vmatprep.subr.mxu0 0.0
        %1416 = vmatpush1.msra.mxu0 0.0
        %1417 = vmatprep.subr.mxu0 0.0
        %1418 = vmatpush1.msra.mxu0 0.0
        %1419 = vmatprep.subr.mxu0 0.0
        %1420 = vmatpush1.msra.mxu0 0.0
        %1421 = vmatprep.mubr.f32.mxu0 0.0
        %1422 = vmatmul.mubr.f32.gmra.mrb[0].mxu0 %v1352
        %v1423 = vpop.f32.mrb[0].mxu0
        %v1424 = vadd.f32 0.0, %v1423
        %v1425 = vpop.f32.mrb[0].mxu0
        %1426 = vmatprep.mubr.f32.mxu0 0.0
        %1427 = vmatmul.mubr.f32.gmra.mrb[0].mxu0 %v1355
        %v1428 = vpop.f32.mrb[0].mxu0
        %v1429 = vadd.f32 0.0, %v1428
        %v1430 = vpop.f32.mrb[0].mxu0
        %1431 = vdwg.mxu0
        %s1432 = scalar_lea.vmem %s4, 80
        %v1433 = vld [vmem:[%s1432] sm:$0xff]
        %v1434 = vld [vmem:[%s1432 + $0x8] sm:$0xff]
        %v1436 = vsel %vm1014, %v1433, 0
        %v1439 = vsel %vm1014, %v1434, 0
        %1441 = vmatprep.subr.mxu0 0.0
        %1442 = vmatpush1.msra.mxu0 %v925
        %1443 = vmatprep.subr.mxu0 0.0
        %1444 = vmatpush1.msra.mxu0 %v930
        %1445 = vmatprep.subr.mxu0 0.0
        %1446 = vmatpush1.msra.mxu0 0.0
        %1447 = vmatprep.subr.mxu0 0.0
        %1448 = vmatpush1.msra.mxu0 0.0
        %1449 = vmatprep.subr.mxu0 0.0
        %1450 = vmatpush1.msra.mxu0 0.0
        %1451 = vmatprep.subr.mxu0 0.0
        %1452 = vmatpush1.msra.mxu0 0.0
        %1453 = vmatprep.subr.mxu0 0.0
        %1454 = vmatpush1.msra.mxu0 0.0
        %1455 = vmatprep.subr.mxu0 0.0
        %1456 = vmatpush1.msra.mxu0 0.0
        %1457 = vmatprep.subr.mxu0 0.0
        %1458 = vmatpush1.msra.mxu0 0.0
        %1459 = vmatprep.subr.mxu0 0.0
        %1460 = vmatpush1.msra.mxu0 0.0
        %1461 = vmatprep.subr.mxu0 0.0
        %1462 = vmatpush1.msra.mxu0 0.0
        %1463 = vmatprep.subr.mxu0 0.0
        %1464 = vmatpush1.msra.mxu0 0.0
        %1465 = vmatprep.subr.mxu0 0.0
        %1466 = vmatpush1.msra.mxu0 0.0
        %1467 = vmatprep.subr.mxu0 0.0
        %1468 = vmatpush1.msra.mxu0 0.0
        %1469 = vmatprep.subr.mxu0 0.0
        %1470 = vmatpush1.msra.mxu0 0.0
        %1471 = vmatprep.subr.mxu0 0.0
        %1472 = vmatpush1.msra.mxu0 0.0
        %1473 = vmatprep.subr.mxu0 0.0
        %1474 = vmatpush1.msra.mxu0 0.0
        %1475 = vmatprep.subr.mxu0 0.0
        %1476 = vmatpush1.msra.mxu0 0.0
        %1477 = vmatprep.subr.mxu0 0.0
        %1478 = vmatpush1.msra.mxu0 0.0
        %1479 = vmatprep.subr.mxu0 0.0
        %1480 = vmatpush1.msra.mxu0 0.0
        %1481 = vmatprep.subr.mxu0 0.0
        %1482 = vmatpush1.msra.mxu0 0.0
        %1483 = vmatprep.subr.mxu0 0.0
        %1484 = vmatpush1.msra.mxu0 0.0
        %1485 = vmatprep.subr.mxu0 0.0
        %1486 = vmatpush1.msra.mxu0 0.0
        %1487 = vmatprep.subr.mxu0 0.0
        %1488 = vmatpush1.msra.mxu0 0.0
        %1489 = vmatprep.subr.mxu0 0.0
        %1490 = vmatpush1.msra.mxu0 0.0
        %1491 = vmatprep.subr.mxu0 0.0
        %1492 = vmatpush1.msra.mxu0 0.0
        %1493 = vmatprep.subr.mxu0 0.0
        %1494 = vmatpush1.msra.mxu0 0.0
        %1495 = vmatprep.subr.mxu0 0.0
        %1496 = vmatpush1.msra.mxu0 0.0
        %1497 = vmatprep.subr.mxu0 0.0
        %1498 = vmatpush1.msra.mxu0 0.0
        %1499 = vmatprep.subr.mxu0 0.0
        %1500 = vmatpush1.msra.mxu0 0.0
        %1501 = vmatprep.subr.mxu0 0.0
        %1502 = vmatpush1.msra.mxu0 0.0
        %1503 = vmatprep.subr.mxu0 0.0
        %1504 = vmatpush1.msra.mxu0 0.0
        %1505 = vmatprep.mubr.f32.mxu0 0.0
        %1506 = vmatmul.mubr.f32.gmra.mrb[0].mxu0 %v1436
        %v1507 = vpop.f32.mrb[0].mxu0
        %v1508 = vadd.f32 0.0, %v1507
        %v1509 = vpop.f32.mrb[0].mxu0
        %1510 = vmatprep.mubr.f32.mxu0 0.0
        %1511 = vmatmul.mubr.f32.gmra.mrb[0].mxu0 %v1439
        %v1512 = vpop.f32.mrb[0].mxu0
        %v1513 = vadd.f32 0.0, %v1512
        %v1514 = vpop.f32.mrb[0].mxu0
        %1515 = vdwg.mxu0
        %s1516 = scalar_lea.vmem %s4, 96
        %v1517 = vld [vmem:[%s1516] sm:$0xff]
        %v1518 = vld [vmem:[%s1516 + $0x8] sm:$0xff]
        %v1520 = vsel %vm1014, %v1517, 0
        %v1523 = vsel %vm1014, %v1518, 0
        %1525 = vmatprep.subr.mxu0 0.0
        %1526 = vmatpush1.msra.mxu0 %v925
        %1527 = vmatprep.subr.mxu0 0.0
        %1528 = vmatpush1.msra.mxu0 %v930
        %1529 = vmatprep.subr.mxu0 0.0
        %1530 = vmatpush1.msra.mxu0 0.0
        %1531 = vmatprep.subr.mxu0 0.0
        %1532 = vmatpush1.msra.mxu0 0.0
        %1533 = vmatprep.subr.mxu0 0.0
        %1534 = vmatpush1.msra.mxu0 0.0
        %1535 = vmatprep.subr.mxu0 0.0
        %1536 = vmatpush1.msra.mxu0 0.0
        %1537 = vmatprep.subr.mxu0 0.0
        %1538 = vmatpush1.msra.mxu0 0.0
        %1539 = vmatprep.subr.mxu0 0.0
        %1540 = vmatpush1.msra.mxu0 0.0
        %1541 = vmatprep.subr.mxu0 0.0
        %1542 = vmatpush1.msra.mxu0 0.0
        %1543 = vmatprep.subr.mxu0 0.0
        %1544 = vmatpush1.msra.mxu0 0.0
        %1545 = vmatprep.subr.mxu0 0.0
        %1546 = vmatpush1.msra.mxu0 0.0
        %1547 = vmatprep.subr.mxu0 0.0
        %1548 = vmatpush1.msra.mxu0 0.0
        %1549 = vmatprep.subr.mxu0 0.0
        %1550 = vmatpush1.msra.mxu0 0.0
        %1551 = vmatprep.subr.mxu0 0.0
        %1552 = vmatpush1.msra.mxu0 0.0
        %1553 = vmatprep.subr.mxu0 0.0
        %1554 = vmatpush1.msra.mxu0 0.0
        %1555 = vmatprep.subr.mxu0 0.0
        %1556 = vmatpush1.msra.mxu0 0.0
        %1557 = vmatprep.subr.mxu0 0.0
        %1558 = vmatpush1.msra.mxu0 0.0
        %1559 = vmatprep.subr.mxu0 0.0
        %1560 = vmatpush1.msra.mxu0 0.0
        %1561 = vmatprep.subr.mxu0 0.0
        %1562 = vmatpush1.msra.mxu0 0.0
        %1563 = vmatprep.subr.mxu0 0.0
        %1564 = vmatpush1.msra.mxu0 0.0
        %1565 = vmatprep.subr.mxu0 0.0
        %1566 = vmatpush1.msra.mxu0 0.0
        %1567 = vmatprep.subr.mxu0 0.0
        %1568 = vmatpush1.msra.mxu0 0.0
        %1569 = vmatprep.subr.mxu0 0.0
        %1570 = vmatpush1.msra.mxu0 0.0
        %1571 = vmatprep.subr.mxu0 0.0
        %1572 = vmatpush1.msra.mxu0 0.0
        %1573 = vmatprep.subr.mxu0 0.0
        %1574 = vmatpush1.msra.mxu0 0.0
        %1575 = vmatprep.subr.mxu0 0.0
        %1576 = vmatpush1.msra.mxu0 0.0
        %1577 = vmatprep.subr.mxu0 0.0
        %1578 = vmatpush1.msra.mxu0 0.0
        %1579 = vmatprep.subr.mxu0 0.0
        %1580 = vmatpush1.msra.mxu0 0.0
        %1581 = vmatprep.subr.mxu0 0.0
        %1582 = vmatpush1.msra.mxu0 0.0
        %1583 = vmatprep.subr.mxu0 0.0
        %1584 = vmatpush1.msra.mxu0 0.0
        %1585 = vmatprep.subr.mxu0 0.0
        %1586 = vmatpush1.msra.mxu0 0.0
        %1587 = vmatprep.subr.mxu0 0.0
        %1588 = vmatpush1.msra.mxu0 0.0
        %1589 = vmatprep.mubr.f32.mxu0 0.0
        %1590 = vmatmul.mubr.f32.gmra.mrb[0].mxu0 %v1520
        %v1591 = vpop.f32.mrb[0].mxu0
        %v1592 = vadd.f32 0.0, %v1591
        %v1593 = vpop.f32.mrb[0].mxu0
        %1594 = vmatprep.mubr.f32.mxu0 0.0
        %1595 = vmatmul.mubr.f32.gmra.mrb[0].mxu0 %v1523
        %v1596 = vpop.f32.mrb[0].mxu0
        %v1597 = vadd.f32 0.0, %v1596
        %v1598 = vpop.f32.mrb[0].mxu0
        %1599 = vdwg.mxu0
        %1600 = vmatprep.subr.mxu0 0.0
        %1601 = vmatpush1.msra.mxu0 %v1004
        %1602 = vmatprep.subr.mxu0 0.0
        %1603 = vmatpush1.msra.mxu0 %v1009
        %1604 = vmatprep.subr.mxu0 0.0
        %1605 = vmatpush1.msra.mxu0 0.0
        %1606 = vmatprep.subr.mxu0 0.0
        %1607 = vmatpush1.msra.mxu0 0.0
        %1608 = vmatprep.subr.mxu0 0.0
        %1609 = vmatpush1.msra.mxu0 0.0
        %1610 = vmatprep.subr.mxu0 0.0
        %1611 = vmatpush1.msra.mxu0 0.0
        %1612 = vmatprep.subr.mxu0 0.0
        %1613 = vmatpush1.msra.mxu0 0.0
        %1614 = vmatprep.subr.mxu0 0.0
        %1615 = vmatpush1.msra.mxu0 0.0
        %1616 = vmatprep.subr.mxu0 0.0
        %1617 = vmatpush1.msra.mxu0 0.0
        %1618 = vmatprep.subr.mxu0 0.0
        %1619 = vmatpush1.msra.mxu0 0.0
        %1620 = vmatprep.subr.mxu0 0.0
        %1621 = vmatpush1.msra.mxu0 0.0
        %1622 = vmatprep.subr.mxu0 0.0
        %1623 = vmatpush1.msra.mxu0 0.0
        %1624 = vmatprep.subr.mxu0 0.0
        %1625 = vmatpush1.msra.mxu0 0.0
        %1626 = vmatprep.subr.mxu0 0.0
        %1627 = vmatpush1.msra.mxu0 0.0
        %1628 = vmatprep.subr.mxu0 0.0
        %1629 = vmatpush1.msra.mxu0 0.0
        %1630 = vmatprep.subr.mxu0 0.0
        %1631 = vmatpush1.msra.mxu0 0.0
        %1632 = vmatprep.subr.mxu0 0.0
        %1633 = vmatpush1.msra.mxu0 0.0
        %1634 = vmatprep.subr.mxu0 0.0
        %1635 = vmatpush1.msra.mxu0 0.0
        %1636 = vmatprep.subr.mxu0 0.0
        %1637 = vmatpush1.msra.mxu0 0.0
        %1638 = vmatprep.subr.mxu0 0.0
        %1639 = vmatpush1.msra.mxu0 0.0
        %1640 = vmatprep.subr.mxu0 0.0
        %1641 = vmatpush1.msra.mxu0 0.0
        %1642 = vmatprep.subr.mxu0 0.0
        %1643 = vmatpush1.msra.mxu0 0.0
        %1644 = vmatprep.subr.mxu0 0.0
        %1645 = vmatpush1.msra.mxu0 0.0
        %1646 = vmatprep.subr.mxu0 0.0
        %1647 = vmatpush1.msra.mxu0 0.0
        %1648 = vmatprep.subr.mxu0 0.0
        %1649 = vmatpush1.msra.mxu0 0.0
        %1650 = vmatprep.subr.mxu0 0.0
        %1651 = vmatpush1.msra.mxu0 0.0
        %1652 = vmatprep.subr.mxu0 0.0
        %1653 = vmatpush1.msra.mxu0 0.0
        %1654 = vmatprep.subr.mxu0 0.0
        %1655 = vmatpush1.msra.mxu0 0.0
        %1656 = vmatprep.subr.mxu0 0.0
        %1657 = vmatpush1.msra.mxu0 0.0
        %1658 = vmatprep.subr.mxu0 0.0
        %1659 = vmatpush1.msra.mxu0 0.0
        %1660 = vmatprep.subr.mxu0 0.0
        %1661 = vmatpush1.msra.mxu0 0.0
        %1662 = vmatprep.subr.mxu0 0.0
        %1663 = vmatpush1.msra.mxu0 0.0
        %1664 = vmatprep.mubr.f32.mxu0 0.0
        %1665 = vmatmul.mubr.f32.gmra.mrb[0].mxu0 %v1016
        %v1666 = vpop.f32.mrb[0].mxu0
        %v1667 = vadd.f32 0.0, %v1666
        %v1668 = vpop.f32.mrb[0].mxu0
        %1669 = vmatprep.mubr.f32.mxu0 0.0
        %1670 = vmatmul.mubr.f32.gmra.mrb[0].mxu0 %v1019
        %v1671 = vpop.f32.mrb[0].mxu0
        %v1672 = vadd.f32 0.0, %v1671
        %v1673 = vpop.f32.mrb[0].mxu0
        %1674 = vdwg.mxu0
        %1675 = vmatprep.subr.mxu0 0.0
        %1676 = vmatpush1.msra.mxu0 %v1004
        %1677 = vmatprep.subr.mxu0 0.0
        %1678 = vmatpush1.msra.mxu0 %v1009
        %1679 = vmatprep.subr.mxu0 0.0
        %1680 = vmatpush1.msra.mxu0 0.0
        %1681 = vmatprep.subr.mxu0 0.0
        %1682 = vmatpush1.msra.mxu0 0.0
        %1683 = vmatprep.subr.mxu0 0.0
        %1684 = vmatpush1.msra.mxu0 0.0
        %1685 = vmatprep.subr.mxu0 0.0
        %1686 = vmatpush1.msra.mxu0 0.0
        %1687 = vmatprep.subr.mxu0 0.0
        %1688 = vmatpush1.msra.mxu0 0.0
        %1689 = vmatprep.subr.mxu0 0.0
        %1690 = vmatpush1.msra.mxu0 0.0
        %1691 = vmatprep.subr.mxu0 0.0
        %1692 = vmatpush1.msra.mxu0 0.0
        %1693 = vmatprep.subr.mxu0 0.0
        %1694 = vmatpush1.msra.mxu0 0.0
        %1695 = vmatprep.subr.mxu0 0.0
        %1696 = vmatpush1.msra.mxu0 0.0
        %1697 = vmatprep.subr.mxu0 0.0
        %1698 = vmatpush1.msra.mxu0 0.0
        %1699 = vmatprep.subr.mxu0 0.0
        %1700 = vmatpush1.msra.mxu0 0.0
        %1701 = vmatprep.subr.mxu0 0.0
        %1702 = vmatpush1.msra.mxu0 0.0
        %1703 = vmatprep.subr.mxu0 0.0
        %1704 = vmatpush1.msra.mxu0 0.0
        %1705 = vmatprep.subr.mxu0 0.0
        %1706 = vmatpush1.msra.mxu0 0.0
        %1707 = vmatprep.subr.mxu0 0.0
        %1708 = vmatpush1.msra.mxu0 0.0
        %1709 = vmatprep.subr.mxu0 0.0
        %1710 = vmatpush1.msra.mxu0 0.0
        %1711 = vmatprep.subr.mxu0 0.0
        %1712 = vmatpush1.msra.mxu0 0.0
        %1713 = vmatprep.subr.mxu0 0.0
        %1714 = vmatpush1.msra.mxu0 0.0
        %1715 = vmatprep.subr.mxu0 0.0
        %1716 = vmatpush1.msra.mxu0 0.0
        %1717 = vmatprep.subr.mxu0 0.0
        %1718 = vmatpush1.msra.mxu0 0.0
        %1719 = vmatprep.subr.mxu0 0.0
        %1720 = vmatpush1.msra.mxu0 0.0
        %1721 = vmatprep.subr.mxu0 0.0
        %1722 = vmatpush1.msra.mxu0 0.0
        %1723 = vmatprep.subr.mxu0 0.0
        %1724 = vmatpush1.msra.mxu0 0.0
        %1725 = vmatprep.subr.mxu0 0.0
        %1726 = vmatpush1.msra.mxu0 0.0
        %1727 = vmatprep.subr.mxu0 0.0
        %1728 = vmatpush1.msra.mxu0 0.0
        %1729 = vmatprep.subr.mxu0 0.0
        %1730 = vmatpush1.msra.mxu0 0.0
        %1731 = vmatprep.subr.mxu0 0.0
        %1732 = vmatpush1.msra.mxu0 0.0
        %1733 = vmatprep.subr.mxu0 0.0
        %1734 = vmatpush1.msra.mxu0 0.0
        %1735 = vmatprep.subr.mxu0 0.0
        %1736 = vmatpush1.msra.mxu0 0.0
        %1737 = vmatprep.subr.mxu0 0.0
        %1738 = vmatpush1.msra.mxu0 0.0
        %1739 = vmatprep.mubr.f32.mxu0 0.0
        %1740 = vmatmul.mubr.f32.gmra.mrb[0].mxu0 %v1100
        %v1741 = vpop.f32.mrb[0].mxu0
        %v1742 = vadd.f32 0.0, %v1741
        %v1743 = vpop.f32.mrb[0].mxu0
        %1744 = vmatprep.mubr.f32.mxu0 0.0
        %1745 = vmatmul.mubr.f32.gmra.mrb[0].mxu0 %v1103
        %v1746 = vpop.f32.mrb[0].mxu0
        %v1747 = vadd.f32 0.0, %v1746
        %v1748 = vpop.f32.mrb[0].mxu0
        %1749 = vdwg.mxu0
        %1750 = vmatprep.subr.mxu0 0.0
        %1751 = vmatpush1.msra.mxu0 %v1004
        %1752 = vmatprep.subr.mxu0 0.0
        %1753 = vmatpush1.msra.mxu0 %v1009
        %1754 = vmatprep.subr.mxu0 0.0
        %1755 = vmatpush1.msra.mxu0 0.0
        %1756 = vmatprep.subr.mxu0 0.0
        %1757 = vmatpush1.msra.mxu0 0.0
        %1758 = vmatprep.subr.mxu0 0.0
        %1759 = vmatpush1.msra.mxu0 0.0
        %1760 = vmatprep.subr.mxu0 0.0
        %1761 = vmatpush1.msra.mxu0 0.0
        %1762 = vmatprep.subr.mxu0 0.0
        %1763 = vmatpush1.msra.mxu0 0.0
        %1764 = vmatprep.subr.mxu0 0.0
        %1765 = vmatpush1.msra.mxu0 0.0
        %1766 = vmatprep.subr.mxu0 0.0
        %1767 = vmatpush1.msra.mxu0 0.0
        %1768 = vmatprep.subr.mxu0 0.0
        %1769 = vmatpush1.msra.mxu0 0.0
        %1770 = vmatprep.subr.mxu0 0.0
        %1771 = vmatpush1.msra.mxu0 0.0
        %1772 = vmatprep.subr.mxu0 0.0
        %1773 = vmatpush1.msra.mxu0 0.0
        %1774 = vmatprep.subr.mxu0 0.0
        %1775 = vmatpush1.msra.mxu0 0.0
        %1776 = vmatprep.subr.mxu0 0.0
        %1777 = vmatpush1.msra.mxu0 0.0
        %1778 = vmatprep.subr.mxu0 0.0
        %1779 = vmatpush1.msra.mxu0 0.0
        %1780 = vmatprep.subr.mxu0 0.0
        %1781 = vmatpush1.msra.mxu0 0.0
        %1782 = vmatprep.subr.mxu0 0.0
        %1783 = vmatpush1.msra.mxu0 0.0
        %1784 = vmatprep.subr.mxu0 0.0
        %1785 = vmatpush1.msra.mxu0 0.0
        %1786 = vmatprep.subr.mxu0 0.0
        %1787 = vmatpush1.msra.mxu0 0.0
        %1788 = vmatprep.subr.mxu0 0.0
        %1789 = vmatpush1.msra.mxu0 0.0
        %1790 = vmatprep.subr.mxu0 0.0
        %1791 = vmatpush1.msra.mxu0 0.0
        %1792 = vmatprep.subr.mxu0 0.0
        %1793 = vmatpush1.msra.mxu0 0.0
        %1794 = vmatprep.subr.mxu0 0.0
        %1795 = vmatpush1.msra.mxu0 0.0
        %1796 = vmatprep.subr.mxu0 0.0
        %1797 = vmatpush1.msra.mxu0 0.0
        %1798 = vmatprep.subr.mxu0 0.0
        %1799 = vmatpush1.msra.mxu0 0.0
        %1800 = vmatprep.subr.mxu0 0.0
        %1801 = vmatpush1.msra.mxu0 0.0
        %1802 = vmatprep.subr.mxu0 0.0
        %1803 = vmatpush1.msra.mxu0 0.0
        %1804 = vmatprep.subr.mxu0 0.0
        %1805 = vmatpush1.msra.mxu0 0.0
        %1806 = vmatprep.subr.mxu0 0.0
        %1807 = vmatpush1.msra.mxu0 0.0
        %1808 = vmatprep.subr.mxu0 0.0
        %1809 = vmatpush1.msra.mxu0 0.0
        %1810 = vmatprep.subr.mxu0 0.0
        %1811 = vmatpush1.msra.mxu0 0.0
        %1812 = vmatprep.subr.mxu0 0.0
        %1813 = vmatpush1.msra.mxu0 0.0
        %1814 = vmatprep.mubr.f32.mxu0 0.0
        %1815 = vmatmul.mubr.f32.gmra.mrb[0].mxu0 %v1184
        %v1816 = vpop.f32.mrb[0].mxu0
        %v1817 = vadd.f32 0.0, %v1816
        %v1818 = vpop.f32.mrb[0].mxu0
        %1819 = vmatprep.mubr.f32.mxu0 0.0
        %1820 = vmatmul.mubr.f32.gmra.mrb[0].mxu0 %v1187
        %v1821 = vpop.f32.mrb[0].mxu0
        %v1822 = vadd.f32 0.0, %v1821
        %v1823 = vpop.f32.mrb[0].mxu0
        %1824 = vdwg.mxu0
        %1825 = vmatprep.subr.mxu0 0.0
        %1826 = vmatpush1.msra.mxu0 %v1004
        %1827 = vmatprep.subr.mxu0 0.0
        %1828 = vmatpush1.msra.mxu0 %v1009
        %1829 = vmatprep.subr.mxu0 0.0
        %1830 = vmatpush1.msra.mxu0 0.0
        %1831 = vmatprep.subr.mxu0 0.0
        %1832 = vmatpush1.msra.mxu0 0.0
        %1833 = vmatprep.subr.mxu0 0.0
        %1834 = vmatpush1.msra.mxu0 0.0
        %1835 = vmatprep.subr.mxu0 0.0
        %1836 = vmatpush1.msra.mxu0 0.0
        %1837 = vmatprep.subr.mxu0 0.0
        %1838 = vmatpush1.msra.mxu0 0.0
        %1839 = vmatprep.subr.mxu0 0.0
        %1840 = vmatpush1.msra.mxu0 0.0
        %1841 = vmatprep.subr.mxu0 0.0
        %1842 = vmatpush1.msra.mxu0 0.0
        %1843 = vmatprep.subr.mxu0 0.0
        %1844 = vmatpush1.msra.mxu0 0.0
        %1845 = vmatprep.subr.mxu0 0.0
        %1846 = vmatpush1.msra.mxu0 0.0
        %1847 = vmatprep.subr.mxu0 0.0
        %1848 = vmatpush1.msra.mxu0 0.0
        %1849 = vmatprep.subr.mxu0 0.0
        %1850 = vmatpush1.msra.mxu0 0.0
        %1851 = vmatprep.subr.mxu0 0.0
        %1852 = vmatpush1.msra.mxu0 0.0
        %1853 = vmatprep.subr.mxu0 0.0
        %1854 = vmatpush1.msra.mxu0 0.0
        %1855 = vmatprep.subr.mxu0 0.0
        %1856 = vmatpush1.msra.mxu0 0.0
        %1857 = vmatprep.subr.mxu0 0.0
        %1858 = vmatpush1.msra.mxu0 0.0
        %1859 = vmatprep.subr.mxu0 0.0
        %1860 = vmatpush1.msra.mxu0 0.0
        %1861 = vmatprep.subr.mxu0 0.0
        %1862 = vmatpush1.msra.mxu0 0.0
        %1863 = vmatprep.subr.mxu0 0.0
        %1864 = vmatpush1.msra.mxu0 0.0
        %1865 = vmatprep.subr.mxu0 0.0
        %1866 = vmatpush1.msra.mxu0 0.0
        %1867 = vmatprep.subr.mxu0 0.0
        %1868 = vmatpush1.msra.mxu0 0.0
        %1869 = vmatprep.subr.mxu0 0.0
        %1870 = vmatpush1.msra.mxu0 0.0
        %1871 = vmatprep.subr.mxu0 0.0
        %1872 = vmatpush1.msra.mxu0 0.0
        %1873 = vmatprep.subr.mxu0 0.0
        %1874 = vmatpush1.msra.mxu0 0.0
        %1875 = vmatprep.subr.mxu0 0.0
        %1876 = vmatpush1.msra.mxu0 0.0
        %1877 = vmatprep.subr.mxu0 0.0
        %1878 = vmatpush1.msra.mxu0 0.0
        %1879 = vmatprep.subr.mxu0 0.0
        %1880 = vmatpush1.msra.mxu0 0.0
        %1881 = vmatprep.subr.mxu0 0.0
        %1882 = vmatpush1.msra.mxu0 0.0
        %1883 = vmatprep.subr.mxu0 0.0
        %1884 = vmatpush1.msra.mxu0 0.0
        %1885 = vmatprep.subr.mxu0 0.0
        %1886 = vmatpush1.msra.mxu0 0.0
        %1887 = vmatprep.subr.mxu0 0.0
        %1888 = vmatpush1.msra.mxu0 0.0
        %1889 = vmatprep.mubr.f32.mxu0 0.0
        %1890 = vmatmul.mubr.f32.gmra.mrb[0].mxu0 %v1268
        %v1891 = vpop.f32.mrb[0].mxu0
        %v1892 = vadd.f32 0.0, %v1891
        %v1893 = vpop.f32.mrb[0].mxu0
        %1894 = vmatprep.mubr.f32.mxu0 0.0
        %1895 = vmatmul.mubr.f32.gmra.mrb[0].mxu0 %v1271
        %v1896 = vpop.f32.mrb[0].mxu0
        %v1897 = vadd.f32 0.0, %v1896
        %v1898 = vpop.f32.mrb[0].mxu0
        %1899 = vdwg.mxu0
        %1900 = vmatprep.subr.mxu0 0.0
        %1901 = vmatpush1.msra.mxu0 %v1004
        %1902 = vmatprep.subr.mxu0 0.0
        %1903 = vmatpush1.msra.mxu0 %v1009
        %1904 = vmatprep.subr.mxu0 0.0
        %1905 = vmatpush1.msra.mxu0 0.0
        %1906 = vmatprep.subr.mxu0 0.0
        %1907 = vmatpush1.msra.mxu0 0.0
        %1908 = vmatprep.subr.mxu0 0.0
        %1909 = vmatpush1.msra.mxu0 0.0
        %1910 = vmatprep.subr.mxu0 0.0
        %1911 = vmatpush1.msra.mxu0 0.0
        %1912 = vmatprep.subr.mxu0 0.0
        %1913 = vmatpush1.msra.mxu0 0.0
        %1914 = vmatprep.subr.mxu0 0.0
        %1915 = vmatpush1.msra.mxu0 0.0
        %1916 = vmatprep.subr.mxu0 0.0
        %1917 = vmatpush1.msra.mxu0 0.0
        %1918 = vmatprep.subr.mxu0 0.0
        %1919 = vmatpush1.msra.mxu0 0.0
        %1920 = vmatprep.subr.mxu0 0.0
        %1921 = vmatpush1.msra.mxu0 0.0
        %1922 = vmatprep.subr.mxu0 0.0
        %1923 = vmatpush1.msra.mxu0 0.0
        %1924 = vmatprep.subr.mxu0 0.0
        %1925 = vmatpush1.msra.mxu0 0.0
        %1926 = vmatprep.subr.mxu0 0.0
        %1927 = vmatpush1.msra.mxu0 0.0
        %1928 = vmatprep.subr.mxu0 0.0
        %1929 = vmatpush1.msra.mxu0 0.0
        %1930 = vmatprep.subr.mxu0 0.0
        %1931 = vmatpush1.msra.mxu0 0.0
        %1932 = vmatprep.subr.mxu0 0.0
        %1933 = vmatpush1.msra.mxu0 0.0
        %1934 = vmatprep.subr.mxu0 0.0
        %1935 = vmatpush1.msra.mxu0 0.0
        %1936 = vmatprep.subr.mxu0 0.0
        %1937 = vmatpush1.msra.mxu0 0.0
        %1938 = vmatprep.subr.mxu0 0.0
        %1939 = vmatpush1.msra.mxu0 0.0
        %1940 = vmatprep.subr.mxu0 0.0
        %1941 = vmatpush1.msra.mxu0 0.0
        %1942 = vmatprep.subr.mxu0 0.0
        %1943 = vmatpush1.msra.mxu0 0.0
        %1944 = vmatprep.subr.mxu0 0.0
        %1945 = vmatpush1.msra.mxu0 0.0
        %1946 = vmatprep.subr.mxu0 0.0
        %1947 = vmatpush1.msra.mxu0 0.0
        %1948 = vmatprep.subr.mxu0 0.0
        %1949 = vmatpush1.msra.mxu0 0.0
        %1950 = vmatprep.subr.mxu0 0.0
        %1951 = vmatpush1.msra.mxu0 0.0
        %1952 = vmatprep.subr.mxu0 0.0
        %1953 = vmatpush1.msra.mxu0 0.0
        %1954 = vmatprep.subr.mxu0 0.0
        %1955 = vmatpush1.msra.mxu0 0.0
        %1956 = vmatprep.subr.mxu0 0.0
        %1957 = vmatpush1.msra.mxu0 0.0
        %1958 = vmatprep.subr.mxu0 0.0
        %1959 = vmatpush1.msra.mxu0 0.0
        %1960 = vmatprep.subr.mxu0 0.0
        %1961 = vmatpush1.msra.mxu0 0.0
        %1962 = vmatprep.subr.mxu0 0.0
        %1963 = vmatpush1.msra.mxu0 0.0
        %1964 = vmatprep.mubr.f32.mxu0 0.0
        %1965 = vmatmul.mubr.f32.gmra.mrb[0].mxu0 %v1352
        %v1966 = vpop.f32.mrb[0].mxu0
        %v1967 = vadd.f32 0.0, %v1966
        %v1968 = vpop.f32.mrb[0].mxu0
        %1969 = vmatprep.mubr.f32.mxu0 0.0
        %1970 = vmatmul.mubr.f32.gmra.mrb[0].mxu0 %v1355
        %v1971 = vpop.f32.mrb[0].mxu0
        %v1972 = vadd.f32 0.0, %v1971
        %v1973 = vpop.f32.mrb[0].mxu0
        %1974 = vdwg.mxu0
        %1975 = vmatprep.subr.mxu0 0.0
        %1976 = vmatpush1.msra.mxu0 %v1004
        %1977 = vmatprep.subr.mxu0 0.0
        %1978 = vmatpush1.msra.mxu0 %v1009
        %1979 = vmatprep.subr.mxu0 0.0
        %1980 = vmatpush1.msra.mxu0 0.0
        %1981 = vmatprep.subr.mxu0 0.0
        %1982 = vmatpush1.msra.mxu0 0.0
        %1983 = vmatprep.subr.mxu0 0.0
        %1984 = vmatpush1.msra.mxu0 0.0
        %1985 = vmatprep.subr.mxu0 0.0
        %1986 = vmatpush1.msra.mxu0 0.0
        %1987 = vmatprep.subr.mxu0 0.0
        %1988 = vmatpush1.msra.mxu0 0.0
        %1989 = vmatprep.subr.mxu0 0.0
        %1990 = vmatpush1.msra.mxu0 0.0
        %1991 = vmatprep.subr.mxu0 0.0
        %1992 = vmatpush1.msra.mxu0 0.0
        %1993 = vmatprep.subr.mxu0 0.0
        %1994 = vmatpush1.msra.mxu0 0.0
        %1995 = vmatprep.subr.mxu0 0.0
        %1996 = vmatpush1.msra.mxu0 0.0
        %1997 = vmatprep.subr.mxu0 0.0
        %1998 = vmatpush1.msra.mxu0 0.0
        %1999 = vmatprep.subr.mxu0 0.0
        %2000 = vmatpush1.msra.mxu0 0.0
        %2001 = vmatprep.subr.mxu0 0.0
        %2002 = vmatpush1.msra.mxu0 0.0
        %2003 = vmatprep.subr.mxu0 0.0
        %2004 = vmatpush1.msra.mxu0 0.0
        %2005 = vmatprep.subr.mxu0 0.0
        %2006 = vmatpush1.msra.mxu0 0.0
        %2007 = vmatprep.subr.mxu0 0.0
        %2008 = vmatpush1.msra.mxu0 0.0
        %2009 = vmatprep.subr.mxu0 0.0
        %2010 = vmatpush1.msra.mxu0 0.0
        %2011 = vmatprep.subr.mxu0 0.0
        %2012 = vmatpush1.msra.mxu0 0.0
        %2013 = vmatprep.subr.mxu0 0.0
        %2014 = vmatpush1.msra.mxu0 0.0
        %2015 = vmatprep.subr.mxu0 0.0
        %2016 = vmatpush1.msra.mxu0 0.0
        %2017 = vmatprep.subr.mxu0 0.0
        %2018 = vmatpush1.msra.mxu0 0.0
        %2019 = vmatprep.subr.mxu0 0.0
        %2020 = vmatpush1.msra.mxu0 0.0
        %2021 = vmatprep.subr.mxu0 0.0
        %2022 = vmatpush1.msra.mxu0 0.0
        %2023 = vmatprep.subr.mxu0 0.0
        %2024 = vmatpush1.msra.mxu0 0.0
        %2025 = vmatprep.subr.mxu0 0.0
        %2026 = vmatpush1.msra.mxu0 0.0
        %2027 = vmatprep.subr.mxu0 0.0
        %2028 = vmatpush1.msra.mxu0 0.0
        %2029 = vmatprep.subr.mxu0 0.0
        %2030 = vmatpush1.msra.mxu0 0.0
        %2031 = vmatprep.subr.mxu0 0.0
        %2032 = vmatpush1.msra.mxu0 0.0
        %2033 = vmatprep.subr.mxu0 0.0
        %2034 = vmatpush1.msra.mxu0 0.0
        %2035 = vmatprep.subr.mxu0 0.0
        %2036 = vmatpush1.msra.mxu0 0.0
        %2037 = vmatprep.subr.mxu0 0.0
        %2038 = vmatpush1.msra.mxu0 0.0
        %2039 = vmatprep.mubr.f32.mxu0 0.0
        %2040 = vmatmul.mubr.f32.gmra.mrb[0].mxu0 %v1436
        %v2041 = vpop.f32.mrb[0].mxu0
        %v2042 = vadd.f32 0.0, %v2041
        %v2043 = vpop.f32.mrb[0].mxu0
        %2044 = vmatprep.mubr.f32.mxu0 0.0
        %2045 = vmatmul.mubr.f32.gmra.mrb[0].mxu0 %v1439
        %v2046 = vpop.f32.mrb[0].mxu0
        %v2047 = vadd.f32 0.0, %v2046
        %v2048 = vpop.f32.mrb[0].mxu0
        %2049 = vdwg.mxu0
        %2050 = vmatprep.subr.mxu0 0.0
        %2051 = vmatpush1.msra.mxu0 %v1004
        %2052 = vmatprep.subr.mxu0 0.0
        %2053 = vmatpush1.msra.mxu0 %v1009
        %2054 = vmatprep.subr.mxu0 0.0
        %2055 = vmatpush1.msra.mxu0 0.0
        %2056 = vmatprep.subr.mxu0 0.0
        %2057 = vmatpush1.msra.mxu0 0.0
        %2058 = vmatprep.subr.mxu0 0.0
        %2059 = vmatpush1.msra.mxu0 0.0
        %2060 = vmatprep.subr.mxu0 0.0
        %2061 = vmatpush1.msra.mxu0 0.0
        %2062 = vmatprep.subr.mxu0 0.0
        %2063 = vmatpush1.msra.mxu0 0.0
        %2064 = vmatprep.subr.mxu0 0.0
        %2065 = vmatpush1.msra.mxu0 0.0
        %2066 = vmatprep.subr.mxu0 0.0
        %2067 = vmatpush1.msra.mxu0 0.0
        %2068 = vmatprep.subr.mxu0 0.0
        %2069 = vmatpush1.msra.mxu0 0.0
        %2070 = vmatprep.subr.mxu0 0.0
        %2071 = vmatpush1.msra.mxu0 0.0
        %2072 = vmatprep.subr.mxu0 0.0
        %2073 = vmatpush1.msra.mxu0 0.0
        %2074 = vmatprep.subr.mxu0 0.0
        %2075 = vmatpush1.msra.mxu0 0.0
        %2076 = vmatprep.subr.mxu0 0.0
        %2077 = vmatpush1.msra.mxu0 0.0
        %2078 = vmatprep.subr.mxu0 0.0
        %2079 = vmatpush1.msra.mxu0 0.0
        %2080 = vmatprep.subr.mxu0 0.0
        %2081 = vmatpush1.msra.mxu0 0.0
        %2082 = vmatprep.subr.mxu0 0.0
        %2083 = vmatpush1.msra.mxu0 0.0
        %2084 = vmatprep.subr.mxu0 0.0
        %2085 = vmatpush1.msra.mxu0 0.0
        %2086 = vmatprep.subr.mxu0 0.0
        %2087 = vmatpush1.msra.mxu0 0.0
        %2088 = vmatprep.subr.mxu0 0.0
        %2089 = vmatpush1.msra.mxu0 0.0
        %2090 = vmatprep.subr.mxu0 0.0
        %2091 = vmatpush1.msra.mxu0 0.0
        %2092 = vmatprep.subr.mxu0 0.0
        %2093 = vmatpush1.msra.mxu0 0.0
        %2094 = vmatprep.subr.mxu0 0.0
        %2095 = vmatpush1.msra.mxu0 0.0
        %2096 = vmatprep.subr.mxu0 0.0
        %2097 = vmatpush1.msra.mxu0 0.0
        %2098 = vmatprep.subr.mxu0 0.0
        %2099 = vmatpush1.msra.mxu0 0.0
        %2100 = vmatprep.subr.mxu0 0.0
        %2101 = vmatpush1.msra.mxu0 0.0
        %2102 = vmatprep.subr.mxu0 0.0
        %2103 = vmatpush1.msra.mxu0 0.0
        %2104 = vmatprep.subr.mxu0 0.0
        %2105 = vmatpush1.msra.mxu0 0.0
        %2106 = vmatprep.subr.mxu0 0.0
        %2107 = vmatpush1.msra.mxu0 0.0
        %2108 = vmatprep.subr.mxu0 0.0
        %2109 = vmatpush1.msra.mxu0 0.0
        %2110 = vmatprep.subr.mxu0 0.0
        %2111 = vmatpush1.msra.mxu0 0.0
        %2112 = vmatprep.subr.mxu0 0.0
        %2113 = vmatpush1.msra.mxu0 0.0
        %2114 = vmatprep.mubr.f32.mxu0 0.0
        %2115 = vmatmul.mubr.f32.gmra.mrb[0].mxu0 %v1520
        %v2116 = vpop.f32.mrb[0].mxu0
        %v2117 = vadd.f32 0.0, %v2116
        %v2118 = vpop.f32.mrb[0].mxu0
        %2119 = vmatprep.mubr.f32.mxu0 0.0
        %2120 = vmatmul.mubr.f32.gmra.mrb[0].mxu0 %v1523
        %v2121 = vpop.f32.mrb[0].mxu0
        %v2122 = vadd.f32 0.0, %v2121
        %v2123 = vpop.f32.mrb[0].mxu0
        %2124 = vdwg.mxu0
        %s2125 = sld [smem:[#allocation2]]
        %v2126 = vstv %s2125
        %v2127 = vmul.f32 %v2126, %v1088
        %v2128 = vmul.f32 %v2126, %v1093
        %v2129 = vadd.f32 %v2127, 0.0
        %v2130 = vadd.f32 %v2128, 0.0
        %s2131 = sld [smem:[#allocation2 + $0x7]]
        %v2132 = vstv %s2131
        %v2133 = vmul.f32 %v2132, %v1172
        %v2134 = vmul.f32 %v2132, %v1177
        %v2135 = vadd.f32 %v2129, %v2133
        %v2136 = vadd.f32 %v2130, %v2134
        %s2137 = sld [smem:[#allocation2 + $0xe]]
        %v2138 = vstv %s2137
        %v2139 = vmul.f32 %v2138, %v1256
        %v2140 = vmul.f32 %v2138, %v1261
        %v2141 = vadd.f32 %v2135, %v2139
        %v2142 = vadd.f32 %v2136, %v2140
        %s2143 = sld [smem:[#allocation2 + $0x15]]
        %v2144 = vstv %s2143
        %v2145 = vmul.f32 %v2144, %v1340
        %v2146 = vmul.f32 %v2144, %v1345
        %v2147 = vadd.f32 %v2141, %v2145
        %v2148 = vadd.f32 %v2142, %v2146
        %s2149 = sld [smem:[#allocation2 + $0x1c]]
        %v2150 = vstv %s2149
        %v2151 = vmul.f32 %v2150, %v1424
        %v2152 = vmul.f32 %v2150, %v1429
        %v2153 = vadd.f32 %v2147, %v2151
        %v2154 = vadd.f32 %v2148, %v2152
        %s2155 = sld [smem:[#allocation2 + $0x23]]
        %v2156 = vstv %s2155
        %v2157 = vmul.f32 %v2156, %v1508
        %v2158 = vmul.f32 %v2156, %v1513
        %v2159 = vadd.f32 %v2153, %v2157
        %v2160 = vadd.f32 %v2154, %v2158
        %s2161 = sld [smem:[#allocation2 + $0x2a]]
        %v2162 = vstv %s2161
        %v2163 = vmul.f32 %v2162, %v1592
        %v2164 = vmul.f32 %v2162, %v1597
        %v2165 = vadd.f32 %v2159, %v2163
        %v2166 = vadd.f32 %v2160, %v2164
        %s2167 = sld [smem:[#allocation2 + $0x31]]
        %v2168 = vstv %s2167
        %v2169 = vmul.f32 %v2168, %v1667
        %v2170 = vmul.f32 %v2168, %v1672
        %v2171 = vadd.f32 %v2165, %v2169
        %v2172 = vadd.f32 %v2166, %v2170
        %s2173 = sld [smem:[#allocation2 + $0x38]]
        %v2174 = vstv %s2173
        %v2175 = vmul.f32 %v2174, %v1742
        %v2176 = vmul.f32 %v2174, %v1747
        %v2177 = vadd.f32 %v2171, %v2175
        %v2178 = vadd.f32 %v2172, %v2176
        %s2179 = sld [smem:[#allocation2 + $0x3f]]
        %v2180 = vstv %s2179
        %v2181 = vmul.f32 %v2180, %v1817
        %v2182 = vmul.f32 %v2180, %v1822
        %v2183 = vadd.f32 %v2177, %v2181
        %v2184 = vadd.f32 %v2178, %v2182
        %s2185 = sld [smem:[#allocation2 + $0x46]]
        %v2186 = vstv %s2185
        %v2187 = vmul.f32 %v2186, %v1892
        %v2188 = vmul.f32 %v2186, %v1897
        %v2189 = vadd.f32 %v2183, %v2187
        %v2190 = vadd.f32 %v2184, %v2188
        %s2191 = sld [smem:[#allocation2 + $0x4d]]
        %v2192 = vstv %s2191
        %v2193 = vmul.f32 %v2192, %v1967
        %v2194 = vmul.f32 %v2192, %v1972
        %v2195 = vadd.f32 %v2189, %v2193
        %v2196 = vadd.f32 %v2190, %v2194
        %s2197 = sld [smem:[#allocation2 + $0x54]]
        %v2198 = vstv %s2197
        %v2199 = vmul.f32 %v2198, %v2042
        %v2200 = vmul.f32 %v2198, %v2047
        %v2201 = vadd.f32 %v2195, %v2199
        %v2202 = vadd.f32 %v2196, %v2200
        %s2203 = sld [smem:[#allocation2 + $0x5b]]
        %v2204 = vstv %s2203
        %v2205 = vmul.f32 %v2204, %v2117
        %v2206 = vmul.f32 %v2204, %v2122
        %v2207 = vadd.f32 %v2201, %v2205
        %v2208 = vadd.f32 %v2202, %v2206
        %v2209 = vld [vmem:[%s5] sm:$0xff]
        %v2210 = vld [vmem:[%s5 + $0x8] sm:$0xff]
        %s2211 = sld [smem:[#allocation2 + $0x1]]
        %v2212 = vstv %s2211
        %v2213 = vmul.f32 %v2212, %v1088
        %v2214 = vmul.f32 %v2212, %v1093
        %v2215 = vadd.f32 %v2213, 0.0
        %v2216 = vadd.f32 %v2214, 0.0
        %s2217 = sld [smem:[#allocation2 + $0x8]]
        %v2218 = vstv %s2217
        %v2219 = vmul.f32 %v2218, %v1172
        %v2220 = vmul.f32 %v2218, %v1177
        %v2221 = vadd.f32 %v2215, %v2219
        %v2222 = vadd.f32 %v2216, %v2220
        %s2223 = sld [smem:[#allocation2 + $0xf]]
        %v2224 = vstv %s2223
        %v2225 = vmul.f32 %v2224, %v1256
        %v2226 = vmul.f32 %v2224, %v1261
        %v2227 = vadd.f32 %v2221, %v2225
        %v2228 = vadd.f32 %v2222, %v2226
        %s2229 = sld [smem:[#allocation2 + $0x16]]
        %v2230 = vstv %s2229
        %v2231 = vmul.f32 %v2230, %v1340
        %v2232 = vmul.f32 %v2230, %v1345
        %v2233 = vadd.f32 %v2227, %v2231
        %v2234 = vadd.f32 %v2228, %v2232
        %s2235 = sld [smem:[#allocation2 + $0x1d]]
        %v2236 = vstv %s2235
        %v2237 = vmul.f32 %v2236, %v1424
        %v2238 = vmul.f32 %v2236, %v1429
        %v2239 = vadd.f32 %v2233, %v2237
        %v2240 = vadd.f32 %v2234, %v2238
        %s2241 = sld [smem:[#allocation2 + $0x24]]
        %v2242 = vstv %s2241
        %v2243 = vmul.f32 %v2242, %v1508
        %v2244 = vmul.f32 %v2242, %v1513
        %v2245 = vadd.f32 %v2239, %v2243
        %v2246 = vadd.f32 %v2240, %v2244
        %s2247 = sld [smem:[#allocation2 + $0x2b]]
        %v2248 = vstv %s2247
        %v2249 = vmul.f32 %v2248, %v1592
        %v2250 = vmul.f32 %v2248, %v1597
        %v2251 = vadd.f32 %v2245, %v2249
        %v2252 = vadd.f32 %v2246, %v2250
        %s2253 = sld [smem:[#allocation2 + $0x32]]
        %v2254 = vstv %s2253
        %v2255 = vmul.f32 %v2254, %v1667
        %v2256 = vmul.f32 %v2254, %v1672
        %v2257 = vadd.f32 %v2251, %v2255
        %v2258 = vadd.f32 %v2252, %v2256
        %s2259 = sld [smem:[#allocation2 + $0x39]]
        %v2260 = vstv %s2259
        %v2261 = vmul.f32 %v2260, %v1742
        %v2262 = vmul.f32 %v2260, %v1747
        %v2263 = vadd.f32 %v2257, %v2261
        %v2264 = vadd.f32 %v2258, %v2262
        %s2265 = sld [smem:[#allocation2 + $0x40]]
        %v2266 = vstv %s2265
        %v2267 = vmul.f32 %v2266, %v1817
        %v2268 = vmul.f32 %v2266, %v1822
        %v2269 = vadd.f32 %v2263, %v2267
        %v2270 = vadd.f32 %v2264, %v2268
        %s2271 = sld [smem:[#allocation2 + $0x47]]
        %v2272 = vstv %s2271
        %v2273 = vmul.f32 %v2272, %v1892
        %v2274 = vmul.f32 %v2272, %v1897
        %v2275 = vadd.f32 %v2269, %v2273
        %v2276 = vadd.f32 %v2270, %v2274
        %s2277 = sld [smem:[#allocation2 + $0x4e]]
        %v2278 = vstv %s2277
        %v2279 = vmul.f32 %v2278, %v1967
        %v2280 = vmul.f32 %v2278, %v1972
        %v2281 = vadd.f32 %v2275, %v2279
        %v2282 = vadd.f32 %v2276, %v2280
        %s2283 = sld [smem:[#allocation2 + $0x55]]
        %v2284 = vstv %s2283
        %v2285 = vmul.f32 %v2284, %v2042
        %v2286 = vmul.f32 %v2284, %v2047
        %v2287 = vadd.f32 %v2281, %v2285
        %v2288 = vadd.f32 %v2282, %v2286
        %s2289 = sld [smem:[#allocation2 + $0x5c]]
        %v2290 = vstv %s2289
        %v2291 = vmul.f32 %v2290, %v2117
        %v2292 = vmul.f32 %v2290, %v2122
        %v2293 = vadd.f32 %v2287, %v2291
        %v2294 = vadd.f32 %v2288, %v2292
        %s2295 = scalar_lea.vmem %s5, 16
        %v2296 = vld [vmem:[%s2295] sm:$0xff]
        %v2297 = vld [vmem:[%s2295 + $0x8] sm:$0xff]
        %v2299 = vsel %vm1014, %v2293, 0
        %v2302 = vsel %vm1014, %v2294, 0
        %2304 = vmatprep.subr.mxu0 0.0
        %2305 = vmatpush1.msra.mxu0 %v2296
        %2306 = vmatprep.subr.mxu0 0.0
        %2307 = vmatpush1.msra.mxu0 %v2297
        %2308 = vmatprep.subr.mxu0 0.0
        %2309 = vmatpush1.msra.mxu0 0.0
        %2310 = vmatprep.subr.mxu0 0.0
        %2311 = vmatpush1.msra.mxu0 0.0
        %2312 = vmatprep.subr.mxu0 0.0
        %2313 = vmatpush1.msra.mxu0 0.0
        %2314 = vmatprep.subr.mxu0 0.0
        %2315 = vmatpush1.msra.mxu0 0.0
        %2316 = vmatprep.subr.mxu0 0.0
        %2317 = vmatpush1.msra.mxu0 0.0
        %2318 = vmatprep.subr.mxu0 0.0
        %2319 = vmatpush1.msra.mxu0 0.0
        %2320 = vmatprep.subr.mxu0 0.0
        %2321 = vmatpush1.msra.mxu0 0.0
        %2322 = vmatprep.subr.mxu0 0.0
        %2323 = vmatpush1.msra.mxu0 0.0
        %2324 = vmatprep.subr.mxu0 0.0
        %2325 = vmatpush1.msra.mxu0 0.0
        %2326 = vmatprep.subr.mxu0 0.0
        %2327 = vmatpush1.msra.mxu0 0.0
        %2328 = vmatprep.subr.mxu0 0.0
        %2329 = vmatpush1.msra.mxu0 0.0
        %2330 = vmatprep.subr.mxu0 0.0
        %2331 = vmatpush1.msra.mxu0 0.0
        %2332 = vmatprep.subr.mxu0 0.0
        %2333 = vmatpush1.msra.mxu0 0.0
        %2334 = vmatprep.subr.mxu0 0.0
        %2335 = vmatpush1.msra.mxu0 0.0
        %2336 = vmatprep.subr.mxu0 0.0
        %2337 = vmatpush1.msra.mxu0 0.0
        %2338 = vmatprep.subr.mxu0 0.0
        %2339 = vmatpush1.msra.mxu0 0.0
        %2340 = vmatprep.subr.mxu0 0.0
        %2341 = vmatpush1.msra.mxu0 0.0
        %2342 = vmatprep.subr.mxu0 0.0
        %2343 = vmatpush1.msra.mxu0 0.0
        %2344 = vmatprep.subr.mxu0 0.0
        %2345 = vmatpush1.msra.mxu0 0.0
        %2346 = vmatprep.subr.mxu0 0.0
        %2347 = vmatpush1.msra.mxu0 0.0
        %2348 = vmatprep.subr.mxu0 0.0
        %2349 = vmatpush1.msra.mxu0 0.0
        %2350 = vmatprep.subr.mxu0 0.0
        %2351 = vmatpush1.msra.mxu0 0.0
        %2352 = vmatprep.subr.mxu0 0.0
        %2353 = vmatpush1.msra.mxu0 0.0
        %2354 = vmatprep.subr.mxu0 0.0
        %2355 = vmatpush1.msra.mxu0 0.0
        %2356 = vmatprep.subr.mxu0 0.0
        %2357 = vmatpush1.msra.mxu0 0.0
        %2358 = vmatprep.subr.mxu0 0.0
        %2359 = vmatpush1.msra.mxu0 0.0
        %2360 = vmatprep.subr.mxu0 0.0
        %2361 = vmatpush1.msra.mxu0 0.0
        %2362 = vmatprep.subr.mxu0 0.0
        %2363 = vmatpush1.msra.mxu0 0.0
        %2364 = vmatprep.subr.mxu0 0.0
        %2365 = vmatpush1.msra.mxu0 0.0
        %2366 = vmatprep.subr.mxu0 0.0
        %2367 = vmatpush1.msra.mxu0 0.0
        %2368 = vmatprep.mubr.f32.mxu0 0.0
        %2369 = vmatmul.mubr.f32.gmra.mrb[0].mxu0 %v2299
        %v2370 = vpop.f32.mrb[0].mxu0
        %v2371 = vadd.f32 0.0, %v2370
        %v2372 = vpop.f32.mrb[0].mxu0
        %2373 = vmatprep.mubr.f32.mxu0 0.0
        %2374 = vmatmul.mubr.f32.gmra.mrb[0].mxu0 %v2302
        %v2375 = vpop.f32.mrb[0].mxu0
        %v2376 = vadd.f32 0.0, %v2375
        %v2377 = vpop.f32.mrb[0].mxu0
        %2378 = vdwg.mxu0
        %v2380 = vsel %vm1014, %v2207, 0
        %v2383 = vsel %vm1014, %v2208, 0
        %2385 = vmatprep.subr.mxu0 0.0
        %2386 = vmatpush1.msra.mxu0 %v2209
        %2387 = vmatprep.subr.mxu0 0.0
        %2388 = vmatpush1.msra.mxu0 %v2210
        %2389 = vmatprep.subr.mxu0 0.0
        %2390 = vmatpush1.msra.mxu0 0.0
        %2391 = vmatprep.subr.mxu0 0.0
        %2392 = vmatpush1.msra.mxu0 0.0
        %2393 = vmatprep.subr.mxu0 0.0
        %2394 = vmatpush1.msra.mxu0 0.0
        %2395 = vmatprep.subr.mxu0 0.0
        %2396 = vmatpush1.msra.mxu0 0.0
        %2397 = vmatprep.subr.mxu0 0.0
        %2398 = vmatpush1.msra.mxu0 0.0
        %2399 = vmatprep.subr.mxu0 0.0
        %2400 = vmatpush1.msra.mxu0 0.0
        %2401 = vmatprep.subr.mxu0 0.0
        %2402 = vmatpush1.msra.mxu0 0.0
        %2403 = vmatprep.subr.mxu0 0.0
        %2404 = vmatpush1.msra.mxu0 0.0
        %2405 = vmatprep.subr.mxu0 0.0
        %2406 = vmatpush1.msra.mxu0 0.0
        %2407 = vmatprep.subr.mxu0 0.0
        %2408 = vmatpush1.msra.mxu0 0.0
        %2409 = vmatprep.subr.mxu0 0.0
        %2410 = vmatpush1.msra.mxu0 0.0
        %2411 = vmatprep.subr.mxu0 0.0
        %2412 = vmatpush1.msra.mxu0 0.0
        %2413 = vmatprep.subr.mxu0 0.0
        %2414 = vmatpush1.msra.mxu0 0.0
        %2415 = vmatprep.subr.mxu0 0.0
        %2416 = vmatpush1.msra.mxu0 0.0
        %2417 = vmatprep.subr.mxu0 0.0
        %2418 = vmatpush1.msra.mxu0 0.0
        %2419 = vmatprep.subr.mxu0 0.0
        %2420 = vmatpush1.msra.mxu0 0.0
        %2421 = vmatprep.subr.mxu0 0.0
        %2422 = vmatpush1.msra.mxu0 0.0
        %2423 = vmatprep.subr.mxu0 0.0
        %2424 = vmatpush1.msra.mxu0 0.0
        %2425 = vmatprep.subr.mxu0 0.0
        %2426 = vmatpush1.msra.mxu0 0.0
        %2427 = vmatprep.subr.mxu0 0.0
        %2428 = vmatpush1.msra.mxu0 0.0
        %2429 = vmatprep.subr.mxu0 0.0
        %2430 = vmatpush1.msra.mxu0 0.0
        %2431 = vmatprep.subr.mxu0 0.0
        %2432 = vmatpush1.msra.mxu0 0.0
        %2433 = vmatprep.subr.mxu0 0.0
        %2434 = vmatpush1.msra.mxu0 0.0
        %2435 = vmatprep.subr.mxu0 0.0
        %2436 = vmatpush1.msra.mxu0 0.0
        %2437 = vmatprep.subr.mxu0 0.0
        %2438 = vmatpush1.msra.mxu0 0.0
        %2439 = vmatprep.subr.mxu0 0.0
        %2440 = vmatpush1.msra.mxu0 0.0
        %2441 = vmatprep.subr.mxu0 0.0
        %2442 = vmatpush1.msra.mxu0 0.0
        %2443 = vmatprep.subr.mxu0 0.0
        %2444 = vmatpush1.msra.mxu0 0.0
        %2445 = vmatprep.subr.mxu0 0.0
        %2446 = vmatpush1.msra.mxu0 0.0
        %2447 = vmatprep.subr.mxu0 0.0
        %2448 = vmatpush1.msra.mxu0 0.0
        %2449 = vmatprep.mubr.f32.mxu0 0.0
        %2450 = vmatmul.mubr.f32.gmra.mrb[0].mxu0 %v2380
        %v2451 = vpop.f32.mrb[0].mxu0
        %v2452 = vadd.f32 %v2371, %v2451
        %v2453 = vpop.f32.mrb[0].mxu0
        %2454 = vmatprep.mubr.f32.mxu0 0.0
        %2455 = vmatmul.mubr.f32.gmra.mrb[0].mxu0 %v2383
        %v2456 = vpop.f32.mrb[0].mxu0
        %v2457 = vadd.f32 %v2376, %v2456
        %v2458 = vpop.f32.mrb[0].mxu0
        %2459 = vdwg.mxu0
        %s2460 = sld [smem:[#allocation2 + $0x2]]
        %v2461 = vstv %s2460
        %v2462 = vmul.f32 %v2461, %v1088
        %v2463 = vmul.f32 %v2461, %v1093
        %v2464 = vadd.f32 %v2462, 0.0
        %v2465 = vadd.f32 %v2463, 0.0
        %s2466 = sld [smem:[#allocation2 + $0x9]]
        %v2467 = vstv %s2466
        %v2468 = vmul.f32 %v2467, %v1172
        %v2469 = vmul.f32 %v2467, %v1177
        %v2470 = vadd.f32 %v2464, %v2468
        %v2471 = vadd.f32 %v2465, %v2469
        %s2472 = sld [smem:[#allocation2 + $0x10]]
        %v2473 = vstv %s2472
        %v2474 = vmul.f32 %v2473, %v1256
        %v2475 = vmul.f32 %v2473, %v1261
        %v2476 = vadd.f32 %v2470, %v2474
        %v2477 = vadd.f32 %v2471, %v2475
        %s2478 = sld [smem:[#allocation2 + $0x17]]
        %v2479 = vstv %s2478
        %v2480 = vmul.f32 %v2479, %v1340
        %v2481 = vmul.f32 %v2479, %v1345
        %v2482 = vadd.f32 %v2476, %v2480
        %v2483 = vadd.f32 %v2477, %v2481
        %s2484 = sld [smem:[#allocation2 + $0x1e]]
        %v2485 = vstv %s2484
        %v2486 = vmul.f32 %v2485, %v1424
        %v2487 = vmul.f32 %v2485, %v1429
        %v2488 = vadd.f32 %v2482, %v2486
        %v2489 = vadd.f32 %v2483, %v2487
        %s2490 = sld [smem:[#allocation2 + $0x25]]
        %v2491 = vstv %s2490
        %v2492 = vmul.f32 %v2491, %v1508
        %v2493 = vmul.f32 %v2491, %v1513
        %v2494 = vadd.f32 %v2488, %v2492
        %v2495 = vadd.f32 %v2489, %v2493
        %s2496 = sld [smem:[#allocation2 + $0x2c]]
        %v2497 = vstv %s2496
        %v2498 = vmul.f32 %v2497, %v1592
        %v2499 = vmul.f32 %v2497, %v1597
        %v2500 = vadd.f32 %v2494, %v2498
        %v2501 = vadd.f32 %v2495, %v2499
        %s2502 = sld [smem:[#allocation2 + $0x33]]
        %v2503 = vstv %s2502
        %v2504 = vmul.f32 %v2503, %v1667
        %v2505 = vmul.f32 %v2503, %v1672
        %v2506 = vadd.f32 %v2500, %v2504
        %v2507 = vadd.f32 %v2501, %v2505
        %s2508 = sld [smem:[#allocation2 + $0x3a]]
        %v2509 = vstv %s2508
        %v2510 = vmul.f32 %v2509, %v1742
        %v2511 = vmul.f32 %v2509, %v1747
        %v2512 = vadd.f32 %v2506, %v2510
        %v2513 = vadd.f32 %v2507, %v2511
        %s2514 = sld [smem:[#allocation2 + $0x41]]
        %v2515 = vstv %s2514
        %v2516 = vmul.f32 %v2515, %v1817
        %v2517 = vmul.f32 %v2515, %v1822
        %v2518 = vadd.f32 %v2512, %v2516
        %v2519 = vadd.f32 %v2513, %v2517
        %s2520 = sld [smem:[#allocation2 + $0x48]]
        %v2521 = vstv %s2520
        %v2522 = vmul.f32 %v2521, %v1892
        %v2523 = vmul.f32 %v2521, %v1897
        %v2524 = vadd.f32 %v2518, %v2522
        %v2525 = vadd.f32 %v2519, %v2523
        %s2526 = sld [smem:[#allocation2 + $0x4f]]
        %v2527 = vstv %s2526
        %v2528 = vmul.f32 %v2527, %v1967
        %v2529 = vmul.f32 %v2527, %v1972
        %v2530 = vadd.f32 %v2524, %v2528
        %v2531 = vadd.f32 %v2525, %v2529
        %s2532 = sld [smem:[#allocation2 + $0x56]]
        %v2533 = vstv %s2532
        %v2534 = vmul.f32 %v2533, %v2042
        %v2535 = vmul.f32 %v2533, %v2047
        %v2536 = vadd.f32 %v2530, %v2534
        %v2537 = vadd.f32 %v2531, %v2535
        %s2538 = sld [smem:[#allocation2 + $0x5d]]
        %v2539 = vstv %s2538
        %v2540 = vmul.f32 %v2539, %v2117
        %v2541 = vmul.f32 %v2539, %v2122
        %v2542 = vadd.f32 %v2536, %v2540
        %v2543 = vadd.f32 %v2537, %v2541
        %s2544 = scalar_lea.vmem %s5, 32
        %v2545 = vld [vmem:[%s2544] sm:$0xff]
        %v2546 = vld [vmem:[%s2544 + $0x8] sm:$0xff]
        %v2548 = vsel %vm1014, %v2542, 0
        %v2551 = vsel %vm1014, %v2543, 0
        %2553 = vmatprep.subr.mxu0 0.0
        %2554 = vmatpush1.msra.mxu0 %v2545
        %2555 = vmatprep.subr.mxu0 0.0
        %2556 = vmatpush1.msra.mxu0 %v2546
        %2557 = vmatprep.subr.mxu0 0.0
        %2558 = vmatpush1.msra.mxu0 0.0
        %2559 = vmatprep.subr.mxu0 0.0
        %2560 = vmatpush1.msra.mxu0 0.0
        %2561 = vmatprep.subr.mxu0 0.0
        %2562 = vmatpush1.msra.mxu0 0.0
        %2563 = vmatprep.subr.mxu0 0.0
        %2564 = vmatpush1.msra.mxu0 0.0
        %2565 = vmatprep.subr.mxu0 0.0
        %2566 = vmatpush1.msra.mxu0 0.0
        %2567 = vmatprep.subr.mxu0 0.0
        %2568 = vmatpush1.msra.mxu0 0.0
        %2569 = vmatprep.subr.mxu0 0.0
        %2570 = vmatpush1.msra.mxu0 0.0
        %2571 = vmatprep.subr.mxu0 0.0
        %2572 = vmatpush1.msra.mxu0 0.0
        %2573 = vmatprep.subr.mxu0 0.0
        %2574 = vmatpush1.msra.mxu0 0.0
        %2575 = vmatprep.subr.mxu0 0.0
        %2576 = vmatpush1.msra.mxu0 0.0
        %2577 = vmatprep.subr.mxu0 0.0
        %2578 = vmatpush1.msra.mxu0 0.0
        %2579 = vmatprep.subr.mxu0 0.0
        %2580 = vmatpush1.msra.mxu0 0.0
        %2581 = vmatprep.subr.mxu0 0.0
        %2582 = vmatpush1.msra.mxu0 0.0
        %2583 = vmatprep.subr.mxu0 0.0
        %2584 = vmatpush1.msra.mxu0 0.0
        %2585 = vmatprep.subr.mxu0 0.0
        %2586 = vmatpush1.msra.mxu0 0.0
        %2587 = vmatprep.subr.mxu0 0.0
        %2588 = vmatpush1.msra.mxu0 0.0
        %2589 = vmatprep.subr.mxu0 0.0
        %2590 = vmatpush1.msra.mxu0 0.0
        %2591 = vmatprep.subr.mxu0 0.0
        %2592 = vmatpush1.msra.mxu0 0.0
        %2593 = vmatprep.subr.mxu0 0.0
        %2594 = vmatpush1.msra.mxu0 0.0
        %2595 = vmatprep.subr.mxu0 0.0
        %2596 = vmatpush1.msra.mxu0 0.0
        %2597 = vmatprep.subr.mxu0 0.0
        %2598 = vmatpush1.msra.mxu0 0.0
        %2599 = vmatprep.subr.mxu0 0.0
        %2600 = vmatpush1.msra.mxu0 0.0
        %2601 = vmatprep.subr.mxu0 0.0
        %2602 = vmatpush1.msra.mxu0 0.0
        %2603 = vmatprep.subr.mxu0 0.0
        %2604 = vmatpush1.msra.mxu0 0.0
        %2605 = vmatprep.subr.mxu0 0.0
        %2606 = vmatpush1.msra.mxu0 0.0
        %2607 = vmatprep.subr.mxu0 0.0
        %2608 = vmatpush1.msra.mxu0 0.0
        %2609 = vmatprep.subr.mxu0 0.0
        %2610 = vmatpush1.msra.mxu0 0.0
        %2611 = vmatprep.subr.mxu0 0.0
        %2612 = vmatpush1.msra.mxu0 0.0
        %2613 = vmatprep.subr.mxu0 0.0
        %2614 = vmatpush1.msra.mxu0 0.0
        %2615 = vmatprep.subr.mxu0 0.0
        %2616 = vmatpush1.msra.mxu0 0.0
        %2617 = vmatprep.mubr.f32.mxu0 0.0
        %2618 = vmatmul.mubr.f32.gmra.mrb[0].mxu0 %v2548
        %v2619 = vpop.f32.mrb[0].mxu0
        %v2620 = vadd.f32 0.0, %v2619
        %v2621 = vpop.f32.mrb[0].mxu0
        %2622 = vmatprep.mubr.f32.mxu0 0.0
        %2623 = vmatmul.mubr.f32.gmra.mrb[0].mxu0 %v2551
        %v2624 = vpop.f32.mrb[0].mxu0
        %v2625 = vadd.f32 0.0, %v2624
        %v2626 = vpop.f32.mrb[0].mxu0
        %2627 = vdwg.mxu0
        %v2628 = vadd.f32 %v2452, %v2620
        %v2629 = vadd.f32 %v2457, %v2625
        %s2630 = sld [smem:[#allocation2 + $0x3]]
        %v2631 = vstv %s2630
        %v2632 = vmul.f32 %v2631, %v1088
        %v2633 = vmul.f32 %v2631, %v1093
        %v2634 = vadd.f32 %v2632, 0.0
        %v2635 = vadd.f32 %v2633, 0.0
        %s2636 = sld [smem:[#allocation2 + $0xa]]
        %v2637 = vstv %s2636
        %v2638 = vmul.f32 %v2637, %v1172
        %v2639 = vmul.f32 %v2637, %v1177
        %v2640 = vadd.f32 %v2634, %v2638
        %v2641 = vadd.f32 %v2635, %v2639
        %s2642 = sld [smem:[#allocation2 + $0x11]]
        %v2643 = vstv %s2642
        %v2644 = vmul.f32 %v2643, %v1256
        %v2645 = vmul.f32 %v2643, %v1261
        %v2646 = vadd.f32 %v2640, %v2644
        %v2647 = vadd.f32 %v2641, %v2645
        %s2648 = sld [smem:[#allocation2 + $0x18]]
        %v2649 = vstv %s2648
        %v2650 = vmul.f32 %v2649, %v1340
        %v2651 = vmul.f32 %v2649, %v1345
        %v2652 = vadd.f32 %v2646, %v2650
        %v2653 = vadd.f32 %v2647, %v2651
        %s2654 = sld [smem:[#allocation2 + $0x1f]]
        %v2655 = vstv %s2654
        %v2656 = vmul.f32 %v2655, %v1424
        %v2657 = vmul.f32 %v2655, %v1429
        %v2658 = vadd.f32 %v2652, %v2656
        %v2659 = vadd.f32 %v2653, %v2657
        %s2660 = sld [smem:[#allocation2 + $0x26]]
        %v2661 = vstv %s2660
        %v2662 = vmul.f32 %v2661, %v1508
        %v2663 = vmul.f32 %v2661, %v1513
        %v2664 = vadd.f32 %v2658, %v2662
        %v2665 = vadd.f32 %v2659, %v2663
        %s2666 = sld [smem:[#allocation2 + $0x2d]]
        %v2667 = vstv %s2666
        %v2668 = vmul.f32 %v2667, %v1592
        %v2669 = vmul.f32 %v2667, %v1597
        %v2670 = vadd.f32 %v2664, %v2668
        %v2671 = vadd.f32 %v2665, %v2669
        %s2672 = sld [smem:[#allocation2 + $0x34]]
        %v2673 = vstv %s2672
        %v2674 = vmul.f32 %v2673, %v1667
        %v2675 = vmul.f32 %v2673, %v1672
        %v2676 = vadd.f32 %v2670, %v2674
        %v2677 = vadd.f32 %v2671, %v2675
        %s2678 = sld [smem:[#allocation2 + $0x3b]]
        %v2679 = vstv %s2678
        %v2680 = vmul.f32 %v2679, %v1742
        %v2681 = vmul.f32 %v2679, %v1747
        %v2682 = vadd.f32 %v2676, %v2680
        %v2683 = vadd.f32 %v2677, %v2681
        %s2684 = sld [smem:[#allocation2 + $0x42]]
        %v2685 = vstv %s2684
        %v2686 = vmul.f32 %v2685, %v1817
        %v2687 = vmul.f32 %v2685, %v1822
        %v2688 = vadd.f32 %v2682, %v2686
        %v2689 = vadd.f32 %v2683, %v2687
        %s2690 = sld [smem:[#allocation2 + $0x49]]
        %v2691 = vstv %s2690
        %v2692 = vmul.f32 %v2691, %v1892
        %v2693 = vmul.f32 %v2691, %v1897
        %v2694 = vadd.f32 %v2688, %v2692
        %v2695 = vadd.f32 %v2689, %v2693
        %s2696 = sld [smem:[#allocation2 + $0x50]]
        %v2697 = vstv %s2696
        %v2698 = vmul.f32 %v2697, %v1967
        %v2699 = vmul.f32 %v2697, %v1972
        %v2700 = vadd.f32 %v2694, %v2698
        %v2701 = vadd.f32 %v2695, %v2699
        %s2702 = sld [smem:[#allocation2 + $0x57]]
        %v2703 = vstv %s2702
        %v2704 = vmul.f32 %v2703, %v2042
        %v2705 = vmul.f32 %v2703, %v2047
        %v2706 = vadd.f32 %v2700, %v2704
        %v2707 = vadd.f32 %v2701, %v2705
        %s2708 = sld [smem:[#allocation2 + $0x5e]]
        %v2709 = vstv %s2708
        %v2710 = vmul.f32 %v2709, %v2117
        %v2711 = vmul.f32 %v2709, %v2122
        %v2712 = vadd.f32 %v2706, %v2710
        %v2713 = vadd.f32 %v2707, %v2711
        %s2714 = scalar_lea.vmem %s5, 48
        %v2715 = vld [vmem:[%s2714] sm:$0xff]
        %v2716 = vld [vmem:[%s2714 + $0x8] sm:$0xff]
        %v2718 = vsel %vm1014, %v2712, 0
        %v2721 = vsel %vm1014, %v2713, 0
        %2723 = vmatprep.subr.mxu0 0.0
        %2724 = vmatpush1.msra.mxu0 %v2715
        %2725 = vmatprep.subr.mxu0 0.0
        %2726 = vmatpush1.msra.mxu0 %v2716
        %2727 = vmatprep.subr.mxu0 0.0
        %2728 = vmatpush1.msra.mxu0 0.0
        %2729 = vmatprep.subr.mxu0 0.0
        %2730 = vmatpush1.msra.mxu0 0.0
        %2731 = vmatprep.subr.mxu0 0.0
        %2732 = vmatpush1.msra.mxu0 0.0
        %2733 = vmatprep.subr.mxu0 0.0
        %2734 = vmatpush1.msra.mxu0 0.0
        %2735 = vmatprep.subr.mxu0 0.0
        %2736 = vmatpush1.msra.mxu0 0.0
        %2737 = vmatprep.subr.mxu0 0.0
        %2738 = vmatpush1.msra.mxu0 0.0
        %2739 = vmatprep.subr.mxu0 0.0
        %2740 = vmatpush1.msra.mxu0 0.0
        %2741 = vmatprep.subr.mxu0 0.0
        %2742 = vmatpush1.msra.mxu0 0.0
        %2743 = vmatprep.subr.mxu0 0.0
        %2744 = vmatpush1.msra.mxu0 0.0
        %2745 = vmatprep.subr.mxu0 0.0
        %2746 = vmatpush1.msra.mxu0 0.0
        %2747 = vmatprep.subr.mxu0 0.0
        %2748 = vmatpush1.msra.mxu0 0.0
        %2749 = vmatprep.subr.mxu0 0.0
        %2750 = vmatpush1.msra.mxu0 0.0
        %2751 = vmatprep.subr.mxu0 0.0
        %2752 = vmatpush1.msra.mxu0 0.0
        %2753 = vmatprep.subr.mxu0 0.0
        %2754 = vmatpush1.msra.mxu0 0.0
        %2755 = vmatprep.subr.mxu0 0.0
        %2756 = vmatpush1.msra.mxu0 0.0
        %2757 = vmatprep.subr.mxu0 0.0
        %2758 = vmatpush1.msra.mxu0 0.0
        %2759 = vmatprep.subr.mxu0 0.0
        %2760 = vmatpush1.msra.mxu0 0.0
        %2761 = vmatprep.subr.mxu0 0.0
        %2762 = vmatpush1.msra.mxu0 0.0
        %2763 = vmatprep.subr.mxu0 0.0
        %2764 = vmatpush1.msra.mxu0 0.0
        %2765 = vmatprep.subr.mxu0 0.0
        %2766 = vmatpush1.msra.mxu0 0.0
        %2767 = vmatprep.subr.mxu0 0.0
        %2768 = vmatpush1.msra.mxu0 0.0
        %2769 = vmatprep.subr.mxu0 0.0
        %2770 = vmatpush1.msra.mxu0 0.0
        %2771 = vmatprep.subr.mxu0 0.0
        %2772 = vmatpush1.msra.mxu0 0.0
        %2773 = vmatprep.subr.mxu0 0.0
        %2774 = vmatpush1.msra.mxu0 0.0
        %2775 = vmatprep.subr.mxu0 0.0
        %2776 = vmatpush1.msra.mxu0 0.0
        %2777 = vmatprep.subr.mxu0 0.0
        %2778 = vmatpush1.msra.mxu0 0.0
        %2779 = vmatprep.subr.mxu0 0.0
        %2780 = vmatpush1.msra.mxu0 0.0
        %2781 = vmatprep.subr.mxu0 0.0
        %2782 = vmatpush1.msra.mxu0 0.0
        %2783 = vmatprep.subr.mxu0 0.0
        %2784 = vmatpush1.msra.mxu0 0.0
        %2785 = vmatprep.subr.mxu0 0.0
        %2786 = vmatpush1.msra.mxu0 0.0
        %2787 = vmatprep.mubr.f32.mxu0 0.0
        %2788 = vmatmul.mubr.f32.gmra.mrb[0].mxu0 %v2718
        %v2789 = vpop.f32.mrb[0].mxu0
        %v2790 = vadd.f32 0.0, %v2789
        %v2791 = vpop.f32.mrb[0].mxu0
        %2792 = vmatprep.mubr.f32.mxu0 0.0
        %2793 = vmatmul.mubr.f32.gmra.mrb[0].mxu0 %v2721
        %v2794 = vpop.f32.mrb[0].mxu0
        %v2795 = vadd.f32 0.0, %v2794
        %v2796 = vpop.f32.mrb[0].mxu0
        %2797 = vdwg.mxu0
        %v2798 = vadd.f32 %v2628, %v2790
        %v2799 = vadd.f32 %v2629, %v2795
        %s2800 = sld [smem:[#allocation2 + $0x4]]
        %v2801 = vstv %s2800
        %v2802 = vmul.f32 %v2801, %v1088
        %v2803 = vmul.f32 %v2801, %v1093
        %v2804 = vadd.f32 %v2802, 0.0
        %v2805 = vadd.f32 %v2803, 0.0
        %s2806 = sld [smem:[#allocation2 + $0xb]]
        %v2807 = vstv %s2806
        %v2808 = vmul.f32 %v2807, %v1172
        %v2809 = vmul.f32 %v2807, %v1177
        %v2810 = vadd.f32 %v2804, %v2808
        %v2811 = vadd.f32 %v2805, %v2809
        %s2812 = sld [smem:[#allocation2 + $0x12]]
        %v2813 = vstv %s2812
        %v2814 = vmul.f32 %v2813, %v1256
        %v2815 = vmul.f32 %v2813, %v1261
        %v2816 = vadd.f32 %v2810, %v2814
        %v2817 = vadd.f32 %v2811, %v2815
        %s2818 = sld [smem:[#allocation2 + $0x19]]
        %v2819 = vstv %s2818
        %v2820 = vmul.f32 %v2819, %v1340
        %v2821 = vmul.f32 %v2819, %v1345
        %v2822 = vadd.f32 %v2816, %v2820
        %v2823 = vadd.f32 %v2817, %v2821
        %s2824 = sld [smem:[#allocation2 + $0x20]]
        %v2825 = vstv %s2824
        %v2826 = vmul.f32 %v2825, %v1424
        %v2827 = vmul.f32 %v2825, %v1429
        %v2828 = vadd.f32 %v2822, %v2826
        %v2829 = vadd.f32 %v2823, %v2827
        %s2830 = sld [smem:[#allocation2 + $0x27]]
        %v2831 = vstv %s2830
        %v2832 = vmul.f32 %v2831, %v1508
        %v2833 = vmul.f32 %v2831, %v1513
        %v2834 = vadd.f32 %v2828, %v2832
        %v2835 = vadd.f32 %v2829, %v2833
        %s2836 = sld [smem:[#allocation2 + $0x2e]]
        %v2837 = vstv %s2836
        %v2838 = vmul.f32 %v2837, %v1592
        %v2839 = vmul.f32 %v2837, %v1597
        %v2840 = vadd.f32 %v2834, %v2838
        %v2841 = vadd.f32 %v2835, %v2839
        %s2842 = sld [smem:[#allocation2 + $0x35]]
        %v2843 = vstv %s2842
        %v2844 = vmul.f32 %v2843, %v1667
        %v2845 = vmul.f32 %v2843, %v1672
        %v2846 = vadd.f32 %v2840, %v2844
        %v2847 = vadd.f32 %v2841, %v2845
        %s2848 = sld [smem:[#allocation2 + $0x3c]]
        %v2849 = vstv %s2848
        %v2850 = vmul.f32 %v2849, %v1742
        %v2851 = vmul.f32 %v2849, %v1747
        %v2852 = vadd.f32 %v2846, %v2850
        %v2853 = vadd.f32 %v2847, %v2851
        %s2854 = sld [smem:[#allocation2 + $0x43]]
        %v2855 = vstv %s2854
        %v2856 = vmul.f32 %v2855, %v1817
        %v2857 = vmul.f32 %v2855, %v1822
        %v2858 = vadd.f32 %v2852, %v2856
        %v2859 = vadd.f32 %v2853, %v2857
        %s2860 = sld [smem:[#allocation2 + $0x4a]]
        %v2861 = vstv %s2860
        %v2862 = vmul.f32 %v2861, %v1892
        %v2863 = vmul.f32 %v2861, %v1897
        %v2864 = vadd.f32 %v2858, %v2862
        %v2865 = vadd.f32 %v2859, %v2863
        %s2866 = sld [smem:[#allocation2 + $0x51]]
        %v2867 = vstv %s2866
        %v2868 = vmul.f32 %v2867, %v1967
        %v2869 = vmul.f32 %v2867, %v1972
        %v2870 = vadd.f32 %v2864, %v2868
        %v2871 = vadd.f32 %v2865, %v2869
        %s2872 = sld [smem:[#allocation2 + $0x58]]
        %v2873 = vstv %s2872
        %v2874 = vmul.f32 %v2873, %v2042
        %v2875 = vmul.f32 %v2873, %v2047
        %v2876 = vadd.f32 %v2870, %v2874
        %v2877 = vadd.f32 %v2871, %v2875
        %s2878 = sld [smem:[#allocation2 + $0x5f]]
        %v2879 = vstv %s2878
        %v2880 = vmul.f32 %v2879, %v2117
        %v2881 = vmul.f32 %v2879, %v2122
        %v2882 = vadd.f32 %v2876, %v2880
        %v2883 = vadd.f32 %v2877, %v2881
        %s2884 = scalar_lea.vmem %s5, 64
        %v2885 = vld [vmem:[%s2884] sm:$0xff]
        %v2886 = vld [vmem:[%s2884 + $0x8] sm:$0xff]
        %v2888 = vsel %vm1014, %v2882, 0
        %v2891 = vsel %vm1014, %v2883, 0
        %2893 = vmatprep.subr.mxu0 0.0
        %2894 = vmatpush1.msra.mxu0 %v2885
        %2895 = vmatprep.subr.mxu0 0.0
        %2896 = vmatpush1.msra.mxu0 %v2886
        %2897 = vmatprep.subr.mxu0 0.0
        %2898 = vmatpush1.msra.mxu0 0.0
        %2899 = vmatprep.subr.mxu0 0.0
        %2900 = vmatpush1.msra.mxu0 0.0
        %2901 = vmatprep.subr.mxu0 0.0
        %2902 = vmatpush1.msra.mxu0 0.0
        %2903 = vmatprep.subr.mxu0 0.0
        %2904 = vmatpush1.msra.mxu0 0.0
        %2905 = vmatprep.subr.mxu0 0.0
        %2906 = vmatpush1.msra.mxu0 0.0
        %2907 = vmatprep.subr.mxu0 0.0
        %2908 = vmatpush1.msra.mxu0 0.0
        %2909 = vmatprep.subr.mxu0 0.0
        %2910 = vmatpush1.msra.mxu0 0.0
        %2911 = vmatprep.subr.mxu0 0.0
        %2912 = vmatpush1.msra.mxu0 0.0
        %2913 = vmatprep.subr.mxu0 0.0
        %2914 = vmatpush1.msra.mxu0 0.0
        %2915 = vmatprep.subr.mxu0 0.0
        %2916 = vmatpush1.msra.mxu0 0.0
        %2917 = vmatprep.subr.mxu0 0.0
        %2918 = vmatpush1.msra.mxu0 0.0
        %2919 = vmatprep.subr.mxu0 0.0
        %2920 = vmatpush1.msra.mxu0 0.0
        %2921 = vmatprep.subr.mxu0 0.0
        %2922 = vmatpush1.msra.mxu0 0.0
        %2923 = vmatprep.subr.mxu0 0.0
        %2924 = vmatpush1.msra.mxu0 0.0
        %2925 = vmatprep.subr.mxu0 0.0
        %2926 = vmatpush1.msra.mxu0 0.0
        %2927 = vmatprep.subr.mxu0 0.0
        %2928 = vmatpush1.msra.mxu0 0.0
        %2929 = vmatprep.subr.mxu0 0.0
        %2930 = vmatpush1.msra.mxu0 0.0
        %2931 = vmatprep.subr.mxu0 0.0
        %2932 = vmatpush1.msra.mxu0 0.0
        %2933 = vmatprep.subr.mxu0 0.0
        %2934 = vmatpush1.msra.mxu0 0.0
        %2935 = vmatprep.subr.mxu0 0.0
        %2936 = vmatpush1.msra.mxu0 0.0
        %2937 = vmatprep.subr.mxu0 0.0
        %2938 = vmatpush1.msra.mxu0 0.0
        %2939 = vmatprep.subr.mxu0 0.0
        %2940 = vmatpush1.msra.mxu0 0.0
        %2941 = vmatprep.subr.mxu0 0.0
        %2942 = vmatpush1.msra.mxu0 0.0
        %2943 = vmatprep.subr.mxu0 0.0
        %2944 = vmatpush1.msra.mxu0 0.0
        %2945 = vmatprep.subr.mxu0 0.0
        %2946 = vmatpush1.msra.mxu0 0.0
        %2947 = vmatprep.subr.mxu0 0.0
        %2948 = vmatpush1.msra.mxu0 0.0
        %2949 = vmatprep.subr.mxu0 0.0
        %2950 = vmatpush1.msra.mxu0 0.0
        %2951 = vmatprep.subr.mxu0 0.0
        %2952 = vmatpush1.msra.mxu0 0.0
        %2953 = vmatprep.subr.mxu0 0.0
        %2954 = vmatpush1.msra.mxu0 0.0
        %2955 = vmatprep.subr.mxu0 0.0
        %2956 = vmatpush1.msra.mxu0 0.0
        %2957 = vmatprep.mubr.f32.mxu0 0.0
        %2958 = vmatmul.mubr.f32.gmra.mrb[0].mxu0 %v2888
        %v2959 = vpop.f32.mrb[0].mxu0
        %v2960 = vadd.f32 0.0, %v2959
        %v2961 = vpop.f32.mrb[0].mxu0
        %2962 = vmatprep.mubr.f32.mxu0 0.0
        %2963 = vmatmul.mubr.f32.gmra.mrb[0].mxu0 %v2891
        %v2964 = vpop.f32.mrb[0].mxu0
        %v2965 = vadd.f32 0.0, %v2964
        %v2966 = vpop.f32.mrb[0].mxu0
        %2967 = vdwg.mxu0
        %v2968 = vadd.f32 %v2798, %v2960
        %v2969 = vadd.f32 %v2799, %v2965
        %s2970 = sld [smem:[#allocation2 + $0x5]]
        %v2971 = vstv %s2970
        %v2972 = vmul.f32 %v2971, %v1088
        %v2973 = vmul.f32 %v2971, %v1093
        %v2974 = vadd.f32 %v2972, 0.0
        %v2975 = vadd.f32 %v2973, 0.0
        %s2976 = sld [smem:[#allocation2 + $0xc]]
        %v2977 = vstv %s2976
        %v2978 = vmul.f32 %v2977, %v1172
        %v2979 = vmul.f32 %v2977, %v1177
        %v2980 = vadd.f32 %v2974, %v2978
        %v2981 = vadd.f32 %v2975, %v2979
        %s2982 = sld [smem:[#allocation2 + $0x13]]
        %v2983 = vstv %s2982
        %v2984 = vmul.f32 %v2983, %v1256
        %v2985 = vmul.f32 %v2983, %v1261
        %v2986 = vadd.f32 %v2980, %v2984
        %v2987 = vadd.f32 %v2981, %v2985
        %s2988 = sld [smem:[#allocation2 + $0x1a]]
        %v2989 = vstv %s2988
        %v2990 = vmul.f32 %v2989, %v1340
        %v2991 = vmul.f32 %v2989, %v1345
        %v2992 = vadd.f32 %v2986, %v2990
        %v2993 = vadd.f32 %v2987, %v2991
        %s2994 = sld [smem:[#allocation2 + $0x21]]
        %v2995 = vstv %s2994
        %v2996 = vmul.f32 %v2995, %v1424
        %v2997 = vmul.f32 %v2995, %v1429
        %v2998 = vadd.f32 %v2992, %v2996
        %v2999 = vadd.f32 %v2993, %v2997
        %s3000 = sld [smem:[#allocation2 + $0x28]]
        %v3001 = vstv %s3000
        %v3002 = vmul.f32 %v3001, %v1508
        %v3003 = vmul.f32 %v3001, %v1513
        %v3004 = vadd.f32 %v2998, %v3002
        %v3005 = vadd.f32 %v2999, %v3003
        %s3006 = sld [smem:[#allocation2 + $0x2f]]
        %v3007 = vstv %s3006
        %v3008 = vmul.f32 %v3007, %v1592
        %v3009 = vmul.f32 %v3007, %v1597
        %v3010 = vadd.f32 %v3004, %v3008
        %v3011 = vadd.f32 %v3005, %v3009
        %s3012 = sld [smem:[#allocation2 + $0x36]]
        %v3013 = vstv %s3012
        %v3014 = vmul.f32 %v3013, %v1667
        %v3015 = vmul.f32 %v3013, %v1672
        %v3016 = vadd.f32 %v3010, %v3014
        %v3017 = vadd.f32 %v3011, %v3015
        %s3018 = sld [smem:[#allocation2 + $0x3d]]
        %v3019 = vstv %s3018
        %v3020 = vmul.f32 %v3019, %v1742
        %v3021 = vmul.f32 %v3019, %v1747
        %v3022 = vadd.f32 %v3016, %v3020
        %v3023 = vadd.f32 %v3017, %v3021
        %s3024 = sld [smem:[#allocation2 + $0x44]]
        %v3025 = vstv %s3024
        %v3026 = vmul.f32 %v3025, %v1817
        %v3027 = vmul.f32 %v3025, %v1822
        %v3028 = vadd.f32 %v3022, %v3026
        %v3029 = vadd.f32 %v3023, %v3027
        %s3030 = sld [smem:[#allocation2 + $0x4b]]
        %v3031 = vstv %s3030
        %v3032 = vmul.f32 %v3031, %v1892
        %v3033 = vmul.f32 %v3031, %v1897
        %v3034 = vadd.f32 %v3028, %v3032
        %v3035 = vadd.f32 %v3029, %v3033
        %s3036 = sld [smem:[#allocation2 + $0x52]]
        %v3037 = vstv %s3036
        %v3038 = vmul.f32 %v3037, %v1967
        %v3039 = vmul.f32 %v3037, %v1972
        %v3040 = vadd.f32 %v3034, %v3038
        %v3041 = vadd.f32 %v3035, %v3039
        %s3042 = sld [smem:[#allocation2 + $0x59]]
        %v3043 = vstv %s3042
        %v3044 = vmul.f32 %v3043, %v2042
        %v3045 = vmul.f32 %v3043, %v2047
        %v3046 = vadd.f32 %v3040, %v3044
        %v3047 = vadd.f32 %v3041, %v3045
        %s3048 = sld [smem:[#allocation2 + $0x60]]
        %v3049 = vstv %s3048
        %v3050 = vmul.f32 %v3049, %v2117
        %v3051 = vmul.f32 %v3049, %v2122
        %v3052 = vadd.f32 %v3046, %v3050
        %v3053 = vadd.f32 %v3047, %v3051
        %s3054 = scalar_lea.vmem %s5, 80
        %v3055 = vld [vmem:[%s3054] sm:$0xff]
        %v3056 = vld [vmem:[%s3054 + $0x8] sm:$0xff]
        %v3058 = vsel %vm1014, %v3052, 0
        %v3061 = vsel %vm1014, %v3053, 0
        %3063 = vmatprep.subr.mxu0 0.0
        %3064 = vmatpush1.msra.mxu0 %v3055
        %3065 = vmatprep.subr.mxu0 0.0
        %3066 = vmatpush1.msra.mxu0 %v3056
        %3067 = vmatprep.subr.mxu0 0.0
        %3068 = vmatpush1.msra.mxu0 0.0
        %3069 = vmatprep.subr.mxu0 0.0
        %3070 = vmatpush1.msra.mxu0 0.0
        %3071 = vmatprep.subr.mxu0 0.0
        %3072 = vmatpush1.msra.mxu0 0.0
        %3073 = vmatprep.subr.mxu0 0.0
        %3074 = vmatpush1.msra.mxu0 0.0
        %3075 = vmatprep.subr.mxu0 0.0
        %3076 = vmatpush1.msra.mxu0 0.0
        %3077 = vmatprep.subr.mxu0 0.0
        %3078 = vmatpush1.msra.mxu0 0.0
        %3079 = vmatprep.subr.mxu0 0.0
        %3080 = vmatpush1.msra.mxu0 0.0
        %3081 = vmatprep.subr.mxu0 0.0
        %3082 = vmatpush1.msra.mxu0 0.0
        %3083 = vmatprep.subr.mxu0 0.0
        %3084 = vmatpush1.msra.mxu0 0.0
        %3085 = vmatprep.subr.mxu0 0.0
        %3086 = vmatpush1.msra.mxu0 0.0
        %3087 = vmatprep.subr.mxu0 0.0
        %3088 = vmatpush1.msra.mxu0 0.0
        %3089 = vmatprep.subr.mxu0 0.0
        %3090 = vmatpush1.msra.mxu0 0.0
        %3091 = vmatprep.subr.mxu0 0.0
        %3092 = vmatpush1.msra.mxu0 0.0
        %3093 = vmatprep.subr.mxu0 0.0
        %3094 = vmatpush1.msra.mxu0 0.0
        %3095 = vmatprep.subr.mxu0 0.0
        %3096 = vmatpush1.msra.mxu0 0.0
        %3097 = vmatprep.subr.mxu0 0.0
        %3098 = vmatpush1.msra.mxu0 0.0
        %3099 = vmatprep.subr.mxu0 0.0
        %3100 = vmatpush1.msra.mxu0 0.0
        %3101 = vmatprep.subr.mxu0 0.0
        %3102 = vmatpush1.msra.mxu0 0.0
        %3103 = vmatprep.subr.mxu0 0.0
        %3104 = vmatpush1.msra.mxu0 0.0
        %3105 = vmatprep.subr.mxu0 0.0
        %3106 = vmatpush1.msra.mxu0 0.0
        %3107 = vmatprep.subr.mxu0 0.0
        %3108 = vmatpush1.msra.mxu0 0.0
        %3109 = vmatprep.subr.mxu0 0.0
        %3110 = vmatpush1.msra.mxu0 0.0
        %3111 = vmatprep.subr.mxu0 0.0
        %3112 = vmatpush1.msra.mxu0 0.0
        %3113 = vmatprep.subr.mxu0 0.0
        %3114 = vmatpush1.msra.mxu0 0.0
        %3115 = vmatprep.subr.mxu0 0.0
        %3116 = vmatpush1.msra.mxu0 0.0
        %3117 = vmatprep.subr.mxu0 0.0
        %3118 = vmatpush1.msra.mxu0 0.0
        %3119 = vmatprep.subr.mxu0 0.0
        %3120 = vmatpush1.msra.mxu0 0.0
        %3121 = vmatprep.subr.mxu0 0.0
        %3122 = vmatpush1.msra.mxu0 0.0
        %3123 = vmatprep.subr.mxu0 0.0
        %3124 = vmatpush1.msra.mxu0 0.0
        %3125 = vmatprep.subr.mxu0 0.0
        %3126 = vmatpush1.msra.mxu0 0.0
        %3127 = vmatprep.mubr.f32.mxu0 0.0
        %3128 = vmatmul.mubr.f32.gmra.mrb[0].mxu0 %v3058
        %v3129 = vpop.f32.mrb[0].mxu0
        %v3130 = vadd.f32 0.0, %v3129
        %v3131 = vpop.f32.mrb[0].mxu0
        %3132 = vmatprep.mubr.f32.mxu0 0.0
        %3133 = vmatmul.mubr.f32.gmra.mrb[0].mxu0 %v3061
        %v3134 = vpop.f32.mrb[0].mxu0
        %v3135 = vadd.f32 0.0, %v3134
        %v3136 = vpop.f32.mrb[0].mxu0
        %3137 = vdwg.mxu0
        %v3138 = vadd.f32 %v2968, %v3130
        %v3139 = vadd.f32 %v2969, %v3135
        %s3140 = sld [smem:[#allocation2 + $0x6]]
        %v3141 = vstv %s3140
        %v3142 = vmul.f32 %v3141, %v1088
        %v3143 = vmul.f32 %v3141, %v1093
        %v3144 = vadd.f32 %v3142, 0.0
        %v3145 = vadd.f32 %v3143, 0.0
        %s3146 = sld [smem:[#allocation2 + $0xd]]
        %v3147 = vstv %s3146
        %v3148 = vmul.f32 %v3147, %v1172
        %v3149 = vmul.f32 %v3147, %v1177
        %v3150 = vadd.f32 %v3144, %v3148
        %v3151 = vadd.f32 %v3145, %v3149
        %s3152 = sld [smem:[#allocation2 + $0x14]]
        %v3153 = vstv %s3152
        %v3154 = vmul.f32 %v3153, %v1256
        %v3155 = vmul.f32 %v3153, %v1261
        %v3156 = vadd.f32 %v3150, %v3154
        %v3157 = vadd.f32 %v3151, %v3155
        %s3158 = sld [smem:[#allocation2 + $0x1b]]
        %v3159 = vstv %s3158
        %v3160 = vmul.f32 %v3159, %v1340
        %v3161 = vmul.f32 %v3159, %v1345
        %v3162 = vadd.f32 %v3156, %v3160
        %v3163 = vadd.f32 %v3157, %v3161
        %s3164 = sld [smem:[#allocation2 + $0x22]]
        %v3165 = vstv %s3164
        %v3166 = vmul.f32 %v3165, %v1424
        %v3167 = vmul.f32 %v3165, %v1429
        %v3168 = vadd.f32 %v3162, %v3166
        %v3169 = vadd.f32 %v3163, %v3167
        %s3170 = sld [smem:[#allocation2 + $0x29]]
        %v3171 = vstv %s3170
        %v3172 = vmul.f32 %v3171, %v1508
        %v3173 = vmul.f32 %v3171, %v1513
        %v3174 = vadd.f32 %v3168, %v3172
        %v3175 = vadd.f32 %v3169, %v3173
        %s3176 = sld [smem:[#allocation2 + $0x30]]
        %v3177 = vstv %s3176
        %v3178 = vmul.f32 %v3177, %v1592
        %v3179 = vmul.f32 %v3177, %v1597
        %v3180 = vadd.f32 %v3174, %v3178
        %v3181 = vadd.f32 %v3175, %v3179
        %s3182 = sld [smem:[#allocation2 + $0x37]]
        %v3183 = vstv %s3182
        %v3184 = vmul.f32 %v3183, %v1667
        %v3185 = vmul.f32 %v3183, %v1672
        %v3186 = vadd.f32 %v3180, %v3184
        %v3187 = vadd.f32 %v3181, %v3185
        %s3188 = sld [smem:[#allocation2 + $0x3e]]
        %v3189 = vstv %s3188
        %v3190 = vmul.f32 %v3189, %v1742
        %v3191 = vmul.f32 %v3189, %v1747
        %v3192 = vadd.f32 %v3186, %v3190
        %v3193 = vadd.f32 %v3187, %v3191
        %s3194 = sld [smem:[#allocation2 + $0x45]]
        %v3195 = vstv %s3194
        %v3196 = vmul.f32 %v3195, %v1817
        %v3197 = vmul.f32 %v3195, %v1822
        %v3198 = vadd.f32 %v3192, %v3196
        %v3199 = vadd.f32 %v3193, %v3197
        %s3200 = sld [smem:[#allocation2 + $0x4c]]
        %v3201 = vstv %s3200
        %v3202 = vmul.f32 %v3201, %v1892
        %v3203 = vmul.f32 %v3201, %v1897
        %v3204 = vadd.f32 %v3198, %v3202
        %v3205 = vadd.f32 %v3199, %v3203
        %s3206 = sld [smem:[#allocation2 + $0x53]]
        %v3207 = vstv %s3206
        %v3208 = vmul.f32 %v3207, %v1967
        %v3209 = vmul.f32 %v3207, %v1972
        %v3210 = vadd.f32 %v3204, %v3208
        %v3211 = vadd.f32 %v3205, %v3209
        %s3212 = sld [smem:[#allocation2 + $0x5a]]
        %v3213 = vstv %s3212
        %v3214 = vmul.f32 %v3213, %v2042
        %v3215 = vmul.f32 %v3213, %v2047
        %v3216 = vadd.f32 %v3210, %v3214
        %v3217 = vadd.f32 %v3211, %v3215
        %s3218 = sld [smem:[#allocation2 + $0x61]]
        %v3219 = vstv %s3218
        %v3220 = vmul.f32 %v3219, %v2117
        %v3221 = vmul.f32 %v3219, %v2122
        %v3222 = vadd.f32 %v3216, %v3220
        %v3223 = vadd.f32 %v3217, %v3221
        %s3224 = scalar_lea.vmem %s5, 96
        %v3225 = vld [vmem:[%s3224] sm:$0xff]
        %v3226 = vld [vmem:[%s3224 + $0x8] sm:$0xff]
        %v3228 = vsel %vm1014, %v3222, 0
        %v3231 = vsel %vm1014, %v3223, 0
        %3233 = vmatprep.subr.mxu0 0.0
        %3234 = vmatpush1.msra.mxu0 %v3225
        %3235 = vmatprep.subr.mxu0 0.0
        %3236 = vmatpush1.msra.mxu0 %v3226
        %3237 = vmatprep.subr.mxu0 0.0
        %3238 = vmatpush1.msra.mxu0 0.0
        %3239 = vmatprep.subr.mxu0 0.0
        %3240 = vmatpush1.msra.mxu0 0.0
        %3241 = vmatprep.subr.mxu0 0.0
        %3242 = vmatpush1.msra.mxu0 0.0
        %3243 = vmatprep.subr.mxu0 0.0
        %3244 = vmatpush1.msra.mxu0 0.0
        %3245 = vmatprep.subr.mxu0 0.0
        %3246 = vmatpush1.msra.mxu0 0.0
        %3247 = vmatprep.subr.mxu0 0.0
        %3248 = vmatpush1.msra.mxu0 0.0
        %3249 = vmatprep.subr.mxu0 0.0
        %3250 = vmatpush1.msra.mxu0 0.0
        %3251 = vmatprep.subr.mxu0 0.0
        %3252 = vmatpush1.msra.mxu0 0.0
        %3253 = vmatprep.subr.mxu0 0.0
        %3254 = vmatpush1.msra.mxu0 0.0
        %3255 = vmatprep.subr.mxu0 0.0
        %3256 = vmatpush1.msra.mxu0 0.0
        %3257 = vmatprep.subr.mxu0 0.0
        %3258 = vmatpush1.msra.mxu0 0.0
        %3259 = vmatprep.subr.mxu0 0.0
        %3260 = vmatpush1.msra.mxu0 0.0
        %3261 = vmatprep.subr.mxu0 0.0
        %3262 = vmatpush1.msra.mxu0 0.0
        %3263 = vmatprep.subr.mxu0 0.0
        %3264 = vmatpush1.msra.mxu0 0.0
        %3265 = vmatprep.subr.mxu0 0.0
        %3266 = vmatpush1.msra.mxu0 0.0
        %3267 = vmatprep.subr.mxu0 0.0
        %3268 = vmatpush1.msra.mxu0 0.0
        %3269 = vmatprep.subr.mxu0 0.0
        %3270 = vmatpush1.msra.mxu0 0.0
        %3271 = vmatprep.subr.mxu0 0.0
        %3272 = vmatpush1.msra.mxu0 0.0
        %3273 = vmatprep.subr.mxu0 0.0
        %3274 = vmatpush1.msra.mxu0 0.0
        %3275 = vmatprep.subr.mxu0 0.0
        %3276 = vmatpush1.msra.mxu0 0.0
        %3277 = vmatprep.subr.mxu0 0.0
        %3278 = vmatpush1.msra.mxu0 0.0
        %3279 = vmatprep.subr.mxu0 0.0
        %3280 = vmatpush1.msra.mxu0 0.0
        %3281 = vmatprep.subr.mxu0 0.0
        %3282 = vmatpush1.msra.mxu0 0.0
        %3283 = vmatprep.subr.mxu0 0.0
        %3284 = vmatpush1.msra.mxu0 0.0
        %3285 = vmatprep.subr.mxu0 0.0
        %3286 = vmatpush1.msra.mxu0 0.0
        %3287 = vmatprep.subr.mxu0 0.0
        %3288 = vmatpush1.msra.mxu0 0.0
        %3289 = vmatprep.subr.mxu0 0.0
        %3290 = vmatpush1.msra.mxu0 0.0
        %3291 = vmatprep.subr.mxu0 0.0
        %3292 = vmatpush1.msra.mxu0 0.0
        %3293 = vmatprep.subr.mxu0 0.0
        %3294 = vmatpush1.msra.mxu0 0.0
        %3295 = vmatprep.subr.mxu0 0.0
        %3296 = vmatpush1.msra.mxu0 0.0
        %3297 = vmatprep.mubr.f32.mxu0 0.0
        %3298 = vmatmul.mubr.f32.gmra.mrb[0].mxu0 %v3228
        %v3299 = vpop.f32.mrb[0].mxu0
        %v3300 = vadd.f32 0.0, %v3299
        %v3301 = vpop.f32.mrb[0].mxu0
        %3302 = vmatprep.mubr.f32.mxu0 0.0
        %3303 = vmatmul.mubr.f32.gmra.mrb[0].mxu0 %v3231
        %v3304 = vpop.f32.mrb[0].mxu0
        %v3305 = vadd.f32 0.0, %v3304
        %v3306 = vpop.f32.mrb[0].mxu0
        %3307 = vdwg.mxu0
        %v3308 = vadd.f32 %v3138, %v3300
        %v3309 = vadd.f32 %v3139, %v3305
        %v3310 = vxor.u32 %v3308, 2147483648
        %v3311 = vxor.u32 %v3309, 2147483648
        %v3312 = vmul.f32 %v3310, 1.442695
        %v3313 = vpow.pop %v3312
        %v3314 = vmul.f32 %v3311, 1.442695
        %v3315 = vpow.pop %v3314
        %v3316 = vadd.f32 %v3313, 1.0
        %v3317 = vadd.f32 %v3315, 1.0
        %v3318 = vrcp.pop %v3316
        %v3319 = vmul.f32 1.0, %v3318
        %v3320 = vrcp.pop %v3317
        %v3321 = vmul.f32 1.0, %v3320
        %v3323 = vsel %vm1014, %v3319, 0
        %v3326 = vsel %vm1014, %v3321, 0
        %3328 = vmatprep.subr.mxu0 %v819
        %3329 = vmatpush1.msra.mxu0 %v818
        %3330 = vmatprep.subr.mxu0 %v821
        %3331 = vmatpush1.msra.mxu0 %v820
        %3332 = vmatprep.subr.mxu0 0.0
        %3333 = vmatpush1.msra.mxu0 0.0
        %3334 = vmatprep.subr.mxu0 0.0
        %3335 = vmatpush1.msra.mxu0 0.0
        %3336 = vmatprep.subr.mxu0 0.0
        %3337 = vmatpush1.msra.mxu0 0.0
        %3338 = vmatprep.subr.mxu0 0.0
        %3339 = vmatpush1.msra.mxu0 0.0
        %3340 = vmatprep.subr.mxu0 0.0
        %3341 = vmatpush1.msra.mxu0 0.0
        %3342 = vmatprep.subr.mxu0 0.0
        %3343 = vmatpush1.msra.mxu0 0.0
        %3344 = vmatprep.subr.mxu0 0.0
        %3345 = vmatpush1.msra.mxu0 0.0
        %3346 = vmatprep.subr.mxu0 0.0
        %3347 = vmatpush1.msra.mxu0 0.0
        %3348 = vmatprep.subr.mxu0 0.0
        %3349 = vmatpush1.msra.mxu0 0.0
        %3350 = vmatprep.subr.mxu0 0.0
        %3351 = vmatpush1.msra.mxu0 0.0
        %3352 = vmatprep.subr.mxu0 0.0
        %3353 = vmatpush1.msra.mxu0 0.0
        %3354 = vmatprep.subr.mxu0 0.0
        %3355 = vmatpush1.msra.mxu0 0.0
        %3356 = vmatprep.subr.mxu0 0.0
        %3357 = vmatpush1.msra.mxu0 0.0
        %3358 = vmatprep.subr.mxu0 0.0
        %3359 = vmatpush1.msra.mxu0 0.0
        %3360 = vmatprep.subr.mxu0 0.0
        %3361 = vmatpush1.msra.mxu0 0.0
        %3362 = vmatprep.subr.mxu0 0.0
        %3363 = vmatpush1.msra.mxu0 0.0
        %3364 = vmatprep.subr.mxu0 0.0
        %3365 = vmatpush1.msra.mxu0 0.0
        %3366 = vmatprep.subr.mxu0 0.0
        %3367 = vmatpush1.msra.mxu0 0.0
        %3368 = vmatprep.subr.mxu0 0.0
        %3369 = vmatpush1.msra.mxu0 0.0
        %3370 = vmatprep.subr.mxu0 0.0
        %3371 = vmatpush1.msra.mxu0 0.0
        %3372 = vmatprep.subr.mxu0 0.0
        %3373 = vmatpush1.msra.mxu0 0.0
        %3374 = vmatprep.subr.mxu0 0.0
        %3375 = vmatpush1.msra.mxu0 0.0
        %3376 = vmatprep.subr.mxu0 0.0
        %3377 = vmatpush1.msra.mxu0 0.0
        %3378 = vmatprep.subr.mxu0 0.0
        %3379 = vmatpush1.msra.mxu0 0.0
        %3380 = vmatprep.subr.mxu0 0.0
        %3381 = vmatpush1.msra.mxu0 0.0
        %3382 = vmatprep.subr.mxu0 0.0
        %3383 = vmatpush1.msra.mxu0 0.0
        %3384 = vmatprep.subr.mxu0 0.0
        %3385 = vmatpush1.msra.mxu0 0.0
        %3386 = vmatprep.subr.mxu0 0.0
        %3387 = vmatpush1.msra.mxu0 0.0
        %3388 = vmatprep.subr.mxu0 0.0
        %3389 = vmatpush1.msra.mxu0 0.0
        %3390 = vmatprep.subr.mxu0 0.0
        %3391 = vmatpush1.msra.mxu0 0.0
        %3392 = vmatprep.mubr.f32.mxu0 0.0
        %3393 = vmatmul.mubr.f32.gmra.mrb[0].mxu0 %v3323
        %v3394 = vpop.f32.mrb[0].mxu0
        %v3395 = vadd.f32 0.0, %v3394
        %v3396 = vpop.f32.mrb[0].mxu0
        %v3397 = vadd.f32 0.0, %v3396
        %3398 = vmatprep.mubr.f32.mxu0 0.0
        %3399 = vmatmul.mubr.f32.gmra.mrb[0].mxu0 %v3326
        %v3400 = vpop.f32.mrb[0].mxu0
        %v3401 = vadd.f32 0.0, %v3400
        %v3402 = vpop.f32.mrb[0].mxu0
        %v3403 = vadd.f32 0.0, %v3402
        %3404 = vdwg.mxu0
        %v3405 = vmul.f32 %v814, %v3395
        %v3406 = vmul.f32 %v815, %v3397
        %v3407 = vmul.f32 %v816, %v3401
        %v3408 = vmul.f32 %v817, %v3403
        %v3409 = vadd.f32 %v3405, %v3407
        %v3410 = vrot.slane %v3409, 4
        %v3411 = vadd.f32 %v3409, %v3410
        %v3412 = vrot.slane %v3411, 2
        %v3413 = vadd.f32 %v3411, %v3412
        %v3414 = vrot.slane %v3413, 1
        %v3415 = vadd.f32 %v3413, %v3414
        %v3416 = vadd.f32 %v3406, %v3408
        %v3417 = vrot.slane %v3416, 4
        %v3418 = vadd.f32 %v3416, %v3417
        %v3419 = vrot.slane %v3418, 2
        %v3420 = vadd.f32 %v3418, %v3419
        %v3421 = vrot.slane %v3420, 1
        %v3422 = vadd.f32 %v3420, %v3421
        %v3423 = vmul.f32 %v768, %v3415
        %v3424 = vmul.f32 %v769, %v3422
        %v3425 = vmul.f32 %v770, %v3415
        %v3426 = vmul.f32 %v771, %v3422
        %v3427 = vmul.f32 %v772, %v3415
        %v3428 = vmul.f32 %v773, %v3422
        %v3429 = vmul.f32 %v774, %v3415
        %v3430 = vmul.f32 %v775, %v3422
        %3431 = vst [vmem:[%s346] sm:$0xff] %v3423
        %3432 = vst [vmem:[%s346 + $0x8] sm:$0xff] %v3424
        %3433 = vst [vmem:[%s346 + $0x10] sm:$0xff] %v3425
        %3434 = vst [vmem:[%s346 + $0x18] sm:$0xff] %v3426
        %3435 = vst [vmem:[%s346 + $0x20] sm:$0xff] %v3427
        %3436 = vst [vmem:[%s346 + $0x28] sm:$0xff] %v3428
        %3437 = vst [vmem:[%s346 + $0x30] sm:$0xff] %v3429
        %3438 = vst [vmem:[%s346 + $0x38] sm:$0xff] %v3430
        %p3439 = scmp.lt.s32.totalorder %s21, 1
        %s3440 = scalar_select %p3439, %s21, 1
        %s3441 = smul.addr %s3440, 8
        %s3442 = smul.addr %s3441, 8
        %s3443 = scalar_lea.vmem %s9, %s3442
        // Predicated region
        $region61: #{cbam_forward.1} parent=55 // pred_check
          %p3444 = pneg %p233
        $region62: #{cbam_forward.1} parent=55 // pred_check_branch
          %3446 = sbr.rel (%p3444) target = $region64
        $region63: #{cbam_forward.1} parent=55 // pred_region
          _
        $region64: #{cbam_forward.1} parent=55 // pred_fallthru
          _
      $region56: #{cbam_forward.1} parent=5 // pred_fallthru
        _
      %p3447 = scmp.le.s32.totalorder 2, %s16
      // Predicated region
      $region65: #{cbam_forward.1} parent=5 // pred_check
        %p3448 = pneg %p3447
      $region66: #{cbam_forward.1} parent=5 // pred_check_branch
        %3450 = sbr.rel (%p3448) target = $region68
      $region67: #{cbam_forward.1} parent=5 // pred_region
        %s3451 = ssub.s32 %s16, 2
        // Predicated region
        $region69: #{cbam_forward.1} parent=67 // pred_check
          %p3452 = pneg %p239
        $region70: #{cbam_forward.1} parent=67 // pred_check_branch
          %3454 = sbr.rel (%p3452) target = $region72
        $region71: #{cbam_forward.1} parent=67 // pred_region
          %p3455 = scmp.lt.s32.totalorder %s22, 1
          %s3456 = scalar_select %p3455, %s22, 1
          %s3457 = smul.addr %s3456, 8
          %s3458 = smul.addr %s3457, 8
          %s3459 = scalar_lea.vmem %s9, %s3458
        $region72: #{cbam_forward.1} parent=67 // pred_fallthru
          _
      $region68: #{cbam_forward.1} parent=5 // pred_fallthru
        _
    $region6: #{cbam_forward.1} parent=1 // loop_footer
      %s20 = sadd.s32 1, %s16
    $region7: #{cbam_forward.1} parent=1 // loop_footer_branch
      %15 = sbr.rel target = $region3
    $region8: #{cbam_forward.1} parent=1 // loop_exit
      _
    %3460 = vsyncpa [#allocation3], 1
    %s3461 = scalar_lea.sflag [#allocation3], 1
    %3462 = vsyncpa %s3461, 1

</llo_original>
